<compile_context>
chip_gen: v7x
topology: tpu7x:2x2x1
jax: 0.10.0
libtpu: 0.0.40
codegen_flags: <defaults>
</compile_context>

<pallas_src>
import functools

import jax
import jax.numpy as jnp
from jax import lax
from jax.experimental import pallas as pl
from jax.experimental.pallas import tpu as pltpu


def _attention_kernel(x_ref, wqkv_ref, bqkv_ref, o_ref, *, inv_scale):
    b_blk, t, c = x_ref.shape  # block shape: (B_blk, T, C)

    # ---- Fused QKV projection: one MXU matmul, M = B_blk*T, N = 3C. ----
    x2d = x_ref[...].reshape(b_blk * t, c)
    qkv = jnp.dot(x2d, wqkv_ref[...], preferred_element_type=jnp.float32)
    qkv = qkv + bqkv_ref[...]

    # Static, 128-aligned lane slices -> Q, K, V  (B_blk, T, C).
    q = qkv[:, :c].reshape(b_blk, t, c)
    k = qkv[:, c:2 * c].reshape(b_blk, t, c)
    v = qkv[:, 2 * c:].reshape(b_blk, t, c)

    # scores[b, i, j] = K[b, i] . Q[b, j]   (matches matmul(K, movedim(Q, -1, -2)))
    s = jnp.einsum("bic,bjc->bij", k, q, preferred_element_type=jnp.float32)
    s = s * inv_scale  # / sqrt(layer_size)

    # Causal mask: keep j <= i (tril), else -inf.  Broadcasts over the batch dim.
    row = lax.broadcasted_iota(jnp.int32, (t, t), 0)
    col = lax.broadcasted_iota(jnp.int32, (t, t), 1)
    s = jnp.where(col <= row, s, -jnp.inf)

    # Numerically-stable softmax over the last dim.  Exact division keeps the
    # 1e-4 tolerance; the (T,T) softmax is negligible vs. the matmuls anyway.
    m = jnp.max(s, axis=-1, keepdims=True)
    e = jnp.exp(s - m)
    p = e / jnp.sum(e, axis=-1, keepdims=True)

    # Attention-weighted values.
    out = jnp.einsum("bij,bjc->bic", p, v, preferred_element_type=jnp.float32)
    o_ref[...] = out.astype(o_ref.dtype)


def prepare_fused_qkv(wq, bq, wk, bk, wv, bv):
    """Fuse PyTorch-layout Linear params once (static): W_qkv (C, 3C), b_qkv (1, 3C).

    PyTorch Linear computes x @ W.T + b, so weights are pre-transposed here.
    Order is [Q | K | V] along the output (lane) dimension.
    """
    wqkv = jnp.concatenate([wq.T, wk.T, wv.T], axis=1)
    bqkv = jnp.concatenate([bq, bk, bv]).reshape(1, -1)
    return wqkv, bqkv


def attention_forward(x, wqkv, bqkv, *, b_blk=16):
    """x: (B, T, C) f32; wqkv: (C, 3C); bqkv: (1, 3C) from prepare_fused_qkv.

    Returns (1, B, T, C), matching the module's output shape (its masked_fill
    against the (1,1,T,T) mask broadcasts a leading singleton dim).
    """
    B, T, C = x.shape
    inv_scale = 1.0 / float(C) ** 0.5

    # Batch-block the grid; pad B if it doesn't divide evenly (padding is zeros,
    # flows harmlessly through softmax and is sliced off afterwards).
    b_blk = max(1, min(b_blk, B))
    n_blocks = pl.cdiv(B, b_blk)
    b_pad = n_blocks * b_blk
    if b_pad != B:
        x = jnp.pad(x, ((0, b_pad - B), (0, 0), (0, 0)))

    kernel = functools.partial(_attention_kernel, inv_scale=inv_scale)

    cost = pl.CostEstimate(
        flops=2 * b_pad * T * C * (3 * C + 2 * T),   # QKV proj + K@Q^T + P@V
        transcendentals=b_pad * T * T,               # exp in softmax
        bytes_accessed=(2 * b_pad * T * C + 3 * C * C + 3 * C) * 4,
    )

    out = pl.pallas_call(
        kernel,
        out_shape=jax.ShapeDtypeStruct((b_pad, T, C), jnp.float32),
        grid=(n_blocks,),
        in_specs=[
            pl.BlockSpec((b_blk, T, C), lambda b: (b, 0, 0)),  # x block
            pl.BlockSpec((C, 3 * C), lambda b: (0, 0)),        # fused W_qkv (grid-invariant)
            pl.BlockSpec((1, 3 * C), lambda b: (0, 0)),        # fused bias  (grid-invariant)
        ],
        out_specs=pl.BlockSpec((b_blk, T, C), lambda b: (b, 0, 0)),
        compiler_params=pltpu.CompilerParams(
            dimension_semantics=("parallel",)),  # batch blocks split across TCs on v7x
        cost_estimate=cost,
    )(x, wqkv, bqkv)

    if b_pad != B:
        out = out[:B]
    return out[None]  # (1, B, T, C) — matches the PyTorch module's broadcast quirk


def _reference_forward(x, wq, bq, wk, bk, wv, bv):
    """Pure-JAX mirror of Attention.forward."""
    B, T, C = x.shape
    q = x @ wq.T + bq
    k = x @ wk.T + bk
    v = x @ wv.T + bv
    s = jnp.einsum("btc,bsc->bts", k, q) / (C ** 0.5)        # K @ Q^T
    mask = jnp.tril(jnp.ones((T, T), dtype=jnp.float32))
    s = jnp.where(mask == 0, -jnp.inf, s)
    p = jax.nn.softmax(s, axis=-1)
    out = jnp.einsum("bts,bsc->btc", p, v)
    return out[None]  # leading singleton dim, as produced by masked_fill broadcast


if __name__ == "__main__":
    key = jax.random.PRNGKey(0)
    ks = jax.random.split(key, 7)

    LAYER_SIZE = 128   # layer_size (C): full lane width -> lane-dense tiles
    BLOCK_SIZE = 16    # block_size (causal mask extent)
    B = 32             # batch; blocked into B_blk=16 -> grid=(2,) (>=2 parallel steps)
    T = BLOCK_SIZE     # sequence length (T <= block_size)
    C = LAYER_SIZE

    # PyTorch Linear-style init: U(-1/sqrt(in), 1/sqrt(in)).
    bound = 1.0 / (C ** 0.5)

    def _uniform(k, shape):
        return jax.random.uniform(k, shape, jnp.float32, minval=-bound, maxval=bound)

    wq = _uniform(ks[0], (C, C)); bq = _uniform(ks[1], (C,))
    wk = _uniform(ks[2], (C, C)); bk = _uniform(ks[3], (C,))
    wv = _uniform(ks[4], (C, C)); bv = _uniform(ks[5], (C,))
    x = jax.random.normal(ks[6], (B, T, C), dtype=jnp.float32)

    # Fuse/transpose the (static) weights once, outside the hot path.
    wqkv, bqkv = prepare_fused_qkv(wq, bq, wk, bk, wv, bv)

    out = attention_forward(x, wqkv, bqkv, b_blk=16)
    out = jax.block_until_ready(out)

    ref = _reference_forward(x, wq, bq, wk, bk, wv, bv)
    assert out.shape == (1, B, T, C), out.shape
    max_err = float(jnp.max(jnp.abs(out - ref)))
    assert jnp.allclose(out, ref, atol=1e-4, rtol=1e-4), max_err

    print("KERNEL_OK")
</pallas_src>

<mosaic_0001>
module attributes {stable_mosaic.version = 11 : i64} {
  func.func @_attention_kernel(%arg0: i32, %arg1: memref<16x16x128xf32, #tpu.memory_space<vmem>>, %arg2: memref<128x384xf32, #tpu.memory_space<vmem>>, %arg3: memref<1x384xf32, #tpu.memory_space<vmem>>, %arg4: memref<16x16x128xf32, #tpu.memory_space<vmem>>) attributes {dimension_semantics = [#tpu.dimension_semantics<parallel>], iteration_bounds = array<i64: 2>, scalar_prefetch = 0 : i64, scratch_operands = 0 : i64, tpu.core_type = #tpu.core_type<tc>, window_params = [{transform_indices = @transform_0, window_bounds = array<i64: 16, 16, 128>}, {pipeline_mode = #tpu.pipeline_mode<synchronous>, transform_indices = @transform_1, window_bounds = array<i64: 128, 384>}, {pipeline_mode = #tpu.pipeline_mode<synchronous>, transform_indices = @transform_2, window_bounds = array<i64: 1, 384>}, {transform_indices = @transform_3, window_bounds = array<i64: 16, 16, 128>}]} {
    %c0 = arith.constant 0 : index
    %c0_0 = arith.constant 0 : index
    %c0_1 = arith.constant 0 : index
    %0 = vector.load %arg1[%c0, %c0_0, %c0_1] : memref<16x16x128xf32, #tpu.memory_space<vmem>>, vector<16x16x128xf32>
    %1 = vector.shape_cast %0 : vector<16x16x128xf32> to vector<256x128xf32>
    %c0_2 = arith.constant 0 : index
    %c0_3 = arith.constant 0 : index
    %2 = vector.load %arg2[%c0_2, %c0_3] : memref<128x384xf32, #tpu.memory_space<vmem>>, vector<128x384xf32>
    %cst = arith.constant dense<0.000000e+00> : vector<256x384xf32>
    %3 = tpu.matmul %1, %2, %cst {dimension_numbers = #tpu.dot_dimension_numbers<[1], [0], [0], [1], [0, 0, 1, 1], [], []>} : vector<256x128xf32>, vector<128x384xf32>, vector<256x384xf32> -> vector<256x384xf32>
    %c0_4 = arith.constant 0 : index
    %c0_5 = arith.constant 0 : index
    %4 = vector.load %arg3[%c0_4, %c0_5] : memref<1x384xf32, #tpu.memory_space<vmem>>, vector<1x384xf32>
    %5 = vector.broadcast %4 : vector<1x384xf32> to vector<256x384xf32>
    %6 = arith.addf %3, %5 : vector<256x384xf32>
    %7 = vector.extract_strided_slice %6 {offsets = [0, 0], sizes = [256, 128], strides = [1, 1]} : vector<256x384xf32> to vector<256x128xf32>
    %8 = vector.shape_cast %7 : vector<256x128xf32> to vector<16x16x128xf32>
    %9 = vector.extract_strided_slice %6 {offsets = [0, 128], sizes = [256, 128], strides = [1, 1]} : vector<256x384xf32> to vector<256x128xf32>
    %10 = vector.shape_cast %9 : vector<256x128xf32> to vector<16x16x128xf32>
    %11 = vector.extract_strided_slice %6 {offsets = [0, 256], sizes = [256, 128], strides = [1, 1]} : vector<256x384xf32> to vector<256x128xf32>
    %12 = vector.shape_cast %11 : vector<256x128xf32> to vector<16x16x128xf32>
    "tpu.trace_start"() <{level = 10 : i32, message = "bic,bjc->bij"}> : () -> ()
    %cst_6 = arith.constant dense<0.000000e+00> : vector<16x16x16xf32>
    %13 = tpu.matmul %10, %8, %cst_6 {dimension_numbers = #tpu.dot_dimension_numbers<[2], [2], [1], [1], [0, 0, 0, 1, 1, 1], [0], [0]>} : vector<16x16x128xf32>, vector<16x16x128xf32>, vector<16x16x16xf32> -> vector<16x16x16xf32>
    "tpu.trace_stop"() : () -> ()
    %cst_7 = arith.constant 0.0883883461 : f32
    %14 = vector.broadcast %cst_7 : f32 to vector<16x16x16xf32>
    %15 = arith.mulf %13, %14 : vector<16x16x16xf32>
    %16 = tpu.iota {dimensions = array<i32: 0>} : vector<16x16xi32>
    %17 = tpu.iota {dimensions = array<i32: 1>} : vector<16x16xi32>
    %18 = arith.cmpi sle, %17, %16 : vector<16x16xi32>
    %cst_8 = arith.constant 0xFF800000 : f32
    %19 = vector.shape_cast %18 : vector<16x16xi1> to vector<1x16x16xi1>
    %20 = vector.broadcast %19 : vector<1x16x16xi1> to vector<16x16x16xi1>
    %21 = vector.broadcast %cst_8 : f32 to vector<16x16x16xf32>
    %22 = arith.select %20, %15, %21 : vector<16x16x16xi1>, vector<16x16x16xf32>
    %cst_9 = arith.constant dense<0xFF800000> : vector<16x16xf32>
    %23 = vector.multi_reduction <maximumf>, %22, %cst_9 [2] : vector<16x16x16xf32> to vector<16x16xf32>
    %24 = vector.shape_cast %23 : vector<16x16xf32> to vector<16x16x1xf32>
    %25 = vector.broadcast %24 : vector<16x16x1xf32> to vector<16x16x16xf32>
    %26 = arith.subf %22, %25 : vector<16x16x16xf32>
    %27 = math.exp %26 : vector<16x16x16xf32>
    %cst_10 = arith.constant dense<0.000000e+00> : vector<16x16xf32>
    %28 = vector.multi_reduction <add>, %27, %cst_10 [2] : vector<16x16x16xf32> to vector<16x16xf32>
    %29 = vector.shape_cast %28 : vector<16x16xf32> to vector<16x16x1xf32>
    %30 = vector.broadcast %29 : vector<16x16x1xf32> to vector<16x16x16xf32>
    %31 = arith.divf %27, %30 : vector<16x16x16xf32>
    "tpu.trace_start"() <{level = 10 : i32, message = "bij,bjc->bic"}> : () -> ()
    %cst_11 = arith.constant dense<0.000000e+00> : vector<16x16x128xf32>
    %32 = tpu.matmul %31, %12, %cst_11 {dimension_numbers = #tpu.dot_dimension_numbers<[2], [1], [1], [2], [0, 0, 0, 1, 1, 2], [0], [0]>} : vector<16x16x16xf32>, vector<16x16x128xf32>, vector<16x16x128xf32> -> vector<16x16x128xf32>
    "tpu.trace_stop"() : () -> ()
    %c0_12 = arith.constant 0 : index
    %c0_13 = arith.constant 0 : index
    %c0_14 = arith.constant 0 : index
    %33 = vector.load %arg4[%c0_12, %c0_13, %c0_14] : memref<16x16x128xf32, #tpu.memory_space<vmem>>, vector<16x16x128xf32>
    tpu.vector_store %arg4[%c0_12, %c0_13, %c0_14], %32 {strides = array<i32>} : memref<16x16x128xf32, #tpu.memory_space<vmem>>, vector<16x16x128xf32>,
    return
  }
  func.func @transform_0(%arg0: i32) -> (i32, i32, i32) {
    %c0_i32 = arith.constant 0 : i32
    %c0_i32_0 = arith.constant 0 : i32
    %c0_i32_1 = arith.constant 0 : i32
    return %arg0, %c0_i32, %c0_i32_0 : i32, i32, i32
  }
  func.func @transform_1(%arg0: i32) -> (i32, i32) {
    %c0_i32 = arith.constant 0 : i32
    %c0_i32_0 = arith.constant 0 : i32
    %c0_i32_1 = arith.constant 0 : i32
    return %c0_i32, %c0_i32_0 : i32, i32
  }
  func.func @transform_2(%arg0: i32) -> (i32, i32) {
    %c0_i32 = arith.constant 0 : i32
    %c0_i32_0 = arith.constant 0 : i32
    %c0_i32_1 = arith.constant 0 : i32
    return %c0_i32, %c0_i32_0 : i32, i32
  }
  func.func @transform_3(%arg0: i32) -> (i32, i32, i32) {
    %c0_i32 = arith.constant 0 : i32
    %c0_i32_0 = arith.constant 0 : i32
    %c0_i32_1 = arith.constant 0 : i32
    return %arg0, %c0_i32, %c0_i32_0 : i32, i32, i32
  }
}

</mosaic_0001>

<llo_original>
// kernel: tpu_custom_call.1
$region0: #{tpu_custom_call.1}
  #allocation0 [shape = 'u32[]', space=smem, size = 0x4, offset = 0x4, fixed_abs, tag = 'smem constant byte address 0x4 - core index']
  #allocation1 [shape = 'u32[144,128]{1,0:T(1,128)}', space=vmem, size = 0x12000, scoped, tag = 'internal scratch']
  %s0 = inlined_call_operand.hbm [shape: f32[32,16,128], index: 0, kind: input, shape index: {}]
  %s1 = inlined_call_operand.hbm [shape: f32[128,384], index: 1, kind: input, shape index: {}]
  %s2 = inlined_call_operand.vmem [shape: f32[1,384], index: 2, kind: input, shape index: {}]
  %s3 = inlined_call_operand.hbm [shape: f32[32,16,128], index: 3, kind: output, shape index: {}]
  %s4 = sld [smem:[#allocation0]]
  $region53: #{tpu_custom_call.1} parent=0
    _
  %s6 = ssub.s32 1, %s4
  %s7 = scalar_select 0, %s6, %s4
  $region1: #{tpu_custom_call.1} parent=0
    #allocation2 [shape = 'u8[262144]{0}', space=vmem, size = 0x40000, scoped, tag = 'input window, operand 0']
    #allocation3 [shape = 's32[2]{0}', space=sflag, size = 0x8, scoped, tag = 'scoped memory for tpu_custom_call.1']
    #allocation4 [shape = 's32[2]{0}', space=sflag, size = 0x8, scoped, tag = 'scoped memory for tpu_custom_call.1']
    #allocation5 [shape = 'u8[196608]{0}', space=vmem, size = 0x30000, scoped, tag = 'input window, operand 1, single buffered']
    #allocation6 [shape = 's32[1]{0}', space=sflag, size = 0x4, scoped, tag = 'scoped memory for tpu_custom_call.1']
    #allocation7 [shape = 'u8[262144]{0}', space=vmem, size = 0x40000, scoped, tag = 'output window, operand 0']
    %8 = vsyncpa [#allocation3], 0
    %s9 = scalar_lea.sflag [#allocation3], 1
    %10 = vsyncpa %s9, 0
    %11 = vsyncpa [#allocation6], 0
    %12 = vsyncpa [#allocation4], 0
    %s13 = scalar_lea.sflag [#allocation4], 1
    %14 = vsyncpa %s13, 0
    loop: start=0, step=1, limit=4
    $region2: #{tpu_custom_call.1} parent=1 // loop_pre_header
      _
    $region3: #{tpu_custom_call.1} parent=1 // loop_header
      %s16 = sphi 0, %s20
      %p17 = scmp.ge.s32.totalorder %s16, 4
      %s26 = sphi 0, %s28
      %s29 = sphi 0, %s26
      %s30 = sphi 0, %s29
      %s46 = sphi 0, %s30
      %s50 = sphi 0, %s50
      %s52 = sphi 0, %s50
      %s53 = sphi 0, %s52
      %s67 = sphi 0, %s53
      %s71 = sphi 0, %s71
      %s73 = sphi 0, %s71
      %s74 = sphi 0, %s73
      %s88 = sphi 0, %s74
      %s94 = sphi 0, %s96
      %s97 = sphi 0, %s94
      %s98 = sphi 0, %s97
      %s114 = sphi 0, %s98
    $region4: #{tpu_custom_call.1} parent=1 // loop_header_branch
      %19 = sbr.rel (%p17) target = $region8
    $region5: #{tpu_custom_call.1} parent=1 // loop_body
      %s21 = ssub.s32 %s16, 1
      %s22 = ssub.s32 %s16, 2
      %s23 = sadd.s32 %s16, 1
      %s24 = ssub.s32 %s16, %s23
      %p25 = scmp.eq.s32.totalorder %s24, 0
      %s27 = sadd.s32 %s26, 1
      %s28 = scalar_select %p25, %s26, %s27
      %p31 = pneg %p25
      %p32 = scmp.eq.s32.totalorder %s16, 1
      %p33 = por %p31, %p32
      %p34 = scmp.ne.s32.totalorder %s26, %s29
      %p35 = scmp.eq.s32.totalorder %s16, 0
      %p36 = por %p34, %p35
      %p37 = scmp.ne.s32.totalorder %s26, %s29
      %p38 = scmp.eq.s32.totalorder %s21, 1
      %p39 = por %p37, %p38
      %p40 = scmp.ne.s32.totalorder %s29, %s30
      %p41 = scmp.eq.s32.totalorder %s21, 0
      %p42 = por %p40, %p41
      %p43 = scmp.ne.s32.totalorder %s29, %s30
      %p44 = scmp.eq.s32.totalorder %s22, 1
      %p45 = por %p43, %p44
      %p47 = scmp.ne.s32.totalorder %s30, %s46
      %p48 = scmp.eq.s32.totalorder %s22, 0
      %p49 = por %p47, %p48
      %s51 = sadd.s32 %s50, 1
      %p54 = scmp.eq.s32.totalorder %s16, 1
      %p55 = scmp.ne.s32.totalorder %s50, %s52
      %p56 = scmp.eq.s32.totalorder %s16, 0
      %p57 = por %p55, %p56
      %p58 = scmp.ne.s32.totalorder %s50, %s52
      %p59 = scmp.eq.s32.totalorder %s21, 1
      %p60 = por %p58, %p59
      %p61 = scmp.ne.s32.totalorder %s52, %s53
      %p62 = scmp.eq.s32.totalorder %s21, 0
      %p63 = por %p61, %p62
      %p64 = scmp.ne.s32.totalorder %s52, %s53
      %p65 = scmp.eq.s32.totalorder %s22, 1
      %p66 = por %p64, %p65
      %p68 = scmp.ne.s32.totalorder %s53, %s67
      %p69 = scmp.eq.s32.totalorder %s22, 0
      %p70 = por %p68, %p69
      %s72 = sadd.s32 %s71, 1
      %p75 = scmp.eq.s32.totalorder %s16, 1
      %p76 = scmp.ne.s32.totalorder %s71, %s73
      %p77 = scmp.eq.s32.totalorder %s16, 0
      %p78 = por %p76, %p77
      %p79 = scmp.ne.s32.totalorder %s71, %s73
      %p80 = scmp.eq.s32.totalorder %s21, 1
      %p81 = por %p79, %p80
      %p82 = scmp.ne.s32.totalorder %s73, %s74
      %p83 = scmp.eq.s32.totalorder %s21, 0
      %p84 = por %p82, %p83
      %p85 = scmp.ne.s32.totalorder %s73, %s74
      %p86 = scmp.eq.s32.totalorder %s22, 1
      %p87 = por %p85, %p86
      %p89 = scmp.ne.s32.totalorder %s74, %s88
      %p90 = scmp.eq.s32.totalorder %s22, 0
      %p91 = por %p89, %p90
      %s92 = ssub.s32 %s16, %s23
      %p93 = scmp.eq.s32.totalorder %s92, 0
      %s95 = sadd.s32 %s94, 1
      %s96 = scalar_select %p93, %s94, %s95
      %p99 = pneg %p93
      %p100 = scmp.eq.s32.totalorder %s16, 1
      %p101 = por %p99, %p100
      %p102 = scmp.ne.s32.totalorder %s94, %s97
      %p103 = scmp.eq.s32.totalorder %s16, 0
      %p104 = por %p102, %p103
      %p105 = scmp.ne.s32.totalorder %s94, %s97
      %p106 = scmp.eq.s32.totalorder %s21, 1
      %p107 = por %p105, %p106
      %p108 = scmp.ne.s32.totalorder %s97, %s98
      %p109 = scmp.eq.s32.totalorder %s21, 0
      %p110 = por %p108, %p109
      %p111 = scmp.ne.s32.totalorder %s97, %s98
      %p112 = scmp.eq.s32.totalorder %s22, 1
      %p113 = por %p111, %p112
      %p115 = scmp.ne.s32.totalorder %s98, %s114
      %p116 = scmp.eq.s32.totalorder %s22, 0
      %p117 = por %p115, %p116
      %p118 = scmp.le.s32.totalorder 1, %s16
      %p119 = scmp.lt.s32.totalorder %s16, 3
      %p120 = pnand %p118, %p119
      %p121 = pneg %p120
      // Predicated region
      $region9: #{tpu_custom_call.1} parent=5 // pred_check
        _
      $region10: #{tpu_custom_call.1} parent=5 // pred_check_branch
        %123 = sbr.rel (%p120) target = $region12
      $region11: #{tpu_custom_call.1} parent=5 // pred_region
        %s124 = ssub.s32 %s16, 1
        // Predicated region
        $region13: #{tpu_custom_call.1} parent=11 // pred_check
          %p125 = pneg %p63
        $region14: #{tpu_custom_call.1} parent=11 // pred_check_branch
          %127 = sbr.rel (%p125) target = $region16
        $region15: #{tpu_custom_call.1} parent=11 // pred_region
          %s129 = ssub.s32 6144, 6144
          %130 = vsyncadd [#allocation6], %s129
          %s131 = sshll.u32 [#allocation5], 4
          %s132 = int_to_ptr.vmem [resolvable:$true] %s131
          %137 = dma.hbm_to_vmem [thread:$0]  %s1, 6144, %s132, [#allocation6], 384, 384, 24
        $region16: #{tpu_custom_call.1} parent=11 // pred_fallthru
          _
        // Predicated region
        $region17: #{tpu_custom_call.1} parent=11 // pred_check
          %p138 = pneg %p84
        $region18: #{tpu_custom_call.1} parent=11 // pred_check_branch
          %140 = sbr.rel (%p138) target = $region20
        $region19: #{tpu_custom_call.1} parent=11 // pred_region
          _
        $region20: #{tpu_custom_call.1} parent=11 // pred_fallthru
          _
      $region12: #{tpu_custom_call.1} parent=5 // pred_fallthru
        _
      %p141 = scmp.lt.s32.totalorder %s16, 2
      // Predicated region
      $region21: #{tpu_custom_call.1} parent=5 // pred_check
        %p142 = pneg %p141
      $region22: #{tpu_custom_call.1} parent=5 // pred_check_branch
        %144 = sbr.rel (%p142) target = $region24
      $region23: #{tpu_custom_call.1} parent=5 // pred_region
        // Predicated region
        $region25: #{tpu_custom_call.1} parent=23 // pred_check
          %p145 = pneg %p36
        $region26: #{tpu_custom_call.1} parent=23 // pred_check_branch
          %147 = sbr.rel (%p145) target = $region28
        $region27: #{tpu_custom_call.1} parent=23 // pred_region
          %s148 = sand.u32 %s26, 1
          %s149 = scalar_lea.sflag [#allocation3], %s148
          %s150 = sand.u32 %s26, 1
          %s151 = smul.addr %s150, 256
          %s152 = scalar_lea.vmem [#allocation2], %s151
          %s153 = smul.u32 16, %s16
          %s155 = ssub.s32 4096, 4096
          %156 = vsyncadd %s149, %s155
          %s157 = smul.addr %s153, 2
          %s158 = smul.addr %s157, 128
          %s159 = scalar_lea.hbm %s0, %s158
          %s160 = sshll.u32 %s152, 4
          %s161 = int_to_ptr.vmem [resolvable:$true] %s160
          %166 = dma.hbm_to_vmem [thread:$0]  %s159, 4096, %s161, %s149, 128, 128, 8
        $region28: #{tpu_custom_call.1} parent=23 // pred_fallthru
          _
      $region24: #{tpu_custom_call.1} parent=5 // pred_fallthru
        _
      %p167 = scmp.le.s32.totalorder 1, %s16
      %p168 = scmp.lt.s32.totalorder %s16, 3
      %p169 = pnand %p167, %p168
      %p170 = pneg %p169
      // Predicated region
      $region29: #{tpu_custom_call.1} parent=5 // pred_check
        _
      $region30: #{tpu_custom_call.1} parent=5 // pred_check_branch
        %172 = sbr.rel (%p169) target = $region32
      $region31: #{tpu_custom_call.1} parent=5 // pred_region
        %s173 = ssub.s32 %s16, 1
        %s174 = sand.u32 %s29, 1
        %s175 = scalar_lea.sflag [#allocation3], %s174
        %s176 = sand.u32 %s29, 1
        %s177 = smul.addr %s176, 256
        %s178 = scalar_lea.vmem [#allocation2], %s177
        // Predicated region
        $region33: #{tpu_custom_call.1} parent=31 // pred_check
          %p179 = pneg %p42
        $region34: #{tpu_custom_call.1} parent=31 // pred_check_branch
          %181 = sbr.rel (%p179) target = $region36
        $region35: #{tpu_custom_call.1} parent=31 // pred_region
          %182 = dma.done %s175, 4096
        $region36: #{tpu_custom_call.1} parent=31 // pred_fallthru
          _
        // Predicated region
        $region37: #{tpu_custom_call.1} parent=31 // pred_check
          %p183 = pneg %p63
        $region38: #{tpu_custom_call.1} parent=31 // pred_check_branch
          %185 = sbr.rel (%p183) target = $region40
        $region39: #{tpu_custom_call.1} parent=31 // pred_region
          %186 = dma.done [#allocation6], 6144
        $region40: #{tpu_custom_call.1} parent=31 // pred_fallthru
          _
        %s187 = sand.u32 %s29, 1
        %s188 = scalar_lea.sflag [#allocation3], %s187
        %s189 = sand.u32 %s29, 1
        %s190 = smul.addr %s189, 256
        %s191 = scalar_lea.vmem [#allocation2], %s190
        %p192 = pneg %p42
        %p193 = pneg %p39
        %p194 = pneg %p63
        %p195 = pneg %p60
        %p196 = pneg %p84
        %p197 = pneg %p81
        %p198 = pneg %p110
        %p199 = pneg %p107
        %s200 = sand.u32 %s97, 1
        %s201 = scalar_lea.sflag [#allocation4], %s200
        %s202 = sand.u32 %s97, 1
        %s203 = smul.addr %s202, 256
        %s204 = scalar_lea.vmem [#allocation7], %s203
        %s205 = smul.u32 16, %s21
        %s206 = smul.u32 16, %s21
        %v207 = vld [vmem:[%s178] sm:$0xff]
        %v208 = vld [vmem:[%s178 + $0x8] sm:$0xff]
        %v209 = vld [vmem:[%s178 + $0x10] sm:$0xff]
        %v210 = vld [vmem:[%s178 + $0x18] sm:$0xff]
        %v211 = vld [vmem:[%s178 + $0x20] sm:$0xff]
        %v212 = vld [vmem:[%s178 + $0x28] sm:$0xff]
        %v213 = vld [vmem:[%s178 + $0x30] sm:$0xff]
        %v214 = vld [vmem:[%s178 + $0x38] sm:$0xff]
        %v215 = vld [vmem:[%s178 + $0x40] sm:$0xff]
        %v216 = vld [vmem:[%s178 + $0x48] sm:$0xff]
        %v217 = vld [vmem:[%s178 + $0x50] sm:$0xff]
        %v218 = vld [vmem:[%s178 + $0x58] sm:$0xff]
        %v219 = vld [vmem:[%s178 + $0x60] sm:$0xff]
        %v220 = vld [vmem:[%s178 + $0x68] sm:$0xff]
        %v221 = vld [vmem:[%s178 + $0x70] sm:$0xff]
        %v222 = vld [vmem:[%s178 + $0x78] sm:$0xff]
        %v223 = vld [vmem:[%s178 + $0x80] sm:$0xff]
        %v224 = vld [vmem:[%s178 + $0x88] sm:$0xff]
        %v225 = vld [vmem:[%s178 + $0x90] sm:$0xff]
        %v226 = vld [vmem:[%s178 + $0x98] sm:$0xff]
        %v227 = vld [vmem:[%s178 + $0xa0] sm:$0xff]
        %v228 = vld [vmem:[%s178 + $0xa8] sm:$0xff]
        %v229 = vld [vmem:[%s178 + $0xb0] sm:$0xff]
        %v230 = vld [vmem:[%s178 + $0xb8] sm:$0xff]
        %v231 = vld [vmem:[%s178 + $0xc0] sm:$0xff]
        %v232 = vld [vmem:[%s178 + $0xc8] sm:$0xff]
        %v233 = vld [vmem:[%s178 + $0xd0] sm:$0xff]
        %v234 = vld [vmem:[%s178 + $0xd8] sm:$0xff]
        %v235 = vld [vmem:[%s178 + $0xe0] sm:$0xff]
        %v236 = vld [vmem:[%s178 + $0xe8] sm:$0xff]
        %v237 = vld [vmem:[%s178 + $0xf0] sm:$0xff]
        %v238 = vld [vmem:[%s178 + $0xf8] sm:$0xff]
        %v239 = vld [vmem:[#allocation5] sm:$0xff]
        %v240 = vld [vmem:[#allocation5 + $0x8] sm:$0xff]
        %v241 = vld [vmem:[#allocation5 + $0x10] sm:$0xff]
        %v242 = vld [vmem:[#allocation5 + $0x18] sm:$0xff]
        %v243 = vld [vmem:[#allocation5 + $0x20] sm:$0xff]
        %v244 = vld [vmem:[#allocation5 + $0x28] sm:$0xff]
        %v245 = vld [vmem:[#allocation5 + $0x30] sm:$0xff]
        %v246 = vld [vmem:[#allocation5 + $0x38] sm:$0xff]
        %v247 = vld [vmem:[#allocation5 + $0x40] sm:$0xff]
        %v248 = vld [vmem:[#allocation5 + $0x48] sm:$0xff]
        %v249 = vld [vmem:[#allocation5 + $0x50] sm:$0xff]
        %v250 = vld [vmem:[#allocation5 + $0x58] sm:$0xff]
        %v251 = vld [vmem:[#allocation5 + $0x60] sm:$0xff]
        %v252 = vld [vmem:[#allocation5 + $0x68] sm:$0xff]
        %v253 = vld [vmem:[#allocation5 + $0x70] sm:$0xff]
        %v254 = vld [vmem:[#allocation5 + $0x78] sm:$0xff]
        %v255 = vld [vmem:[#allocation5 + $0x80] sm:$0xff]
        %v256 = vld [vmem:[#allocation5 + $0x88] sm:$0xff]
        %v257 = vld [vmem:[#allocation5 + $0x90] sm:$0xff]
        %v258 = vld [vmem:[#allocation5 + $0x98] sm:$0xff]
        %v259 = vld [vmem:[#allocation5 + $0xa0] sm:$0xff]
        %v260 = vld [vmem:[#allocation5 + $0xa8] sm:$0xff]
        %v261 = vld [vmem:[#allocation5 + $0xb0] sm:$0xff]
        %v262 = vld [vmem:[#allocation5 + $0xb8] sm:$0xff]
        %v263 = vld [vmem:[#allocation5 + $0xc0] sm:$0xff]
        %v264 = vld [vmem:[#allocation5 + $0xc8] sm:$0xff]
        %v265 = vld [vmem:[#allocation5 + $0xd0] sm:$0xff]
        %v266 = vld [vmem:[#allocation5 + $0xd8] sm:$0xff]
        %v267 = vld [vmem:[#allocation5 + $0xe0] sm:$0xff]
        %v268 = vld [vmem:[#allocation5 + $0xe8] sm:$0xff]
        %v269 = vld [vmem:[#allocation5 + $0xf0] sm:$0xff]
        %v270 = vld [vmem:[#allocation5 + $0xf8] sm:$0xff]
        %v271 = vld [vmem:[#allocation5 + $0x100] sm:$0xff]
        %v272 = vld [vmem:[#allocation5 + $0x108] sm:$0xff]
        %v273 = vld [vmem:[#allocation5 + $0x110] sm:$0xff]
        %v274 = vld [vmem:[#allocation5 + $0x118] sm:$0xff]
        %v275 = vld [vmem:[#allocation5 + $0x120] sm:$0xff]
        %v276 = vld [vmem:[#allocation5 + $0x128] sm:$0xff]
        %v277 = vld [vmem:[#allocation5 + $0x130] sm:$0xff]
        %v278 = vld [vmem:[#allocation5 + $0x138] sm:$0xff]
        %v279 = vld [vmem:[#allocation5 + $0x140] sm:$0xff]
        %v280 = vld [vmem:[#allocation5 + $0x148] sm:$0xff]
        %v281 = vld [vmem:[#allocation5 + $0x150] sm:$0xff]
        %v282 = vld [vmem:[#allocation5 + $0x158] sm:$0xff]
        %v283 = vld [vmem:[#allocation5 + $0x160] sm:$0xff]
        %v284 = vld [vmem:[#allocation5 + $0x168] sm:$0xff]
        %v285 = vld [vmem:[#allocation5 + $0x170] sm:$0xff]
        %v286 = vld [vmem:[#allocation5 + $0x178] sm:$0xff]
        %v287 = vld [vmem:[%s2] sm:$0x7]
        %v289 = vlaneseq
        %v290 = vshrl.u32 %v289, 7
        %v291 = vsub.s32 0, %v290
        %v292 = vrot.slane %v287, %v291
        %v293 = vlaneseq
        %v294 = vshrl.u32 %v293, 7
        %v295 = vsub.s32 1, %v294
        %v296 = vrot.slane %v287, %v295
        %v297 = vlaneseq
        %v298 = vshrl.u32 %v297, 7
        %v299 = vsub.s32 2, %v298
        %v300 = vrot.slane %v287, %v299
        %304 = vmatprep.subr.mxu0 %v240
        %305 = vmatpush1.msra.mxu0 %v239
        %306 = vmatprep.subr.mxu0 %v243
        %307 = vmatpush1.msra.mxu0 %v242
        %308 = vmatprep.subr.mxu0 %v246
        %309 = vmatpush1.msra.mxu0 %v245
        %310 = vmatprep.subr.mxu0 %v249
        %311 = vmatpush1.msra.mxu0 %v248
        %312 = vmatprep.subr.mxu0 %v252
        %313 = vmatpush1.msra.mxu0 %v251
        %314 = vmatprep.subr.mxu0 %v255
        %315 = vmatpush1.msra.mxu0 %v254
        %316 = vmatprep.subr.mxu0 %v258
        %317 = vmatpush1.msra.mxu0 %v257
        %318 = vmatprep.subr.mxu0 %v261
        %319 = vmatpush1.msra.mxu0 %v260
        %320 = vmatprep.subr.mxu0 %v264
        %321 = vmatpush1.msra.mxu0 %v263
        %322 = vmatprep.subr.mxu0 %v267
        %323 = vmatpush1.msra.mxu0 %v266
        %324 = vmatprep.subr.mxu0 %v270
        %325 = vmatpush1.msra.mxu0 %v269
        %326 = vmatprep.subr.mxu0 %v273
        %327 = vmatpush1.msra.mxu0 %v272
        %328 = vmatprep.subr.mxu0 %v276
        %329 = vmatpush1.msra.mxu0 %v275
        %330 = vmatprep.subr.mxu0 %v279
        %331 = vmatpush1.msra.mxu0 %v278
        %332 = vmatprep.subr.mxu0 %v282
        %333 = vmatpush1.msra.mxu0 %v281
        %334 = vmatprep.subr.mxu0 %v285
        %335 = vmatpush1.msra.mxu0 %v284
        %336 = vmatprep.subr.mxu0 0.0
        %337 = vmatpush1.msra.mxu0 0.0
        %338 = vmatprep.subr.mxu0 0.0
        %339 = vmatpush1.msra.mxu0 0.0
        %340 = vmatprep.subr.mxu0 0.0
        %341 = vmatpush1.msra.mxu0 0.0
        %342 = vmatprep.subr.mxu0 0.0
        %343 = vmatpush1.msra.mxu0 0.0
        %344 = vmatprep.subr.mxu0 0.0
        %345 = vmatpush1.msra.mxu0 0.0
        %346 = vmatprep.subr.mxu0 0.0
        %347 = vmatpush1.msra.mxu0 0.0
        %348 = vmatprep.subr.mxu0 0.0
        %349 = vmatpush1.msra.mxu0 0.0
        %350 = vmatprep.subr.mxu0 0.0
        %351 = vmatpush1.msra.mxu0 0.0
        %352 = vmatprep.subr.mxu0 0.0
        %353 = vmatpush1.msra.mxu0 0.0
        %354 = vmatprep.subr.mxu0 0.0
        %355 = vmatpush1.msra.mxu0 0.0
        %356 = vmatprep.subr.mxu0 0.0
        %357 = vmatpush1.msra.mxu0 0.0
        %358 = vmatprep.subr.mxu0 0.0
        %359 = vmatpush1.msra.mxu0 0.0
        %360 = vmatprep.subr.mxu0 0.0
        %361 = vmatpush1.msra.mxu0 0.0
        %362 = vmatprep.subr.mxu0 0.0
        %363 = vmatpush1.msra.mxu0 0.0
        %364 = vmatprep.subr.mxu0 0.0
        %365 = vmatpush1.msra.mxu0 0.0
        %366 = vmatprep.subr.mxu0 0.0
        %367 = vmatpush1.msra.mxu0 0.0
        %368 = vmatprep.mubr.f32.mxu0 0.0
        %369 = vmatmul.mubr.f32.gmra.mrb[0].mxu0 %v207
        %v370 = vpop.f32.mrb[0].mxu0
        %v371 = vadd.f32 %v292, %v370
        %v372 = vpop.f32.mrb[0].mxu0
        %v373 = vadd.f32 %v296, %v372
        %374 = vmatprep.mubr.f32.mxu0 0.0
        %375 = vmatmul.mubr.f32.gmra.mrb[0].mxu0 %v208
        %v376 = vpop.f32.mrb[0].mxu0
        %v377 = vadd.f32 %v292, %v376
        %v378 = vpop.f32.mrb[0].mxu0
        %v379 = vadd.f32 %v296, %v378
        %380 = vmatprep.mubr.f32.mxu0 0.0
        %381 = vmatmul.mubr.f32.gmra.mrb[0].mxu0 %v209
        %v382 = vpop.f32.mrb[0].mxu0
        %v383 = vadd.f32 %v292, %v382
        %v384 = vpop.f32.mrb[0].mxu0
        %v385 = vadd.f32 %v296, %v384
        %386 = vmatprep.mubr.f32.mxu0 0.0
        %387 = vmatmul.mubr.f32.gmra.mrb[0].mxu0 %v210
        %v388 = vpop.f32.mrb[0].mxu0
        %v389 = vadd.f32 %v292, %v388
        %v390 = vpop.f32.mrb[0].mxu0
        %v391 = vadd.f32 %v296, %v390
        %392 = vmatprep.mubr.f32.mxu0 0.0
        %393 = vmatmul.mubr.f32.gmra.mrb[0].mxu0 %v211
        %v394 = vpop.f32.mrb[0].mxu0
        %v395 = vadd.f32 %v292, %v394
        %v396 = vpop.f32.mrb[0].mxu0
        %v397 = vadd.f32 %v296, %v396
        %398 = vmatprep.mubr.f32.mxu0 0.0
        %399 = vmatmul.mubr.f32.gmra.mrb[0].mxu0 %v212
        %v400 = vpop.f32.mrb[0].mxu0
        %v401 = vadd.f32 %v292, %v400
        %v402 = vpop.f32.mrb[0].mxu0
        %v403 = vadd.f32 %v296, %v402
        %404 = vmatprep.mubr.f32.mxu0 0.0
        %405 = vmatmul.mubr.f32.gmra.mrb[0].mxu0 %v213
        %v406 = vpop.f32.mrb[0].mxu0
        %v407 = vadd.f32 %v292, %v406
        %v408 = vpop.f32.mrb[0].mxu0
        %v409 = vadd.f32 %v296, %v408
        %410 = vmatprep.mubr.f32.mxu0 0.0
        %411 = vmatmul.mubr.f32.gmra.mrb[0].mxu0 %v214
        %v412 = vpop.f32.mrb[0].mxu0
        %v413 = vadd.f32 %v292, %v412
        %v414 = vpop.f32.mrb[0].mxu0
        %v415 = vadd.f32 %v296, %v414
        %416 = vmatprep.mubr.f32.mxu0 0.0
        %417 = vmatmul.mubr.f32.gmra.mrb[0].mxu0 %v215
        %v418 = vpop.f32.mrb[0].mxu0
        %v419 = vadd.f32 %v292, %v418
        %v420 = vpop.f32.mrb[0].mxu0
        %v421 = vadd.f32 %v296, %v420
        %422 = vmatprep.mubr.f32.mxu0 0.0
        %423 = vmatmul.mubr.f32.gmra.mrb[0].mxu0 %v216
        %v424 = vpop.f32.mrb[0].mxu0
        %v425 = vadd.f32 %v292, %v424
        %v426 = vpop.f32.mrb[0].mxu0
        %v427 = vadd.f32 %v296, %v426
        %428 = vmatprep.mubr.f32.mxu0 0.0
        %429 = vmatmul.mubr.f32.gmra.mrb[0].mxu0 %v217
        %v430 = vpop.f32.mrb[0].mxu0
        %v431 = vadd.f32 %v292, %v430
        %v432 = vpop.f32.mrb[0].mxu0
        %v433 = vadd.f32 %v296, %v432
        %434 = vmatprep.mubr.f32.mxu0 0.0
        %435 = vmatmul.mubr.f32.gmra.mrb[0].mxu0 %v218
        %v436 = vpop.f32.mrb[0].mxu0
        %v437 = vadd.f32 %v292, %v436
        %v438 = vpop.f32.mrb[0].mxu0
        %v439 = vadd.f32 %v296, %v438
        %440 = vmatprep.mubr.f32.mxu0 0.0
        %441 = vmatmul.mubr.f32.gmra.mrb[0].mxu0 %v219
        %v442 = vpop.f32.mrb[0].mxu0
        %v443 = vadd.f32 %v292, %v442
        %v444 = vpop.f32.mrb[0].mxu0
        %v445 = vadd.f32 %v296, %v444
        %446 = vmatprep.mubr.f32.mxu0 0.0
        %447 = vmatmul.mubr.f32.gmra.mrb[0].mxu0 %v220
        %v448 = vpop.f32.mrb[0].mxu0
        %v449 = vadd.f32 %v292, %v448
        %v450 = vpop.f32.mrb[0].mxu0
        %v451 = vadd.f32 %v296, %v450
        %452 = vmatprep.mubr.f32.mxu0 0.0
        %453 = vmatmul.mubr.f32.gmra.mrb[0].mxu0 %v221
        %v454 = vpop.f32.mrb[0].mxu0
        %v455 = vadd.f32 %v292, %v454
        %v456 = vpop.f32.mrb[0].mxu0
        %v457 = vadd.f32 %v296, %v456
        %458 = vmatprep.mubr.f32.mxu0 0.0
        %459 = vmatmul.mubr.f32.gmra.mrb[0].mxu0 %v222
        %v460 = vpop.f32.mrb[0].mxu0
        %v461 = vadd.f32 %v292, %v460
        %v462 = vpop.f32.mrb[0].mxu0
        %v463 = vadd.f32 %v296, %v462
        %464 = vmatprep.mubr.f32.mxu0 0.0
        %465 = vmatmul.mubr.f32.gmra.mrb[0].mxu0 %v223
        %v466 = vpop.f32.mrb[0].mxu0
        %v467 = vadd.f32 %v292, %v466
        %v468 = vpop.f32.mrb[0].mxu0
        %v469 = vadd.f32 %v296, %v468
        %470 = vmatprep.mubr.f32.mxu0 0.0
        %471 = vmatmul.mubr.f32.gmra.mrb[0].mxu0 %v224
        %v472 = vpop.f32.mrb[0].mxu0
        %v473 = vadd.f32 %v292, %v472
        %v474 = vpop.f32.mrb[0].mxu0
        %v475 = vadd.f32 %v296, %v474
        %476 = vmatprep.mubr.f32.mxu0 0.0
        %477 = vmatmul.mubr.f32.gmra.mrb[0].mxu0 %v225
        %v478 = vpop.f32.mrb[0].mxu0
        %v479 = vadd.f32 %v292, %v478
        %v480 = vpop.f32.mrb[0].mxu0
        %v481 = vadd.f32 %v296, %v480
        %482 = vmatprep.mubr.f32.mxu0 0.0
        %483 = vmatmul.mubr.f32.gmra.mrb[0].mxu0 %v226
        %v484 = vpop.f32.mrb[0].mxu0
        %v485 = vadd.f32 %v292, %v484
        %v486 = vpop.f32.mrb[0].mxu0
        %v487 = vadd.f32 %v296, %v486
        %488 = vmatprep.mubr.f32.mxu0 0.0
        %489 = vmatmul.mubr.f32.gmra.mrb[0].mxu0 %v227
        %v490 = vpop.f32.mrb[0].mxu0
        %v491 = vadd.f32 %v292, %v490
        %v492 = vpop.f32.mrb[0].mxu0
        %v493 = vadd.f32 %v296, %v492
        %494 = vmatprep.mubr.f32.mxu0 0.0
        %495 = vmatmul.mubr.f32.gmra.mrb[0].mxu0 %v228
        %v496 = vpop.f32.mrb[0].mxu0
        %v497 = vadd.f32 %v292, %v496
        %v498 = vpop.f32.mrb[0].mxu0
        %v499 = vadd.f32 %v296, %v498
        %500 = vmatprep.mubr.f32.mxu0 0.0
        %501 = vmatmul.mubr.f32.gmra.mrb[0].mxu0 %v229
        %v502 = vpop.f32.mrb[0].mxu0
        %v503 = vadd.f32 %v292, %v502
        %v504 = vpop.f32.mrb[0].mxu0
        %v505 = vadd.f32 %v296, %v504
        %506 = vmatprep.mubr.f32.mxu0 0.0
        %507 = vmatmul.mubr.f32.gmra.mrb[0].mxu0 %v230
        %v508 = vpop.f32.mrb[0].mxu0
        %v509 = vadd.f32 %v292, %v508
        %v510 = vpop.f32.mrb[0].mxu0
        %v511 = vadd.f32 %v296, %v510
        %512 = vmatprep.mubr.f32.mxu0 0.0
        %513 = vmatmul.mubr.f32.gmra.mrb[0].mxu0 %v231
        %v514 = vpop.f32.mrb[0].mxu0
        %v515 = vadd.f32 %v292, %v514
        %v516 = vpop.f32.mrb[0].mxu0
        %v517 = vadd.f32 %v296, %v516
        %518 = vmatprep.mubr.f32.mxu0 0.0
        %519 = vmatmul.mubr.f32.gmra.mrb[0].mxu0 %v232
        %v520 = vpop.f32.mrb[0].mxu0
        %v521 = vadd.f32 %v292, %v520
        %v522 = vpop.f32.mrb[0].mxu0
        %v523 = vadd.f32 %v296, %v522
        %524 = vmatprep.mubr.f32.mxu0 0.0
        %525 = vmatmul.mubr.f32.gmra.mrb[0].mxu0 %v233
        %v526 = vpop.f32.mrb[0].mxu0
        %v527 = vadd.f32 %v292, %v526
        %v528 = vpop.f32.mrb[0].mxu0
        %v529 = vadd.f32 %v296, %v528
        %530 = vmatprep.mubr.f32.mxu0 0.0
        %531 = vmatmul.mubr.f32.gmra.mrb[0].mxu0 %v234
        %v532 = vpop.f32.mrb[0].mxu0
        %v533 = vadd.f32 %v292, %v532
        %v534 = vpop.f32.mrb[0].mxu0
        %v535 = vadd.f32 %v296, %v534
        %536 = vmatprep.mubr.f32.mxu0 0.0
        %537 = vmatmul.mubr.f32.gmra.mrb[0].mxu0 %v235
        %v538 = vpop.f32.mrb[0].mxu0
        %v539 = vadd.f32 %v292, %v538
        %v540 = vpop.f32.mrb[0].mxu0
        %v541 = vadd.f32 %v296, %v540
        %542 = vmatprep.mubr.f32.mxu0 0.0
        %543 = vmatmul.mubr.f32.gmra.mrb[0].mxu0 %v236
        %v544 = vpop.f32.mrb[0].mxu0
        %v545 = vadd.f32 %v292, %v544
        %v546 = vpop.f32.mrb[0].mxu0
        %v547 = vadd.f32 %v296, %v546
        %548 = vmatprep.mubr.f32.mxu0 0.0
        %549 = vmatmul.mubr.f32.gmra.mrb[0].mxu0 %v237
        %v550 = vpop.f32.mrb[0].mxu0
        %v551 = vadd.f32 %v292, %v550
        %v552 = vpop.f32.mrb[0].mxu0
        %v553 = vadd.f32 %v296, %v552
        %554 = vmatprep.mubr.f32.mxu0 0.0
        %555 = vmatmul.mubr.f32.gmra.mrb[0].mxu0 %v238
        %v556 = vpop.f32.mrb[0].mxu0
        %v557 = vadd.f32 %v292, %v556
        %v558 = vpop.f32.mrb[0].mxu0
        %v559 = vadd.f32 %v296, %v558
        %560 = vdwg.mxu0
        %561 = vmatprep.subr.mxu0 0.0
        %562 = vmatpush1.msra.mxu0 %v241
        %563 = vmatprep.subr.mxu0 0.0
        %564 = vmatpush1.msra.mxu0 %v244
        %565 = vmatprep.subr.mxu0 0.0
        %566 = vmatpush1.msra.mxu0 %v247
        %567 = vmatprep.subr.mxu0 0.0
        %568 = vmatpush1.msra.mxu0 %v250
        %569 = vmatprep.subr.mxu0 0.0
        %570 = vmatpush1.msra.mxu0 %v253
        %571 = vmatprep.subr.mxu0 0.0
        %572 = vmatpush1.msra.mxu0 %v256
        %573 = vmatprep.subr.mxu0 0.0
        %574 = vmatpush1.msra.mxu0 %v259
        %575 = vmatprep.subr.mxu0 0.0
        %576 = vmatpush1.msra.mxu0 %v262
        %577 = vmatprep.subr.mxu0 0.0
        %578 = vmatpush1.msra.mxu0 %v265
        %579 = vmatprep.subr.mxu0 0.0
        %580 = vmatpush1.msra.mxu0 %v268
        %581 = vmatprep.subr.mxu0 0.0
        %582 = vmatpush1.msra.mxu0 %v271
        %583 = vmatprep.subr.mxu0 0.0
        %584 = vmatpush1.msra.mxu0 %v274
        %585 = vmatprep.subr.mxu0 0.0
        %586 = vmatpush1.msra.mxu0 %v277
        %587 = vmatprep.subr.mxu0 0.0
        %588 = vmatpush1.msra.mxu0 %v280
        %589 = vmatprep.subr.mxu0 0.0
        %590 = vmatpush1.msra.mxu0 %v283
        %591 = vmatprep.subr.mxu0 0.0
        %592 = vmatpush1.msra.mxu0 %v286
        %593 = vmatprep.subr.mxu0 0.0
        %594 = vmatpush1.msra.mxu0 0.0
        %595 = vmatprep.subr.mxu0 0.0
        %596 = vmatpush1.msra.mxu0 0.0
        %597 = vmatprep.subr.mxu0 0.0
        %598 = vmatpush1.msra.mxu0 0.0
        %599 = vmatprep.subr.mxu0 0.0
        %600 = vmatpush1.msra.mxu0 0.0
        %601 = vmatprep.subr.mxu0 0.0
        %602 = vmatpush1.msra.mxu0 0.0
        %603 = vmatprep.subr.mxu0 0.0
        %604 = vmatpush1.msra.mxu0 0.0
        %605 = vmatprep.subr.mxu0 0.0
        %606 = vmatpush1.msra.mxu0 0.0
        %607 = vmatprep.subr.mxu0 0.0
        %608 = vmatpush1.msra.mxu0 0.0
        %609 = vmatprep.subr.mxu0 0.0
        %610 = vmatpush1.msra.mxu0 0.0
        %611 = vmatprep.subr.mxu0 0.0
        %612 = vmatpush1.msra.mxu0 0.0
        %613 = vmatprep.subr.mxu0 0.0
        %614 = vmatpush1.msra.mxu0 0.0
        %615 = vmatprep.subr.mxu0 0.0
        %616 = vmatpush1.msra.mxu0 0.0
        %617 = vmatprep.subr.mxu0 0.0
        %618 = vmatpush1.msra.mxu0 0.0
        %619 = vmatprep.subr.mxu0 0.0
        %620 = vmatpush1.msra.mxu0 0.0
        %621 = vmatprep.subr.mxu0 0.0
        %622 = vmatpush1.msra.mxu0 0.0
        %623 = vmatprep.subr.mxu0 0.0
        %624 = vmatpush1.msra.mxu0 0.0
        %625 = vmatprep.mubr.f32.mxu0 0.0
        %626 = vmatmul.mubr.f32.gmra.mrb[0].mxu0 %v207
        %v627 = vpop.f32.mrb[0].mxu0
        %v628 = vadd.f32 %v300, %v627
        %v629 = vpop.f32.mrb[0].mxu0
        %630 = vmatprep.mubr.f32.mxu0 0.0
        %631 = vmatmul.mubr.f32.gmra.mrb[0].mxu0 %v208
        %v632 = vpop.f32.mrb[0].mxu0
        %v633 = vadd.f32 %v300, %v632
        %v634 = vpop.f32.mrb[0].mxu0
        %635 = vmatprep.mubr.f32.mxu0 0.0
        %636 = vmatmul.mubr.f32.gmra.mrb[0].mxu0 %v209
        %v637 = vpop.f32.mrb[0].mxu0
        %v638 = vadd.f32 %v300, %v637
        %v639 = vpop.f32.mrb[0].mxu0
        %640 = vmatprep.mubr.f32.mxu0 0.0
        %641 = vmatmul.mubr.f32.gmra.mrb[0].mxu0 %v210
        %v642 = vpop.f32.mrb[0].mxu0
        %v643 = vadd.f32 %v300, %v642
        %v644 = vpop.f32.mrb[0].mxu0
        %645 = vmatprep.mubr.f32.mxu0 0.0
        %646 = vmatmul.mubr.f32.gmra.mrb[0].mxu0 %v211
        %v647 = vpop.f32.mrb[0].mxu0
        %v648 = vadd.f32 %v300, %v647
        %v649 = vpop.f32.mrb[0].mxu0
        %650 = vmatprep.mubr.f32.mxu0 0.0
        %651 = vmatmul.mubr.f32.gmra.mrb[0].mxu0 %v212
        %v652 = vpop.f32.mrb[0].mxu0
        %v653 = vadd.f32 %v300, %v652
        %v654 = vpop.f32.mrb[0].mxu0
        %655 = vmatprep.mubr.f32.mxu0 0.0
        %656 = vmatmul.mubr.f32.gmra.mrb[0].mxu0 %v213
        %v657 = vpop.f32.mrb[0].mxu0
        %v658 = vadd.f32 %v300, %v657
        %v659 = vpop.f32.mrb[0].mxu0
        %660 = vmatprep.mubr.f32.mxu0 0.0
        %661 = vmatmul.mubr.f32.gmra.mrb[0].mxu0 %v214
        %v662 = vpop.f32.mrb[0].mxu0
        %v663 = vadd.f32 %v300, %v662
        %v664 = vpop.f32.mrb[0].mxu0
        %665 = vmatprep.mubr.f32.mxu0 0.0
        %666 = vmatmul.mubr.f32.gmra.mrb[0].mxu0 %v215
        %v667 = vpop.f32.mrb[0].mxu0
        %v668 = vadd.f32 %v300, %v667
        %v669 = vpop.f32.mrb[0].mxu0
        %670 = vmatprep.mubr.f32.mxu0 0.0
        %671 = vmatmul.mubr.f32.gmra.mrb[0].mxu0 %v216
        %v672 = vpop.f32.mrb[0].mxu0
        %v673 = vadd.f32 %v300, %v672
        %v674 = vpop.f32.mrb[0].mxu0
        %675 = vmatprep.mubr.f32.mxu0 0.0
        %676 = vmatmul.mubr.f32.gmra.mrb[0].mxu0 %v217
        %v677 = vpop.f32.mrb[0].mxu0
        %v678 = vadd.f32 %v300, %v677
        %v679 = vpop.f32.mrb[0].mxu0
        %680 = vmatprep.mubr.f32.mxu0 0.0
        %681 = vmatmul.mubr.f32.gmra.mrb[0].mxu0 %v218
        %v682 = vpop.f32.mrb[0].mxu0
        %v683 = vadd.f32 %v300, %v682
        %v684 = vpop.f32.mrb[0].mxu0
        %685 = vmatprep.mubr.f32.mxu0 0.0
        %686 = vmatmul.mubr.f32.gmra.mrb[0].mxu0 %v219
        %v687 = vpop.f32.mrb[0].mxu0
        %v688 = vadd.f32 %v300, %v687
        %v689 = vpop.f32.mrb[0].mxu0
        %690 = vmatprep.mubr.f32.mxu0 0.0
        %691 = vmatmul.mubr.f32.gmra.mrb[0].mxu0 %v220
        %v692 = vpop.f32.mrb[0].mxu0
        %v693 = vadd.f32 %v300, %v692
        %v694 = vpop.f32.mrb[0].mxu0
        %695 = vmatprep.mubr.f32.mxu0 0.0
        %696 = vmatmul.mubr.f32.gmra.mrb[0].mxu0 %v221
        %v697 = vpop.f32.mrb[0].mxu0
        %v698 = vadd.f32 %v300, %v697
        %v699 = vpop.f32.mrb[0].mxu0
        %700 = vmatprep.mubr.f32.mxu0 0.0
        %701 = vmatmul.mubr.f32.gmra.mrb[0].mxu0 %v222
        %v702 = vpop.f32.mrb[0].mxu0
        %v703 = vadd.f32 %v300, %v702
        %v704 = vpop.f32.mrb[0].mxu0
        %705 = vmatprep.mubr.f32.mxu0 0.0
        %706 = vmatmul.mubr.f32.gmra.mrb[0].mxu0 %v223
        %v707 = vpop.f32.mrb[0].mxu0
        %v708 = vadd.f32 %v300, %v707
        %v709 = vpop.f32.mrb[0].mxu0
        %710 = vmatprep.mubr.f32.mxu0 0.0
        %711 = vmatmul.mubr.f32.gmra.mrb[0].mxu0 %v224
        %v712 = vpop.f32.mrb[0].mxu0
        %v713 = vadd.f32 %v300, %v712
        %v714 = vpop.f32.mrb[0].mxu0
        %715 = vmatprep.mubr.f32.mxu0 0.0
        %716 = vmatmul.mubr.f32.gmra.mrb[0].mxu0 %v225
        %v717 = vpop.f32.mrb[0].mxu0
        %v718 = vadd.f32 %v300, %v717
        %v719 = vpop.f32.mrb[0].mxu0
        %720 = vmatprep.mubr.f32.mxu0 0.0
        %721 = vmatmul.mubr.f32.gmra.mrb[0].mxu0 %v226
        %v722 = vpop.f32.mrb[0].mxu0
        %v723 = vadd.f32 %v300, %v722
        %v724 = vpop.f32.mrb[0].mxu0
        %725 = vmatprep.mubr.f32.mxu0 0.0
        %726 = vmatmul.mubr.f32.gmra.mrb[0].mxu0 %v227
        %v727 = vpop.f32.mrb[0].mxu0
        %v728 = vadd.f32 %v300, %v727
        %v729 = vpop.f32.mrb[0].mxu0
        %730 = vmatprep.mubr.f32.mxu0 0.0
        %731 = vmatmul.mubr.f32.gmra.mrb[0].mxu0 %v228
        %v732 = vpop.f32.mrb[0].mxu0
        %v733 = vadd.f32 %v300, %v732
        %v734 = vpop.f32.mrb[0].mxu0
        %735 = vmatprep.mubr.f32.mxu0 0.0
        %736 = vmatmul.mubr.f32.gmra.mrb[0].mxu0 %v229
        %v737 = vpop.f32.mrb[0].mxu0
        %v738 = vadd.f32 %v300, %v737
        %v739 = vpop.f32.mrb[0].mxu0
        %740 = vmatprep.mubr.f32.mxu0 0.0
        %741 = vmatmul.mubr.f32.gmra.mrb[0].mxu0 %v230
        %v742 = vpop.f32.mrb[0].mxu0
        %v743 = vadd.f32 %v300, %v742
        %v744 = vpop.f32.mrb[0].mxu0
        %745 = vmatprep.mubr.f32.mxu0 0.0
        %746 = vmatmul.mubr.f32.gmra.mrb[0].mxu0 %v231
        %v747 = vpop.f32.mrb[0].mxu0
        %v748 = vadd.f32 %v300, %v747
        %v749 = vpop.f32.mrb[0].mxu0
        %750 = vmatprep.mubr.f32.mxu0 0.0
        %751 = vmatmul.mubr.f32.gmra.mrb[0].mxu0 %v232
        %v752 = vpop.f32.mrb[0].mxu0
        %v753 = vadd.f32 %v300, %v752
        %v754 = vpop.f32.mrb[0].mxu0
        %755 = vmatprep.mubr.f32.mxu0 0.0
        %756 = vmatmul.mubr.f32.gmra.mrb[0].mxu0 %v233
        %v757 = vpop.f32.mrb[0].mxu0
        %v758 = vadd.f32 %v300, %v757
        %v759 = vpop.f32.mrb[0].mxu0
        %760 = vmatprep.mubr.f32.mxu0 0.0
        %761 = vmatmul.mubr.f32.gmra.mrb[0].mxu0 %v234
        %v762 = vpop.f32.mrb[0].mxu0
        %v763 = vadd.f32 %v300, %v762
        %v764 = vpop.f32.mrb[0].mxu0
        %765 = vmatprep.mubr.f32.mxu0 0.0
        %766 = vmatmul.mubr.f32.gmra.mrb[0].mxu0 %v235
        %v767 = vpop.f32.mrb[0].mxu0
        %v768 = vadd.f32 %v300, %v767
        %v769 = vpop.f32.mrb[0].mxu0
        %770 = vmatprep.mubr.f32.mxu0 0.0
        %771 = vmatmul.mubr.f32.gmra.mrb[0].mxu0 %v236
        %v772 = vpop.f32.mrb[0].mxu0
        %v773 = vadd.f32 %v300, %v772
        %v774 = vpop.f32.mrb[0].mxu0
        %775 = vmatprep.mubr.f32.mxu0 0.0
        %776 = vmatmul.mubr.f32.gmra.mrb[0].mxu0 %v237
        %v777 = vpop.f32.mrb[0].mxu0
        %v778 = vadd.f32 %v300, %v777
        %v779 = vpop.f32.mrb[0].mxu0
        %780 = vmatprep.mubr.f32.mxu0 0.0
        %781 = vmatmul.mubr.f32.gmra.mrb[0].mxu0 %v238
        %v782 = vpop.f32.mrb[0].mxu0
        %v783 = vadd.f32 %v300, %v782
        %v784 = vpop.f32.mrb[0].mxu0
        %785 = vdwg.mxu0
        %786 = vmatprep.subr.mxu0 0.0
        %787 = vmatpush1.xpose.msra.mxu0 %v371
        %788 = vmatprep.subr.mxu0 0.0
        %789 = vmatpush1.xpose.msra.mxu0 %v377
        %790 = vmatprep.subr.mxu0 0.0
        %791 = vmatpush1.xpose.msra.mxu0 0.0
        %792 = vmatprep.subr.mxu0 0.0
        %793 = vmatpush1.xpose.msra.mxu0 0.0
        %794 = vmatprep.subr.mxu0 0.0
        %795 = vmatpush1.xpose.msra.mxu0 0.0
        %796 = vmatprep.subr.mxu0 0.0
        %797 = vmatpush1.xpose.msra.mxu0 0.0
        %798 = vmatprep.subr.mxu0 0.0
        %799 = vmatpush1.xpose.msra.mxu0 0.0
        %800 = vmatprep.subr.mxu0 0.0
        %801 = vmatpush1.xpose.msra.mxu0 0.0
        %802 = vmatprep.subr.mxu0 0.0
        %803 = vmatpush1.xpose.msra.mxu0 0.0
        %804 = vmatprep.subr.mxu0 0.0
        %805 = vmatpush1.xpose.msra.mxu0 0.0
        %806 = vmatprep.subr.mxu0 0.0
        %807 = vmatpush1.xpose.msra.mxu0 0.0
        %808 = vmatprep.subr.mxu0 0.0
        %809 = vmatpush1.xpose.msra.mxu0 0.0
        %810 = vmatprep.subr.mxu0 0.0
        %811 = vmatpush1.xpose.msra.mxu0 0.0
        %812 = vmatprep.subr.mxu0 0.0
        %813 = vmatpush1.xpose.msra.mxu0 0.0
        %814 = vmatprep.subr.mxu0 0.0
        %815 = vmatpush1.xpose.msra.mxu0 0.0
        %816 = vmatprep.subr.mxu0 0.0
        %817 = vmatpush1.xpose.msra.mxu0 0.0
        %818 = vmatprep.subr.mxu0 0.0
        %819 = vmatpush1.xpose.msra.mxu0 0.0
        %820 = vmatprep.subr.mxu0 0.0
        %821 = vmatpush1.xpose.msra.mxu0 0.0
        %822 = vmatprep.subr.mxu0 0.0
        %823 = vmatpush1.xpose.msra.mxu0 0.0
        %824 = vmatprep.subr.mxu0 0.0
        %825 = vmatpush1.xpose.msra.mxu0 0.0
        %826 = vmatprep.subr.mxu0 0.0
        %827 = vmatpush1.xpose.msra.mxu0 0.0
        %828 = vmatprep.subr.mxu0 0.0
        %829 = vmatpush1.xpose.msra.mxu0 0.0
        %830 = vmatprep.subr.mxu0 0.0
        %831 = vmatpush1.xpose.msra.mxu0 0.0
        %832 = vmatprep.subr.mxu0 0.0
        %833 = vmatpush1.xpose.msra.mxu0 0.0
        %834 = vmatprep.subr.mxu0 0.0
        %835 = vmatpush1.xpose.msra.mxu0 0.0
        %836 = vmatprep.subr.mxu0 0.0
        %837 = vmatpush1.xpose.msra.mxu0 0.0
        %838 = vmatprep.subr.mxu0 0.0
        %839 = vmatpush1.xpose.msra.mxu0 0.0
        %840 = vmatprep.subr.mxu0 0.0
        %841 = vmatpush1.xpose.msra.mxu0 0.0
        %842 = vmatprep.subr.mxu0 0.0
        %843 = vmatpush1.xpose.msra.mxu0 0.0
        %844 = vmatprep.subr.mxu0 0.0
        %845 = vmatpush1.xpose.msra.mxu0 0.0
        %846 = vmatprep.subr.mxu0 0.0
        %847 = vmatpush1.xpose.msra.mxu0 0.0
        %848 = vmatprep.subr.mxu0 0.0
        %849 = vmatpush1.xpose.msra.mxu0 0.0
        %850 = vmatprep.mubr.f32.mxu0 0.0
        %851 = vmatmul.mubr.f32.gmra.mrb[0].mxu0 %v373
        %v852 = vpop.f32.mrb[0].mxu0
        %v853 = vadd.f32 0.0, %v852
        %v854 = vpop.f32.mrb[0].mxu0
        %855 = vmatprep.mubr.f32.mxu0 0.0
        %856 = vmatmul.mubr.f32.gmra.mrb[0].mxu0 %v379
        %v857 = vpop.f32.mrb[0].mxu0
        %v858 = vadd.f32 0.0, %v857
        %v859 = vpop.f32.mrb[0].mxu0
        %860 = vdwg.mxu0
        %861 = vmatprep.subr.mxu0 0.0
        %862 = vmatpush1.xpose.msra.mxu0 %v383
        %863 = vmatprep.subr.mxu0 0.0
        %864 = vmatpush1.xpose.msra.mxu0 %v389
        %865 = vmatprep.subr.mxu0 0.0
        %866 = vmatpush1.xpose.msra.mxu0 0.0
        %867 = vmatprep.subr.mxu0 0.0
        %868 = vmatpush1.xpose.msra.mxu0 0.0
        %869 = vmatprep.subr.mxu0 0.0
        %870 = vmatpush1.xpose.msra.mxu0 0.0
        %871 = vmatprep.subr.mxu0 0.0
        %872 = vmatpush1.xpose.msra.mxu0 0.0
        %873 = vmatprep.subr.mxu0 0.0
        %874 = vmatpush1.xpose.msra.mxu0 0.0
        %875 = vmatprep.subr.mxu0 0.0
        %876 = vmatpush1.xpose.msra.mxu0 0.0
        %877 = vmatprep.subr.mxu0 0.0
        %878 = vmatpush1.xpose.msra.mxu0 0.0
        %879 = vmatprep.subr.mxu0 0.0
        %880 = vmatpush1.xpose.msra.mxu0 0.0
        %881 = vmatprep.subr.mxu0 0.0
        %882 = vmatpush1.xpose.msra.mxu0 0.0
        %883 = vmatprep.subr.mxu0 0.0
        %884 = vmatpush1.xpose.msra.mxu0 0.0
        %885 = vmatprep.subr.mxu0 0.0
        %886 = vmatpush1.xpose.msra.mxu0 0.0
        %887 = vmatprep.subr.mxu0 0.0
        %888 = vmatpush1.xpose.msra.mxu0 0.0
        %889 = vmatprep.subr.mxu0 0.0
        %890 = vmatpush1.xpose.msra.mxu0 0.0
        %891 = vmatprep.subr.mxu0 0.0
        %892 = vmatpush1.xpose.msra.mxu0 0.0
        %893 = vmatprep.subr.mxu0 0.0
        %894 = vmatpush1.xpose.msra.mxu0 0.0
        %895 = vmatprep.subr.mxu0 0.0
        %896 = vmatpush1.xpose.msra.mxu0 0.0
        %897 = vmatprep.subr.mxu0 0.0
        %898 = vmatpush1.xpose.msra.mxu0 0.0
        %899 = vmatprep.subr.mxu0 0.0
        %900 = vmatpush1.xpose.msra.mxu0 0.0
        %901 = vmatprep.subr.mxu0 0.0
        %902 = vmatpush1.xpose.msra.mxu0 0.0
        %903 = vmatprep.subr.mxu0 0.0
        %904 = vmatpush1.xpose.msra.mxu0 0.0
        %905 = vmatprep.subr.mxu0 0.0
        %906 = vmatpush1.xpose.msra.mxu0 0.0
        %907 = vmatprep.subr.mxu0 0.0
        %908 = vmatpush1.xpose.msra.mxu0 0.0
        %909 = vmatprep.subr.mxu0 0.0
        %910 = vmatpush1.xpose.msra.mxu0 0.0
        %911 = vmatprep.subr.mxu0 0.0
        %912 = vmatpush1.xpose.msra.mxu0 0.0
        %913 = vmatprep.subr.mxu0 0.0
        %914 = vmatpush1.xpose.msra.mxu0 0.0
        %915 = vmatprep.subr.mxu0 0.0
        %916 = vmatpush1.xpose.msra.mxu0 0.0
        %917 = vmatprep.subr.mxu0 0.0
        %918 = vmatpush1.xpose.msra.mxu0 0.0
        %919 = vmatprep.subr.mxu0 0.0
        %920 = vmatpush1.xpose.msra.mxu0 0.0
        %921 = vmatprep.subr.mxu0 0.0
        %922 = vmatpush1.xpose.msra.mxu0 0.0
        %923 = vmatprep.subr.mxu0 0.0
        %924 = vmatpush1.xpose.msra.mxu0 0.0
        %925 = vmatprep.mubr.f32.mxu0 0.0
        %926 = vmatmul.mubr.f32.gmra.mrb[0].mxu0 %v385
        %v927 = vpop.f32.mrb[0].mxu0
        %v928 = vadd.f32 0.0, %v927
        %v929 = vpop.f32.mrb[0].mxu0
        %930 = vmatprep.mubr.f32.mxu0 0.0
        %931 = vmatmul.mubr.f32.gmra.mrb[0].mxu0 %v391
        %v932 = vpop.f32.mrb[0].mxu0
        %v933 = vadd.f32 0.0, %v932
        %v934 = vpop.f32.mrb[0].mxu0
        %935 = vdwg.mxu0
        %936 = vmatprep.subr.mxu0 0.0
        %937 = vmatpush1.xpose.msra.mxu0 %v395
        %938 = vmatprep.subr.mxu0 0.0
        %939 = vmatpush1.xpose.msra.mxu0 %v401
        %940 = vmatprep.subr.mxu0 0.0
        %941 = vmatpush1.xpose.msra.mxu0 0.0
        %942 = vmatprep.subr.mxu0 0.0
        %943 = vmatpush1.xpose.msra.mxu0 0.0
        %944 = vmatprep.subr.mxu0 0.0
        %945 = vmatpush1.xpose.msra.mxu0 0.0
        %946 = vmatprep.subr.mxu0 0.0
        %947 = vmatpush1.xpose.msra.mxu0 0.0
        %948 = vmatprep.subr.mxu0 0.0
        %949 = vmatpush1.xpose.msra.mxu0 0.0
        %950 = vmatprep.subr.mxu0 0.0
        %951 = vmatpush1.xpose.msra.mxu0 0.0
        %952 = vmatprep.subr.mxu0 0.0
        %953 = vmatpush1.xpose.msra.mxu0 0.0
        %954 = vmatprep.subr.mxu0 0.0
        %955 = vmatpush1.xpose.msra.mxu0 0.0
        %956 = vmatprep.subr.mxu0 0.0
        %957 = vmatpush1.xpose.msra.mxu0 0.0
        %958 = vmatprep.subr.mxu0 0.0
        %959 = vmatpush1.xpose.msra.mxu0 0.0
        %960 = vmatprep.subr.mxu0 0.0
        %961 = vmatpush1.xpose.msra.mxu0 0.0
        %962 = vmatprep.subr.mxu0 0.0
        %963 = vmatpush1.xpose.msra.mxu0 0.0
        %964 = vmatprep.subr.mxu0 0.0
        %965 = vmatpush1.xpose.msra.mxu0 0.0
        %966 = vmatprep.subr.mxu0 0.0
        %967 = vmatpush1.xpose.msra.mxu0 0.0
        %968 = vmatprep.subr.mxu0 0.0
        %969 = vmatpush1.xpose.msra.mxu0 0.0
        %970 = vmatprep.subr.mxu0 0.0
        %971 = vmatpush1.xpose.msra.mxu0 0.0
        %972 = vmatprep.subr.mxu0 0.0
        %973 = vmatpush1.xpose.msra.mxu0 0.0
        %974 = vmatprep.subr.mxu0 0.0
        %975 = vmatpush1.xpose.msra.mxu0 0.0
        %976 = vmatprep.subr.mxu0 0.0
        %977 = vmatpush1.xpose.msra.mxu0 0.0
        %978 = vmatprep.subr.mxu0 0.0
        %979 = vmatpush1.xpose.msra.mxu0 0.0
        %980 = vmatprep.subr.mxu0 0.0
        %981 = vmatpush1.xpose.msra.mxu0 0.0
        %982 = vmatprep.subr.mxu0 0.0
        %983 = vmatpush1.xpose.msra.mxu0 0.0
        %984 = vmatprep.subr.mxu0 0.0
        %985 = vmatpush1.xpose.msra.mxu0 0.0
        %986 = vmatprep.subr.mxu0 0.0
        %987 = vmatpush1.xpose.msra.mxu0 0.0
        %988 = vmatprep.subr.mxu0 0.0
        %989 = vmatpush1.xpose.msra.mxu0 0.0
        %990 = vmatprep.subr.mxu0 0.0
        %991 = vmatpush1.xpose.msra.mxu0 0.0
        %992 = vmatprep.subr.mxu0 0.0
        %993 = vmatpush1.xpose.msra.mxu0 0.0
        %994 = vmatprep.subr.mxu0 0.0
        %995 = vmatpush1.xpose.msra.mxu0 0.0
        %996 = vmatprep.subr.mxu0 0.0
        %997 = vmatpush1.xpose.msra.mxu0 0.0
        %998 = vmatprep.subr.mxu0 0.0
        %999 = vmatpush1.xpose.msra.mxu0 0.0
        %1000 = vmatprep.mubr.f32.mxu0 0.0
        %1001 = vmatmul.mubr.f32.gmra.mrb[0].mxu0 %v397
        %v1002 = vpop.f32.mrb[0].mxu0
        %v1003 = vadd.f32 0.0, %v1002
        %v1004 = vpop.f32.mrb[0].mxu0
        %1005 = vmatprep.mubr.f32.mxu0 0.0
        %1006 = vmatmul.mubr.f32.gmra.mrb[0].mxu0 %v403
        %v1007 = vpop.f32.mrb[0].mxu0
        %v1008 = vadd.f32 0.0, %v1007
        %v1009 = vpop.f32.mrb[0].mxu0
        %1010 = vdwg.mxu0
        %1011 = vmatprep.subr.mxu0 0.0
        %1012 = vmatpush1.xpose.msra.mxu0 %v407
        %1013 = vmatprep.subr.mxu0 0.0
        %1014 = vmatpush1.xpose.msra.mxu0 %v413
        %1015 = vmatprep.subr.mxu0 0.0
        %1016 = vmatpush1.xpose.msra.mxu0 0.0
        %1017 = vmatprep.subr.mxu0 0.0
        %1018 = vmatpush1.xpose.msra.mxu0 0.0
        %1019 = vmatprep.subr.mxu0 0.0
        %1020 = vmatpush1.xpose.msra.mxu0 0.0
        %1021 = vmatprep.subr.mxu0 0.0
        %1022 = vmatpush1.xpose.msra.mxu0 0.0
        %1023 = vmatprep.subr.mxu0 0.0
        %1024 = vmatpush1.xpose.msra.mxu0 0.0
        %1025 = vmatprep.subr.mxu0 0.0
        %1026 = vmatpush1.xpose.msra.mxu0 0.0
        %1027 = vmatprep.subr.mxu0 0.0
        %1028 = vmatpush1.xpose.msra.mxu0 0.0
        %1029 = vmatprep.subr.mxu0 0.0
        %1030 = vmatpush1.xpose.msra.mxu0 0.0
        %1031 = vmatprep.subr.mxu0 0.0
        %1032 = vmatpush1.xpose.msra.mxu0 0.0
        %1033 = vmatprep.subr.mxu0 0.0
        %1034 = vmatpush1.xpose.msra.mxu0 0.0
        %1035 = vmatprep.subr.mxu0 0.0
        %1036 = vmatpush1.xpose.msra.mxu0 0.0
        %1037 = vmatprep.subr.mxu0 0.0
        %1038 = vmatpush1.xpose.msra.mxu0 0.0
        %1039 = vmatprep.subr.mxu0 0.0
        %1040 = vmatpush1.xpose.msra.mxu0 0.0
        %1041 = vmatprep.subr.mxu0 0.0
        %1042 = vmatpush1.xpose.msra.mxu0 0.0
        %1043 = vmatprep.subr.mxu0 0.0
        %1044 = vmatpush1.xpose.msra.mxu0 0.0
        %1045 = vmatprep.subr.mxu0 0.0
        %1046 = vmatpush1.xpose.msra.mxu0 0.0
        %1047 = vmatprep.subr.mxu0 0.0
        %1048 = vmatpush1.xpose.msra.mxu0 0.0
        %1049 = vmatprep.subr.mxu0 0.0
        %1050 = vmatpush1.xpose.msra.mxu0 0.0
        %1051 = vmatprep.subr.mxu0 0.0
        %1052 = vmatpush1.xpose.msra.mxu0 0.0
        %1053 = vmatprep.subr.mxu0 0.0
        %1054 = vmatpush1.xpose.msra.mxu0 0.0
        %1055 = vmatprep.subr.mxu0 0.0
        %1056 = vmatpush1.xpose.msra.mxu0 0.0
        %1057 = vmatprep.subr.mxu0 0.0
        %1058 = vmatpush1.xpose.msra.mxu0 0.0
        %1059 = vmatprep.subr.mxu0 0.0
        %1060 = vmatpush1.xpose.msra.mxu0 0.0
        %1061 = vmatprep.subr.mxu0 0.0
        %1062 = vmatpush1.xpose.msra.mxu0 0.0
        %1063 = vmatprep.subr.mxu0 0.0
        %1064 = vmatpush1.xpose.msra.mxu0 0.0
        %1065 = vmatprep.subr.mxu0 0.0
        %1066 = vmatpush1.xpose.msra.mxu0 0.0
        %1067 = vmatprep.subr.mxu0 0.0
        %1068 = vmatpush1.xpose.msra.mxu0 0.0
        %1069 = vmatprep.subr.mxu0 0.0
        %1070 = vmatpush1.xpose.msra.mxu0 0.0
        %1071 = vmatprep.subr.mxu0 0.0
        %1072 = vmatpush1.xpose.msra.mxu0 0.0
        %1073 = vmatprep.subr.mxu0 0.0
        %1074 = vmatpush1.xpose.msra.mxu0 0.0
        %1075 = vmatprep.mubr.f32.mxu0 0.0
        %1076 = vmatmul.mubr.f32.gmra.mrb[0].mxu0 %v409
        %v1077 = vpop.f32.mrb[0].mxu0
        %v1078 = vadd.f32 0.0, %v1077
        %v1079 = vpop.f32.mrb[0].mxu0
        %1080 = vmatprep.mubr.f32.mxu0 0.0
        %1081 = vmatmul.mubr.f32.gmra.mrb[0].mxu0 %v415
        %v1082 = vpop.f32.mrb[0].mxu0
        %v1083 = vadd.f32 0.0, %v1082
        %v1084 = vpop.f32.mrb[0].mxu0
        %1085 = vdwg.mxu0
        %1086 = vmatprep.subr.mxu0 0.0
        %1087 = vmatpush1.xpose.msra.mxu0 %v419
        %1088 = vmatprep.subr.mxu0 0.0
        %1089 = vmatpush1.xpose.msra.mxu0 %v425
        %1090 = vmatprep.subr.mxu0 0.0
        %1091 = vmatpush1.xpose.msra.mxu0 0.0
        %1092 = vmatprep.subr.mxu0 0.0
        %1093 = vmatpush1.xpose.msra.mxu0 0.0
        %1094 = vmatprep.subr.mxu0 0.0
        %1095 = vmatpush1.xpose.msra.mxu0 0.0
        %1096 = vmatprep.subr.mxu0 0.0
        %1097 = vmatpush1.xpose.msra.mxu0 0.0
        %1098 = vmatprep.subr.mxu0 0.0
        %1099 = vmatpush1.xpose.msra.mxu0 0.0
        %1100 = vmatprep.subr.mxu0 0.0
        %1101 = vmatpush1.xpose.msra.mxu0 0.0
        %1102 = vmatprep.subr.mxu0 0.0
        %1103 = vmatpush1.xpose.msra.mxu0 0.0
        %1104 = vmatprep.subr.mxu0 0.0
        %1105 = vmatpush1.xpose.msra.mxu0 0.0
        %1106 = vmatprep.subr.mxu0 0.0
        %1107 = vmatpush1.xpose.msra.mxu0 0.0
        %1108 = vmatprep.subr.mxu0 0.0
        %1109 = vmatpush1.xpose.msra.mxu0 0.0
        %1110 = vmatprep.subr.mxu0 0.0
        %1111 = vmatpush1.xpose.msra.mxu0 0.0
        %1112 = vmatprep.subr.mxu0 0.0
        %1113 = vmatpush1.xpose.msra.mxu0 0.0
        %1114 = vmatprep.subr.mxu0 0.0
        %1115 = vmatpush1.xpose.msra.mxu0 0.0
        %1116 = vmatprep.subr.mxu0 0.0
        %1117 = vmatpush1.xpose.msra.mxu0 0.0
        %1118 = vmatprep.subr.mxu0 0.0
        %1119 = vmatpush1.xpose.msra.mxu0 0.0
        %1120 = vmatprep.subr.mxu0 0.0
        %1121 = vmatpush1.xpose.msra.mxu0 0.0
        %1122 = vmatprep.subr.mxu0 0.0
        %1123 = vmatpush1.xpose.msra.mxu0 0.0
        %1124 = vmatprep.subr.mxu0 0.0
        %1125 = vmatpush1.xpose.msra.mxu0 0.0
        %1126 = vmatprep.subr.mxu0 0.0
        %1127 = vmatpush1.xpose.msra.mxu0 0.0
        %1128 = vmatprep.subr.mxu0 0.0
        %1129 = vmatpush1.xpose.msra.mxu0 0.0
        %1130 = vmatprep.subr.mxu0 0.0
        %1131 = vmatpush1.xpose.msra.mxu0 0.0
        %1132 = vmatprep.subr.mxu0 0.0
        %1133 = vmatpush1.xpose.msra.mxu0 0.0
        %1134 = vmatprep.subr.mxu0 0.0
        %1135 = vmatpush1.xpose.msra.mxu0 0.0
        %1136 = vmatprep.subr.mxu0 0.0
        %1137 = vmatpush1.xpose.msra.mxu0 0.0
        %1138 = vmatprep.subr.mxu0 0.0
        %1139 = vmatpush1.xpose.msra.mxu0 0.0
        %1140 = vmatprep.subr.mxu0 0.0
        %1141 = vmatpush1.xpose.msra.mxu0 0.0
        %1142 = vmatprep.subr.mxu0 0.0
        %1143 = vmatpush1.xpose.msra.mxu0 0.0
        %1144 = vmatprep.subr.mxu0 0.0
        %1145 = vmatpush1.xpose.msra.mxu0 0.0
        %1146 = vmatprep.subr.mxu0 0.0
        %1147 = vmatpush1.xpose.msra.mxu0 0.0
        %1148 = vmatprep.subr.mxu0 0.0
        %1149 = vmatpush1.xpose.msra.mxu0 0.0
        %1150 = vmatprep.mubr.f32.mxu0 0.0
        %1151 = vmatmul.mubr.f32.gmra.mrb[0].mxu0 %v421
        %v1152 = vpop.f32.mrb[0].mxu0
        %v1153 = vadd.f32 0.0, %v1152
        %v1154 = vpop.f32.mrb[0].mxu0
        %1155 = vmatprep.mubr.f32.mxu0 0.0
        %1156 = vmatmul.mubr.f32.gmra.mrb[0].mxu0 %v427
        %v1157 = vpop.f32.mrb[0].mxu0
        %v1158 = vadd.f32 0.0, %v1157
        %v1159 = vpop.f32.mrb[0].mxu0
        %1160 = vdwg.mxu0
        %1161 = vmatprep.subr.mxu0 0.0
        %1162 = vmatpush1.xpose.msra.mxu0 %v431
        %1163 = vmatprep.subr.mxu0 0.0
        %1164 = vmatpush1.xpose.msra.mxu0 %v437
        %1165 = vmatprep.subr.mxu0 0.0
        %1166 = vmatpush1.xpose.msra.mxu0 0.0
        %1167 = vmatprep.subr.mxu0 0.0
        %1168 = vmatpush1.xpose.msra.mxu0 0.0
        %1169 = vmatprep.subr.mxu0 0.0
        %1170 = vmatpush1.xpose.msra.mxu0 0.0
        %1171 = vmatprep.subr.mxu0 0.0
        %1172 = vmatpush1.xpose.msra.mxu0 0.0
        %1173 = vmatprep.subr.mxu0 0.0
        %1174 = vmatpush1.xpose.msra.mxu0 0.0
        %1175 = vmatprep.subr.mxu0 0.0
        %1176 = vmatpush1.xpose.msra.mxu0 0.0
        %1177 = vmatprep.subr.mxu0 0.0
        %1178 = vmatpush1.xpose.msra.mxu0 0.0
        %1179 = vmatprep.subr.mxu0 0.0
        %1180 = vmatpush1.xpose.msra.mxu0 0.0
        %1181 = vmatprep.subr.mxu0 0.0
        %1182 = vmatpush1.xpose.msra.mxu0 0.0
        %1183 = vmatprep.subr.mxu0 0.0
        %1184 = vmatpush1.xpose.msra.mxu0 0.0
        %1185 = vmatprep.subr.mxu0 0.0
        %1186 = vmatpush1.xpose.msra.mxu0 0.0
        %1187 = vmatprep.subr.mxu0 0.0
        %1188 = vmatpush1.xpose.msra.mxu0 0.0
        %1189 = vmatprep.subr.mxu0 0.0
        %1190 = vmatpush1.xpose.msra.mxu0 0.0
        %1191 = vmatprep.subr.mxu0 0.0
        %1192 = vmatpush1.xpose.msra.mxu0 0.0
        %1193 = vmatprep.subr.mxu0 0.0
        %1194 = vmatpush1.xpose.msra.mxu0 0.0
        %1195 = vmatprep.subr.mxu0 0.0
        %1196 = vmatpush1.xpose.msra.mxu0 0.0
        %1197 = vmatprep.subr.mxu0 0.0
        %1198 = vmatpush1.xpose.msra.mxu0 0.0
        %1199 = vmatprep.subr.mxu0 0.0
        %1200 = vmatpush1.xpose.msra.mxu0 0.0
        %1201 = vmatprep.subr.mxu0 0.0
        %1202 = vmatpush1.xpose.msra.mxu0 0.0
        %1203 = vmatprep.subr.mxu0 0.0
        %1204 = vmatpush1.xpose.msra.mxu0 0.0
        %1205 = vmatprep.subr.mxu0 0.0
        %1206 = vmatpush1.xpose.msra.mxu0 0.0
        %1207 = vmatprep.subr.mxu0 0.0
        %1208 = vmatpush1.xpose.msra.mxu0 0.0
        %1209 = vmatprep.subr.mxu0 0.0
        %1210 = vmatpush1.xpose.msra.mxu0 0.0
        %1211 = vmatprep.subr.mxu0 0.0
        %1212 = vmatpush1.xpose.msra.mxu0 0.0
        %1213 = vmatprep.subr.mxu0 0.0
        %1214 = vmatpush1.xpose.msra.mxu0 0.0
        %1215 = vmatprep.subr.mxu0 0.0
        %1216 = vmatpush1.xpose.msra.mxu0 0.0
        %1217 = vmatprep.subr.mxu0 0.0
        %1218 = vmatpush1.xpose.msra.mxu0 0.0
        %1219 = vmatprep.subr.mxu0 0.0
        %1220 = vmatpush1.xpose.msra.mxu0 0.0
        %1221 = vmatprep.subr.mxu0 0.0
        %1222 = vmatpush1.xpose.msra.mxu0 0.0
        %1223 = vmatprep.subr.mxu0 0.0
        %1224 = vmatpush1.xpose.msra.mxu0 0.0
        %1225 = vmatprep.mubr.f32.mxu0 0.0
        %1226 = vmatmul.mubr.f32.gmra.mrb[0].mxu0 %v433
        %v1227 = vpop.f32.mrb[0].mxu0
        %v1228 = vadd.f32 0.0, %v1227
        %v1229 = vpop.f32.mrb[0].mxu0
        %1230 = vmatprep.mubr.f32.mxu0 0.0
        %1231 = vmatmul.mubr.f32.gmra.mrb[0].mxu0 %v439
        %v1232 = vpop.f32.mrb[0].mxu0
        %v1233 = vadd.f32 0.0, %v1232
        %v1234 = vpop.f32.mrb[0].mxu0
        %1235 = vdwg.mxu0
        %1236 = vmatprep.subr.mxu0 0.0
        %1237 = vmatpush1.xpose.msra.mxu0 %v443
        %1238 = vmatprep.subr.mxu0 0.0
        %1239 = vmatpush1.xpose.msra.mxu0 %v449
        %1240 = vmatprep.subr.mxu0 0.0
        %1241 = vmatpush1.xpose.msra.mxu0 0.0
        %1242 = vmatprep.subr.mxu0 0.0
        %1243 = vmatpush1.xpose.msra.mxu0 0.0
        %1244 = vmatprep.subr.mxu0 0.0
        %1245 = vmatpush1.xpose.msra.mxu0 0.0
        %1246 = vmatprep.subr.mxu0 0.0
        %1247 = vmatpush1.xpose.msra.mxu0 0.0
        %1248 = vmatprep.subr.mxu0 0.0
        %1249 = vmatpush1.xpose.msra.mxu0 0.0
        %1250 = vmatprep.subr.mxu0 0.0
        %1251 = vmatpush1.xpose.msra.mxu0 0.0
        %1252 = vmatprep.subr.mxu0 0.0
        %1253 = vmatpush1.xpose.msra.mxu0 0.0
        %1254 = vmatprep.subr.mxu0 0.0
        %1255 = vmatpush1.xpose.msra.mxu0 0.0
        %1256 = vmatprep.subr.mxu0 0.0
        %1257 = vmatpush1.xpose.msra.mxu0 0.0
        %1258 = vmatprep.subr.mxu0 0.0
        %1259 = vmatpush1.xpose.msra.mxu0 0.0
        %1260 = vmatprep.subr.mxu0 0.0
        %1261 = vmatpush1.xpose.msra.mxu0 0.0
        %1262 = vmatprep.subr.mxu0 0.0
        %1263 = vmatpush1.xpose.msra.mxu0 0.0
        %1264 = vmatprep.subr.mxu0 0.0
        %1265 = vmatpush1.xpose.msra.mxu0 0.0
        %1266 = vmatprep.subr.mxu0 0.0
        %1267 = vmatpush1.xpose.msra.mxu0 0.0
        %1268 = vmatprep.subr.mxu0 0.0
        %1269 = vmatpush1.xpose.msra.mxu0 0.0
        %1270 = vmatprep.subr.mxu0 0.0
        %1271 = vmatpush1.xpose.msra.mxu0 0.0
        %1272 = vmatprep.subr.mxu0 0.0
        %1273 = vmatpush1.xpose.msra.mxu0 0.0
        %1274 = vmatprep.subr.mxu0 0.0
        %1275 = vmatpush1.xpose.msra.mxu0 0.0
        %1276 = vmatprep.subr.mxu0 0.0
        %1277 = vmatpush1.xpose.msra.mxu0 0.0
        %1278 = vmatprep.subr.mxu0 0.0
        %1279 = vmatpush1.xpose.msra.mxu0 0.0
        %1280 = vmatprep.subr.mxu0 0.0
        %1281 = vmatpush1.xpose.msra.mxu0 0.0
        %1282 = vmatprep.subr.mxu0 0.0
        %1283 = vmatpush1.xpose.msra.mxu0 0.0
        %1284 = vmatprep.subr.mxu0 0.0
        %1285 = vmatpush1.xpose.msra.mxu0 0.0
        %1286 = vmatprep.subr.mxu0 0.0
        %1287 = vmatpush1.xpose.msra.mxu0 0.0
        %1288 = vmatprep.subr.mxu0 0.0
        %1289 = vmatpush1.xpose.msra.mxu0 0.0
        %1290 = vmatprep.subr.mxu0 0.0
        %1291 = vmatpush1.xpose.msra.mxu0 0.0
        %1292 = vmatprep.subr.mxu0 0.0
        %1293 = vmatpush1.xpose.msra.mxu0 0.0
        %1294 = vmatprep.subr.mxu0 0.0
        %1295 = vmatpush1.xpose.msra.mxu0 0.0
        %1296 = vmatprep.subr.mxu0 0.0
        %1297 = vmatpush1.xpose.msra.mxu0 0.0
        %1298 = vmatprep.subr.mxu0 0.0
        %1299 = vmatpush1.xpose.msra.mxu0 0.0
        %1300 = vmatprep.mubr.f32.mxu0 0.0
        %1301 = vmatmul.mubr.f32.gmra.mrb[0].mxu0 %v445
        %v1302 = vpop.f32.mrb[0].mxu0
        %v1303 = vadd.f32 0.0, %v1302
        %v1304 = vpop.f32.mrb[0].mxu0
        %1305 = vmatprep.mubr.f32.mxu0 0.0
        %1306 = vmatmul.mubr.f32.gmra.mrb[0].mxu0 %v451
        %v1307 = vpop.f32.mrb[0].mxu0
        %v1308 = vadd.f32 0.0, %v1307
        %v1309 = vpop.f32.mrb[0].mxu0
        %1310 = vdwg.mxu0
        %1311 = vmatprep.subr.mxu0 0.0
        %1312 = vmatpush1.xpose.msra.mxu0 %v455
        %1313 = vmatprep.subr.mxu0 0.0
        %1314 = vmatpush1.xpose.msra.mxu0 %v461
        %1315 = vmatprep.subr.mxu0 0.0
        %1316 = vmatpush1.xpose.msra.mxu0 0.0
        %1317 = vmatprep.subr.mxu0 0.0
        %1318 = vmatpush1.xpose.msra.mxu0 0.0
        %1319 = vmatprep.subr.mxu0 0.0
        %1320 = vmatpush1.xpose.msra.mxu0 0.0
        %1321 = vmatprep.subr.mxu0 0.0
        %1322 = vmatpush1.xpose.msra.mxu0 0.0
        %1323 = vmatprep.subr.mxu0 0.0
        %1324 = vmatpush1.xpose.msra.mxu0 0.0
        %1325 = vmatprep.subr.mxu0 0.0
        %1326 = vmatpush1.xpose.msra.mxu0 0.0
        %1327 = vmatprep.subr.mxu0 0.0
        %1328 = vmatpush1.xpose.msra.mxu0 0.0
        %1329 = vmatprep.subr.mxu0 0.0
        %1330 = vmatpush1.xpose.msra.mxu0 0.0
        %1331 = vmatprep.subr.mxu0 0.0
        %1332 = vmatpush1.xpose.msra.mxu0 0.0
        %1333 = vmatprep.subr.mxu0 0.0
        %1334 = vmatpush1.xpose.msra.mxu0 0.0
        %1335 = vmatprep.subr.mxu0 0.0
        %1336 = vmatpush1.xpose.msra.mxu0 0.0
        %1337 = vmatprep.subr.mxu0 0.0
        %1338 = vmatpush1.xpose.msra.mxu0 0.0
        %1339 = vmatprep.subr.mxu0 0.0
        %1340 = vmatpush1.xpose.msra.mxu0 0.0
        %1341 = vmatprep.subr.mxu0 0.0
        %1342 = vmatpush1.xpose.msra.mxu0 0.0
        %1343 = vmatprep.subr.mxu0 0.0
        %1344 = vmatpush1.xpose.msra.mxu0 0.0
        %1345 = vmatprep.subr.mxu0 0.0
        %1346 = vmatpush1.xpose.msra.mxu0 0.0
        %1347 = vmatprep.subr.mxu0 0.0
        %1348 = vmatpush1.xpose.msra.mxu0 0.0
        %1349 = vmatprep.subr.mxu0 0.0
        %1350 = vmatpush1.xpose.msra.mxu0 0.0
        %1351 = vmatprep.subr.mxu0 0.0
        %1352 = vmatpush1.xpose.msra.mxu0 0.0
        %1353 = vmatprep.subr.mxu0 0.0
        %1354 = vmatpush1.xpose.msra.mxu0 0.0
        %1355 = vmatprep.subr.mxu0 0.0
        %1356 = vmatpush1.xpose.msra.mxu0 0.0
        %1357 = vmatprep.subr.mxu0 0.0
        %1358 = vmatpush1.xpose.msra.mxu0 0.0
        %1359 = vmatprep.subr.mxu0 0.0
        %1360 = vmatpush1.xpose.msra.mxu0 0.0
        %1361 = vmatprep.subr.mxu0 0.0
        %1362 = vmatpush1.xpose.msra.mxu0 0.0
        %1363 = vmatprep.subr.mxu0 0.0
        %1364 = vmatpush1.xpose.msra.mxu0 0.0
        %1365 = vmatprep.subr.mxu0 0.0
        %1366 = vmatpush1.xpose.msra.mxu0 0.0
        %1367 = vmatprep.subr.mxu0 0.0
        %1368 = vmatpush1.xpose.msra.mxu0 0.0
        %1369 = vmatprep.subr.mxu0 0.0
        %1370 = vmatpush1.xpose.msra.mxu0 0.0
        %1371 = vmatprep.subr.mxu0 0.0
        %1372 = vmatpush1.xpose.msra.mxu0 0.0
        %1373 = vmatprep.subr.mxu0 0.0
        %1374 = vmatpush1.xpose.msra.mxu0 0.0
        %1375 = vmatprep.mubr.f32.mxu0 0.0
        %1376 = vmatmul.mubr.f32.gmra.mrb[0].mxu0 %v457
        %v1377 = vpop.f32.mrb[0].mxu0
        %v1378 = vadd.f32 0.0, %v1377
        %v1379 = vpop.f32.mrb[0].mxu0
        %1380 = vmatprep.mubr.f32.mxu0 0.0
        %1381 = vmatmul.mubr.f32.gmra.mrb[0].mxu0 %v463
        %v1382 = vpop.f32.mrb[0].mxu0
        %v1383 = vadd.f32 0.0, %v1382
        %v1384 = vpop.f32.mrb[0].mxu0
        %1385 = vdwg.mxu0
        %1386 = vmatprep.subr.mxu0 0.0
        %1387 = vmatpush1.xpose.msra.mxu0 %v467
        %1388 = vmatprep.subr.mxu0 0.0
        %1389 = vmatpush1.xpose.msra.mxu0 %v473
        %1390 = vmatprep.subr.mxu0 0.0
        %1391 = vmatpush1.xpose.msra.mxu0 0.0
        %1392 = vmatprep.subr.mxu0 0.0
        %1393 = vmatpush1.xpose.msra.mxu0 0.0
        %1394 = vmatprep.subr.mxu0 0.0
        %1395 = vmatpush1.xpose.msra.mxu0 0.0
        %1396 = vmatprep.subr.mxu0 0.0
        %1397 = vmatpush1.xpose.msra.mxu0 0.0
        %1398 = vmatprep.subr.mxu0 0.0
        %1399 = vmatpush1.xpose.msra.mxu0 0.0
        %1400 = vmatprep.subr.mxu0 0.0
        %1401 = vmatpush1.xpose.msra.mxu0 0.0
        %1402 = vmatprep.subr.mxu0 0.0
        %1403 = vmatpush1.xpose.msra.mxu0 0.0
        %1404 = vmatprep.subr.mxu0 0.0
        %1405 = vmatpush1.xpose.msra.mxu0 0.0
        %1406 = vmatprep.subr.mxu0 0.0
        %1407 = vmatpush1.xpose.msra.mxu0 0.0
        %1408 = vmatprep.subr.mxu0 0.0
        %1409 = vmatpush1.xpose.msra.mxu0 0.0
        %1410 = vmatprep.subr.mxu0 0.0
        %1411 = vmatpush1.xpose.msra.mxu0 0.0
        %1412 = vmatprep.subr.mxu0 0.0
        %1413 = vmatpush1.xpose.msra.mxu0 0.0
        %1414 = vmatprep.subr.mxu0 0.0
        %1415 = vmatpush1.xpose.msra.mxu0 0.0
        %1416 = vmatprep.subr.mxu0 0.0
        %1417 = vmatpush1.xpose.msra.mxu0 0.0
        %1418 = vmatprep.subr.mxu0 0.0
        %1419 = vmatpush1.xpose.msra.mxu0 0.0
        %1420 = vmatprep.subr.mxu0 0.0
        %1421 = vmatpush1.xpose.msra.mxu0 0.0
        %1422 = vmatprep.subr.mxu0 0.0
        %1423 = vmatpush1.xpose.msra.mxu0 0.0
        %1424 = vmatprep.subr.mxu0 0.0
        %1425 = vmatpush1.xpose.msra.mxu0 0.0
        %1426 = vmatprep.subr.mxu0 0.0
        %1427 = vmatpush1.xpose.msra.mxu0 0.0
        %1428 = vmatprep.subr.mxu0 0.0
        %1429 = vmatpush1.xpose.msra.mxu0 0.0
        %1430 = vmatprep.subr.mxu0 0.0
        %1431 = vmatpush1.xpose.msra.mxu0 0.0
        %1432 = vmatprep.subr.mxu0 0.0
        %1433 = vmatpush1.xpose.msra.mxu0 0.0
        %1434 = vmatprep.subr.mxu0 0.0
        %1435 = vmatpush1.xpose.msra.mxu0 0.0
        %1436 = vmatprep.subr.mxu0 0.0
        %1437 = vmatpush1.xpose.msra.mxu0 0.0
        %1438 = vmatprep.subr.mxu0 0.0
        %1439 = vmatpush1.xpose.msra.mxu0 0.0
        %1440 = vmatprep.subr.mxu0 0.0
        %1441 = vmatpush1.xpose.msra.mxu0 0.0
        %1442 = vmatprep.subr.mxu0 0.0
        %1443 = vmatpush1.xpose.msra.mxu0 0.0
        %1444 = vmatprep.subr.mxu0 0.0
        %1445 = vmatpush1.xpose.msra.mxu0 0.0
        %1446 = vmatprep.subr.mxu0 0.0
        %1447 = vmatpush1.xpose.msra.mxu0 0.0
        %1448 = vmatprep.subr.mxu0 0.0
        %1449 = vmatpush1.xpose.msra.mxu0 0.0
        %1450 = vmatprep.mubr.f32.mxu0 0.0
        %1451 = vmatmul.mubr.f32.gmra.mrb[0].mxu0 %v469
        %v1452 = vpop.f32.mrb[0].mxu0
        %v1453 = vadd.f32 0.0, %v1452
        %v1454 = vpop.f32.mrb[0].mxu0
        %1455 = vmatprep.mubr.f32.mxu0 0.0
        %1456 = vmatmul.mubr.f32.gmra.mrb[0].mxu0 %v475
        %v1457 = vpop.f32.mrb[0].mxu0
        %v1458 = vadd.f32 0.0, %v1457
        %v1459 = vpop.f32.mrb[0].mxu0
        %1460 = vdwg.mxu0
        %1461 = vmatprep.subr.mxu0 0.0
        %1462 = vmatpush1.xpose.msra.mxu0 %v479
        %1463 = vmatprep.subr.mxu0 0.0
        %1464 = vmatpush1.xpose.msra.mxu0 %v485
        %1465 = vmatprep.subr.mxu0 0.0
        %1466 = vmatpush1.xpose.msra.mxu0 0.0
        %1467 = vmatprep.subr.mxu0 0.0
        %1468 = vmatpush1.xpose.msra.mxu0 0.0
        %1469 = vmatprep.subr.mxu0 0.0
        %1470 = vmatpush1.xpose.msra.mxu0 0.0
        %1471 = vmatprep.subr.mxu0 0.0
        %1472 = vmatpush1.xpose.msra.mxu0 0.0
        %1473 = vmatprep.subr.mxu0 0.0
        %1474 = vmatpush1.xpose.msra.mxu0 0.0
        %1475 = vmatprep.subr.mxu0 0.0
        %1476 = vmatpush1.xpose.msra.mxu0 0.0
        %1477 = vmatprep.subr.mxu0 0.0
        %1478 = vmatpush1.xpose.msra.mxu0 0.0
        %1479 = vmatprep.subr.mxu0 0.0
        %1480 = vmatpush1.xpose.msra.mxu0 0.0
        %1481 = vmatprep.subr.mxu0 0.0
        %1482 = vmatpush1.xpose.msra.mxu0 0.0
        %1483 = vmatprep.subr.mxu0 0.0
        %1484 = vmatpush1.xpose.msra.mxu0 0.0
        %1485 = vmatprep.subr.mxu0 0.0
        %1486 = vmatpush1.xpose.msra.mxu0 0.0
        %1487 = vmatprep.subr.mxu0 0.0
        %1488 = vmatpush1.xpose.msra.mxu0 0.0
        %1489 = vmatprep.subr.mxu0 0.0
        %1490 = vmatpush1.xpose.msra.mxu0 0.0
        %1491 = vmatprep.subr.mxu0 0.0
        %1492 = vmatpush1.xpose.msra.mxu0 0.0
        %1493 = vmatprep.subr.mxu0 0.0
        %1494 = vmatpush1.xpose.msra.mxu0 0.0
        %1495 = vmatprep.subr.mxu0 0.0
        %1496 = vmatpush1.xpose.msra.mxu0 0.0
        %1497 = vmatprep.subr.mxu0 0.0
        %1498 = vmatpush1.xpose.msra.mxu0 0.0
        %1499 = vmatprep.subr.mxu0 0.0
        %1500 = vmatpush1.xpose.msra.mxu0 0.0
        %1501 = vmatprep.subr.mxu0 0.0
        %1502 = vmatpush1.xpose.msra.mxu0 0.0
        %1503 = vmatprep.subr.mxu0 0.0
        %1504 = vmatpush1.xpose.msra.mxu0 0.0
        %1505 = vmatprep.subr.mxu0 0.0
        %1506 = vmatpush1.xpose.msra.mxu0 0.0
        %1507 = vmatprep.subr.mxu0 0.0
        %1508 = vmatpush1.xpose.msra.mxu0 0.0
        %1509 = vmatprep.subr.mxu0 0.0
        %1510 = vmatpush1.xpose.msra.mxu0 0.0
        %1511 = vmatprep.subr.mxu0 0.0
        %1512 = vmatpush1.xpose.msra.mxu0 0.0
        %1513 = vmatprep.subr.mxu0 0.0
        %1514 = vmatpush1.xpose.msra.mxu0 0.0
        %1515 = vmatprep.subr.mxu0 0.0
        %1516 = vmatpush1.xpose.msra.mxu0 0.0
        %1517 = vmatprep.subr.mxu0 0.0
        %1518 = vmatpush1.xpose.msra.mxu0 0.0
        %1519 = vmatprep.subr.mxu0 0.0
        %1520 = vmatpush1.xpose.msra.mxu0 0.0
        %1521 = vmatprep.subr.mxu0 0.0
        %1522 = vmatpush1.xpose.msra.mxu0 0.0
        %1523 = vmatprep.subr.mxu0 0.0
        %1524 = vmatpush1.xpose.msra.mxu0 0.0
        %1525 = vmatprep.mubr.f32.mxu0 0.0
        %1526 = vmatmul.mubr.f32.gmra.mrb[0].mxu0 %v481
        %v1527 = vpop.f32.mrb[0].mxu0
        %v1528 = vadd.f32 0.0, %v1527
        %v1529 = vpop.f32.mrb[0].mxu0
        %1530 = vmatprep.mubr.f32.mxu0 0.0
        %1531 = vmatmul.mubr.f32.gmra.mrb[0].mxu0 %v487
        %v1532 = vpop.f32.mrb[0].mxu0
        %v1533 = vadd.f32 0.0, %v1532
        %v1534 = vpop.f32.mrb[0].mxu0
        %1535 = vdwg.mxu0
        %1536 = vmatprep.subr.mxu0 0.0
        %1537 = vmatpush1.xpose.msra.mxu0 %v491
        %1538 = vmatprep.subr.mxu0 0.0
        %1539 = vmatpush1.xpose.msra.mxu0 %v497
        %1540 = vmatprep.subr.mxu0 0.0
        %1541 = vmatpush1.xpose.msra.mxu0 0.0
        %1542 = vmatprep.subr.mxu0 0.0
        %1543 = vmatpush1.xpose.msra.mxu0 0.0
        %1544 = vmatprep.subr.mxu0 0.0
        %1545 = vmatpush1.xpose.msra.mxu0 0.0
        %1546 = vmatprep.subr.mxu0 0.0
        %1547 = vmatpush1.xpose.msra.mxu0 0.0
        %1548 = vmatprep.subr.mxu0 0.0
        %1549 = vmatpush1.xpose.msra.mxu0 0.0
        %1550 = vmatprep.subr.mxu0 0.0
        %1551 = vmatpush1.xpose.msra.mxu0 0.0
        %1552 = vmatprep.subr.mxu0 0.0
        %1553 = vmatpush1.xpose.msra.mxu0 0.0
        %1554 = vmatprep.subr.mxu0 0.0
        %1555 = vmatpush1.xpose.msra.mxu0 0.0
        %1556 = vmatprep.subr.mxu0 0.0
        %1557 = vmatpush1.xpose.msra.mxu0 0.0
        %1558 = vmatprep.subr.mxu0 0.0
        %1559 = vmatpush1.xpose.msra.mxu0 0.0
        %1560 = vmatprep.subr.mxu0 0.0
        %1561 = vmatpush1.xpose.msra.mxu0 0.0
        %1562 = vmatprep.subr.mxu0 0.0
        %1563 = vmatpush1.xpose.msra.mxu0 0.0
        %1564 = vmatprep.subr.mxu0 0.0
        %1565 = vmatpush1.xpose.msra.mxu0 0.0
        %1566 = vmatprep.subr.mxu0 0.0
        %1567 = vmatpush1.xpose.msra.mxu0 0.0
        %1568 = vmatprep.subr.mxu0 0.0
        %1569 = vmatpush1.xpose.msra.mxu0 0.0
        %1570 = vmatprep.subr.mxu0 0.0
        %1571 = vmatpush1.xpose.msra.mxu0 0.0
        %1572 = vmatprep.subr.mxu0 0.0
        %1573 = vmatpush1.xpose.msra.mxu0 0.0
        %1574 = vmatprep.subr.mxu0 0.0
        %1575 = vmatpush1.xpose.msra.mxu0 0.0
        %1576 = vmatprep.subr.mxu0 0.0
        %1577 = vmatpush1.xpose.msra.mxu0 0.0
        %1578 = vmatprep.subr.mxu0 0.0
        %1579 = vmatpush1.xpose.msra.mxu0 0.0
        %1580 = vmatprep.subr.mxu0 0.0
        %1581 = vmatpush1.xpose.msra.mxu0 0.0
        %1582 = vmatprep.subr.mxu0 0.0
        %1583 = vmatpush1.xpose.msra.mxu0 0.0
        %1584 = vmatprep.subr.mxu0 0.0
        %1585 = vmatpush1.xpose.msra.mxu0 0.0
        %1586 = vmatprep.subr.mxu0 0.0
        %1587 = vmatpush1.xpose.msra.mxu0 0.0
        %1588 = vmatprep.subr.mxu0 0.0
        %1589 = vmatpush1.xpose.msra.mxu0 0.0
        %1590 = vmatprep.subr.mxu0 0.0
        %1591 = vmatpush1.xpose.msra.mxu0 0.0
        %1592 = vmatprep.subr.mxu0 0.0
        %1593 = vmatpush1.xpose.msra.mxu0 0.0
        %1594 = vmatprep.subr.mxu0 0.0
        %1595 = vmatpush1.xpose.msra.mxu0 0.0
        %1596 = vmatprep.subr.mxu0 0.0
        %1597 = vmatpush1.xpose.msra.mxu0 0.0
        %1598 = vmatprep.subr.mxu0 0.0
        %1599 = vmatpush1.xpose.msra.mxu0 0.0
        %1600 = vmatprep.mubr.f32.mxu0 0.0
        %1601 = vmatmul.mubr.f32.gmra.mrb[0].mxu0 %v493
        %v1602 = vpop.f32.mrb[0].mxu0
        %v1603 = vadd.f32 0.0, %v1602
        %v1604 = vpop.f32.mrb[0].mxu0
        %1605 = vmatprep.mubr.f32.mxu0 0.0
        %1606 = vmatmul.mubr.f32.gmra.mrb[0].mxu0 %v499
        %v1607 = vpop.f32.mrb[0].mxu0
        %v1608 = vadd.f32 0.0, %v1607
        %v1609 = vpop.f32.mrb[0].mxu0
        %1610 = vdwg.mxu0
        %1611 = vmatprep.subr.mxu0 0.0
        %1612 = vmatpush1.xpose.msra.mxu0 %v503
        %1613 = vmatprep.subr.mxu0 0.0
        %1614 = vmatpush1.xpose.msra.mxu0 %v509
        %1615 = vmatprep.subr.mxu0 0.0
        %1616 = vmatpush1.xpose.msra.mxu0 0.0
        %1617 = vmatprep.subr.mxu0 0.0
        %1618 = vmatpush1.xpose.msra.mxu0 0.0
        %1619 = vmatprep.subr.mxu0 0.0
        %1620 = vmatpush1.xpose.msra.mxu0 0.0
        %1621 = vmatprep.subr.mxu0 0.0
        %1622 = vmatpush1.xpose.msra.mxu0 0.0
        %1623 = vmatprep.subr.mxu0 0.0
        %1624 = vmatpush1.xpose.msra.mxu0 0.0
        %1625 = vmatprep.subr.mxu0 0.0
        %1626 = vmatpush1.xpose.msra.mxu0 0.0
        %1627 = vmatprep.subr.mxu0 0.0
        %1628 = vmatpush1.xpose.msra.mxu0 0.0
        %1629 = vmatprep.subr.mxu0 0.0
        %1630 = vmatpush1.xpose.msra.mxu0 0.0
        %1631 = vmatprep.subr.mxu0 0.0
        %1632 = vmatpush1.xpose.msra.mxu0 0.0
        %1633 = vmatprep.subr.mxu0 0.0
        %1634 = vmatpush1.xpose.msra.mxu0 0.0
        %1635 = vmatprep.subr.mxu0 0.0
        %1636 = vmatpush1.xpose.msra.mxu0 0.0
        %1637 = vmatprep.subr.mxu0 0.0
        %1638 = vmatpush1.xpose.msra.mxu0 0.0
        %1639 = vmatprep.subr.mxu0 0.0
        %1640 = vmatpush1.xpose.msra.mxu0 0.0
        %1641 = vmatprep.subr.mxu0 0.0
        %1642 = vmatpush1.xpose.msra.mxu0 0.0
        %1643 = vmatprep.subr.mxu0 0.0
        %1644 = vmatpush1.xpose.msra.mxu0 0.0
        %1645 = vmatprep.subr.mxu0 0.0
        %1646 = vmatpush1.xpose.msra.mxu0 0.0
        %1647 = vmatprep.subr.mxu0 0.0
        %1648 = vmatpush1.xpose.msra.mxu0 0.0
        %1649 = vmatprep.subr.mxu0 0.0
        %1650 = vmatpush1.xpose.msra.mxu0 0.0
        %1651 = vmatprep.subr.mxu0 0.0
        %1652 = vmatpush1.xpose.msra.mxu0 0.0
        %1653 = vmatprep.subr.mxu0 0.0
        %1654 = vmatpush1.xpose.msra.mxu0 0.0
        %1655 = vmatprep.subr.mxu0 0.0
        %1656 = vmatpush1.xpose.msra.mxu0 0.0
        %1657 = vmatprep.subr.mxu0 0.0
        %1658 = vmatpush1.xpose.msra.mxu0 0.0
        %1659 = vmatprep.subr.mxu0 0.0
        %1660 = vmatpush1.xpose.msra.mxu0 0.0
        %1661 = vmatprep.subr.mxu0 0.0
        %1662 = vmatpush1.xpose.msra.mxu0 0.0
        %1663 = vmatprep.subr.mxu0 0.0
        %1664 = vmatpush1.xpose.msra.mxu0 0.0
        %1665 = vmatprep.subr.mxu0 0.0
        %1666 = vmatpush1.xpose.msra.mxu0 0.0
        %1667 = vmatprep.subr.mxu0 0.0
        %1668 = vmatpush1.xpose.msra.mxu0 0.0
        %1669 = vmatprep.subr.mxu0 0.0
        %1670 = vmatpush1.xpose.msra.mxu0 0.0
        %1671 = vmatprep.subr.mxu0 0.0
        %1672 = vmatpush1.xpose.msra.mxu0 0.0
        %1673 = vmatprep.subr.mxu0 0.0
        %1674 = vmatpush1.xpose.msra.mxu0 0.0
        %1675 = vmatprep.mubr.f32.mxu0 0.0
        %1676 = vmatmul.mubr.f32.gmra.mrb[0].mxu0 %v505
        %v1677 = vpop.f32.mrb[0].mxu0
        %v1678 = vadd.f32 0.0, %v1677
        %v1679 = vpop.f32.mrb[0].mxu0
        %1680 = vmatprep.mubr.f32.mxu0 0.0
        %1681 = vmatmul.mubr.f32.gmra.mrb[0].mxu0 %v511
        %v1682 = vpop.f32.mrb[0].mxu0
        %v1683 = vadd.f32 0.0, %v1682
        %v1684 = vpop.f32.mrb[0].mxu0
        %1685 = vdwg.mxu0
        %1686 = vmatprep.subr.mxu0 0.0
        %1687 = vmatpush1.xpose.msra.mxu0 %v515
        %1688 = vmatprep.subr.mxu0 0.0
        %1689 = vmatpush1.xpose.msra.mxu0 %v521
        %1690 = vmatprep.subr.mxu0 0.0
        %1691 = vmatpush1.xpose.msra.mxu0 0.0
        %1692 = vmatprep.subr.mxu0 0.0
        %1693 = vmatpush1.xpose.msra.mxu0 0.0
        %1694 = vmatprep.subr.mxu0 0.0
        %1695 = vmatpush1.xpose.msra.mxu0 0.0
        %1696 = vmatprep.subr.mxu0 0.0
        %1697 = vmatpush1.xpose.msra.mxu0 0.0
        %1698 = vmatprep.subr.mxu0 0.0
        %1699 = vmatpush1.xpose.msra.mxu0 0.0
        %1700 = vmatprep.subr.mxu0 0.0
        %1701 = vmatpush1.xpose.msra.mxu0 0.0
        %1702 = vmatprep.subr.mxu0 0.0
        %1703 = vmatpush1.xpose.msra.mxu0 0.0
        %1704 = vmatprep.subr.mxu0 0.0
        %1705 = vmatpush1.xpose.msra.mxu0 0.0
        %1706 = vmatprep.subr.mxu0 0.0
        %1707 = vmatpush1.xpose.msra.mxu0 0.0
        %1708 = vmatprep.subr.mxu0 0.0
        %1709 = vmatpush1.xpose.msra.mxu0 0.0
        %1710 = vmatprep.subr.mxu0 0.0
        %1711 = vmatpush1.xpose.msra.mxu0 0.0
        %1712 = vmatprep.subr.mxu0 0.0
        %1713 = vmatpush1.xpose.msra.mxu0 0.0
        %1714 = vmatprep.subr.mxu0 0.0
        %1715 = vmatpush1.xpose.msra.mxu0 0.0
        %1716 = vmatprep.subr.mxu0 0.0
        %1717 = vmatpush1.xpose.msra.mxu0 0.0
        %1718 = vmatprep.subr.mxu0 0.0
        %1719 = vmatpush1.xpose.msra.mxu0 0.0
        %1720 = vmatprep.subr.mxu0 0.0
        %1721 = vmatpush1.xpose.msra.mxu0 0.0
        %1722 = vmatprep.subr.mxu0 0.0
        %1723 = vmatpush1.xpose.msra.mxu0 0.0
        %1724 = vmatprep.subr.mxu0 0.0
        %1725 = vmatpush1.xpose.msra.mxu0 0.0
        %1726 = vmatprep.subr.mxu0 0.0
        %1727 = vmatpush1.xpose.msra.mxu0 0.0
        %1728 = vmatprep.subr.mxu0 0.0
        %1729 = vmatpush1.xpose.msra.mxu0 0.0
        %1730 = vmatprep.subr.mxu0 0.0
        %1731 = vmatpush1.xpose.msra.mxu0 0.0
        %1732 = vmatprep.subr.mxu0 0.0
        %1733 = vmatpush1.xpose.msra.mxu0 0.0
        %1734 = vmatprep.subr.mxu0 0.0
        %1735 = vmatpush1.xpose.msra.mxu0 0.0
        %1736 = vmatprep.subr.mxu0 0.0
        %1737 = vmatpush1.xpose.msra.mxu0 0.0
        %1738 = vmatprep.subr.mxu0 0.0
        %1739 = vmatpush1.xpose.msra.mxu0 0.0
        %1740 = vmatprep.subr.mxu0 0.0
        %1741 = vmatpush1.xpose.msra.mxu0 0.0
        %1742 = vmatprep.subr.mxu0 0.0
        %1743 = vmatpush1.xpose.msra.mxu0 0.0
        %1744 = vmatprep.subr.mxu0 0.0
        %1745 = vmatpush1.xpose.msra.mxu0 0.0
        %1746 = vmatprep.subr.mxu0 0.0
        %1747 = vmatpush1.xpose.msra.mxu0 0.0
        %1748 = vmatprep.subr.mxu0 0.0
        %1749 = vmatpush1.xpose.msra.mxu0 0.0
        %1750 = vmatprep.mubr.f32.mxu0 0.0
        %1751 = vmatmul.mubr.f32.gmra.mrb[0].mxu0 %v517
        %v1752 = vpop.f32.mrb[0].mxu0
        %v1753 = vadd.f32 0.0, %v1752
        %v1754 = vpop.f32.mrb[0].mxu0
        %1755 = vmatprep.mubr.f32.mxu0 0.0
        %1756 = vmatmul.mubr.f32.gmra.mrb[0].mxu0 %v523
        %v1757 = vpop.f32.mrb[0].mxu0
        %v1758 = vadd.f32 0.0, %v1757
        %v1759 = vpop.f32.mrb[0].mxu0
        %1760 = vdwg.mxu0
        %1761 = vmatprep.subr.mxu0 0.0
        %1762 = vmatpush1.xpose.msra.mxu0 %v527
        %1763 = vmatprep.subr.mxu0 0.0
        %1764 = vmatpush1.xpose.msra.mxu0 %v533
        %1765 = vmatprep.subr.mxu0 0.0
        %1766 = vmatpush1.xpose.msra.mxu0 0.0
        %1767 = vmatprep.subr.mxu0 0.0
        %1768 = vmatpush1.xpose.msra.mxu0 0.0
        %1769 = vmatprep.subr.mxu0 0.0
        %1770 = vmatpush1.xpose.msra.mxu0 0.0
        %1771 = vmatprep.subr.mxu0 0.0
        %1772 = vmatpush1.xpose.msra.mxu0 0.0
        %1773 = vmatprep.subr.mxu0 0.0
        %1774 = vmatpush1.xpose.msra.mxu0 0.0
        %1775 = vmatprep.subr.mxu0 0.0
        %1776 = vmatpush1.xpose.msra.mxu0 0.0
        %1777 = vmatprep.subr.mxu0 0.0
        %1778 = vmatpush1.xpose.msra.mxu0 0.0
        %1779 = vmatprep.subr.mxu0 0.0
        %1780 = vmatpush1.xpose.msra.mxu0 0.0
        %1781 = vmatprep.subr.mxu0 0.0
        %1782 = vmatpush1.xpose.msra.mxu0 0.0
        %1783 = vmatprep.subr.mxu0 0.0
        %1784 = vmatpush1.xpose.msra.mxu0 0.0
        %1785 = vmatprep.subr.mxu0 0.0
        %1786 = vmatpush1.xpose.msra.mxu0 0.0
        %1787 = vmatprep.subr.mxu0 0.0
        %1788 = vmatpush1.xpose.msra.mxu0 0.0
        %1789 = vmatprep.subr.mxu0 0.0
        %1790 = vmatpush1.xpose.msra.mxu0 0.0
        %1791 = vmatprep.subr.mxu0 0.0
        %1792 = vmatpush1.xpose.msra.mxu0 0.0
        %1793 = vmatprep.subr.mxu0 0.0
        %1794 = vmatpush1.xpose.msra.mxu0 0.0
        %1795 = vmatprep.subr.mxu0 0.0
        %1796 = vmatpush1.xpose.msra.mxu0 0.0
        %1797 = vmatprep.subr.mxu0 0.0
        %1798 = vmatpush1.xpose.msra.mxu0 0.0
        %1799 = vmatprep.subr.mxu0 0.0
        %1800 = vmatpush1.xpose.msra.mxu0 0.0
        %1801 = vmatprep.subr.mxu0 0.0
        %1802 = vmatpush1.xpose.msra.mxu0 0.0
        %1803 = vmatprep.subr.mxu0 0.0
        %1804 = vmatpush1.xpose.msra.mxu0 0.0
        %1805 = vmatprep.subr.mxu0 0.0
        %1806 = vmatpush1.xpose.msra.mxu0 0.0
        %1807 = vmatprep.subr.mxu0 0.0
        %1808 = vmatpush1.xpose.msra.mxu0 0.0
        %1809 = vmatprep.subr.mxu0 0.0
        %1810 = vmatpush1.xpose.msra.mxu0 0.0
        %1811 = vmatprep.subr.mxu0 0.0
        %1812 = vmatpush1.xpose.msra.mxu0 0.0
        %1813 = vmatprep.subr.mxu0 0.0
        %1814 = vmatpush1.xpose.msra.mxu0 0.0
        %1815 = vmatprep.subr.mxu0 0.0
        %1816 = vmatpush1.xpose.msra.mxu0 0.0
        %1817 = vmatprep.subr.mxu0 0.0
        %1818 = vmatpush1.xpose.msra.mxu0 0.0
        %1819 = vmatprep.subr.mxu0 0.0
        %1820 = vmatpush1.xpose.msra.mxu0 0.0
        %1821 = vmatprep.subr.mxu0 0.0
        %1822 = vmatpush1.xpose.msra.mxu0 0.0
        %1823 = vmatprep.subr.mxu0 0.0
        %1824 = vmatpush1.xpose.msra.mxu0 0.0
        %1825 = vmatprep.mubr.f32.mxu0 0.0
        %1826 = vmatmul.mubr.f32.gmra.mrb[0].mxu0 %v529
        %v1827 = vpop.f32.mrb[0].mxu0
        %v1828 = vadd.f32 0.0, %v1827
        %v1829 = vpop.f32.mrb[0].mxu0
        %1830 = vmatprep.mubr.f32.mxu0 0.0
        %1831 = vmatmul.mubr.f32.gmra.mrb[0].mxu0 %v535
        %v1832 = vpop.f32.mrb[0].mxu0
        %v1833 = vadd.f32 0.0, %v1832
        %v1834 = vpop.f32.mrb[0].mxu0
        %1835 = vdwg.mxu0
        %1836 = vmatprep.subr.mxu0 0.0
        %1837 = vmatpush1.xpose.msra.mxu0 %v539
        %1838 = vmatprep.subr.mxu0 0.0
        %1839 = vmatpush1.xpose.msra.mxu0 %v545
        %1840 = vmatprep.subr.mxu0 0.0
        %1841 = vmatpush1.xpose.msra.mxu0 0.0
        %1842 = vmatprep.subr.mxu0 0.0
        %1843 = vmatpush1.xpose.msra.mxu0 0.0
        %1844 = vmatprep.subr.mxu0 0.0
        %1845 = vmatpush1.xpose.msra.mxu0 0.0
        %1846 = vmatprep.subr.mxu0 0.0
        %1847 = vmatpush1.xpose.msra.mxu0 0.0
        %1848 = vmatprep.subr.mxu0 0.0
        %1849 = vmatpush1.xpose.msra.mxu0 0.0
        %1850 = vmatprep.subr.mxu0 0.0
        %1851 = vmatpush1.xpose.msra.mxu0 0.0
        %1852 = vmatprep.subr.mxu0 0.0
        %1853 = vmatpush1.xpose.msra.mxu0 0.0
        %1854 = vmatprep.subr.mxu0 0.0
        %1855 = vmatpush1.xpose.msra.mxu0 0.0
        %1856 = vmatprep.subr.mxu0 0.0
        %1857 = vmatpush1.xpose.msra.mxu0 0.0
        %1858 = vmatprep.subr.mxu0 0.0
        %1859 = vmatpush1.xpose.msra.mxu0 0.0
        %1860 = vmatprep.subr.mxu0 0.0
        %1861 = vmatpush1.xpose.msra.mxu0 0.0
        %1862 = vmatprep.subr.mxu0 0.0
        %1863 = vmatpush1.xpose.msra.mxu0 0.0
        %1864 = vmatprep.subr.mxu0 0.0
        %1865 = vmatpush1.xpose.msra.mxu0 0.0
        %1866 = vmatprep.subr.mxu0 0.0
        %1867 = vmatpush1.xpose.msra.mxu0 0.0
        %1868 = vmatprep.subr.mxu0 0.0
        %1869 = vmatpush1.xpose.msra.mxu0 0.0
        %1870 = vmatprep.subr.mxu0 0.0
        %1871 = vmatpush1.xpose.msra.mxu0 0.0
        %1872 = vmatprep.subr.mxu0 0.0
        %1873 = vmatpush1.xpose.msra.mxu0 0.0
        %1874 = vmatprep.subr.mxu0 0.0
        %1875 = vmatpush1.xpose.msra.mxu0 0.0
        %1876 = vmatprep.subr.mxu0 0.0
        %1877 = vmatpush1.xpose.msra.mxu0 0.0
        %1878 = vmatprep.subr.mxu0 0.0
        %1879 = vmatpush1.xpose.msra.mxu0 0.0
        %1880 = vmatprep.subr.mxu0 0.0
        %1881 = vmatpush1.xpose.msra.mxu0 0.0
        %1882 = vmatprep.subr.mxu0 0.0
        %1883 = vmatpush1.xpose.msra.mxu0 0.0
        %1884 = vmatprep.subr.mxu0 0.0
        %1885 = vmatpush1.xpose.msra.mxu0 0.0
        %1886 = vmatprep.subr.mxu0 0.0
        %1887 = vmatpush1.xpose.msra.mxu0 0.0
        %1888 = vmatprep.subr.mxu0 0.0
        %1889 = vmatpush1.xpose.msra.mxu0 0.0
        %1890 = vmatprep.subr.mxu0 0.0
        %1891 = vmatpush1.xpose.msra.mxu0 0.0
        %1892 = vmatprep.subr.mxu0 0.0
        %1893 = vmatpush1.xpose.msra.mxu0 0.0
        %1894 = vmatprep.subr.mxu0 0.0
        %1895 = vmatpush1.xpose.msra.mxu0 0.0
        %1896 = vmatprep.subr.mxu0 0.0
        %1897 = vmatpush1.xpose.msra.mxu0 0.0
        %1898 = vmatprep.subr.mxu0 0.0
        %1899 = vmatpush1.xpose.msra.mxu0 0.0
        %1900 = vmatprep.mubr.f32.mxu0 0.0
        %1901 = vmatmul.mubr.f32.gmra.mrb[0].mxu0 %v541
        %v1902 = vpop.f32.mrb[0].mxu0
        %v1903 = vadd.f32 0.0, %v1902
        %v1904 = vpop.f32.mrb[0].mxu0
        %1905 = vmatprep.mubr.f32.mxu0 0.0
        %1906 = vmatmul.mubr.f32.gmra.mrb[0].mxu0 %v547
        %v1907 = vpop.f32.mrb[0].mxu0
        %v1908 = vadd.f32 0.0, %v1907
        %v1909 = vpop.f32.mrb[0].mxu0
        %1910 = vdwg.mxu0
        %1911 = vmatprep.subr.mxu0 0.0
        %1912 = vmatpush1.xpose.msra.mxu0 %v551
        %1913 = vmatprep.subr.mxu0 0.0
        %1914 = vmatpush1.xpose.msra.mxu0 %v557
        %1915 = vmatprep.subr.mxu0 0.0
        %1916 = vmatpush1.xpose.msra.mxu0 0.0
        %1917 = vmatprep.subr.mxu0 0.0
        %1918 = vmatpush1.xpose.msra.mxu0 0.0
        %1919 = vmatprep.subr.mxu0 0.0
        %1920 = vmatpush1.xpose.msra.mxu0 0.0
        %1921 = vmatprep.subr.mxu0 0.0
        %1922 = vmatpush1.xpose.msra.mxu0 0.0
        %1923 = vmatprep.subr.mxu0 0.0
        %1924 = vmatpush1.xpose.msra.mxu0 0.0
        %1925 = vmatprep.subr.mxu0 0.0
        %1926 = vmatpush1.xpose.msra.mxu0 0.0
        %1927 = vmatprep.subr.mxu0 0.0
        %1928 = vmatpush1.xpose.msra.mxu0 0.0
        %1929 = vmatprep.subr.mxu0 0.0
        %1930 = vmatpush1.xpose.msra.mxu0 0.0
        %1931 = vmatprep.subr.mxu0 0.0
        %1932 = vmatpush1.xpose.msra.mxu0 0.0
        %1933 = vmatprep.subr.mxu0 0.0
        %1934 = vmatpush1.xpose.msra.mxu0 0.0
        %1935 = vmatprep.subr.mxu0 0.0
        %1936 = vmatpush1.xpose.msra.mxu0 0.0
        %1937 = vmatprep.subr.mxu0 0.0
        %1938 = vmatpush1.xpose.msra.mxu0 0.0
        %1939 = vmatprep.subr.mxu0 0.0
        %1940 = vmatpush1.xpose.msra.mxu0 0.0
        %1941 = vmatprep.subr.mxu0 0.0
        %1942 = vmatpush1.xpose.msra.mxu0 0.0
        %1943 = vmatprep.subr.mxu0 0.0
        %1944 = vmatpush1.xpose.msra.mxu0 0.0
        %1945 = vmatprep.subr.mxu0 0.0
        %1946 = vmatpush1.xpose.msra.mxu0 0.0
        %1947 = vmatprep.subr.mxu0 0.0
        %1948 = vmatpush1.xpose.msra.mxu0 0.0
        %1949 = vmatprep.subr.mxu0 0.0
        %1950 = vmatpush1.xpose.msra.mxu0 0.0
        %1951 = vmatprep.subr.mxu0 0.0
        %1952 = vmatpush1.xpose.msra.mxu0 0.0
        %1953 = vmatprep.subr.mxu0 0.0
        %1954 = vmatpush1.xpose.msra.mxu0 0.0
        %1955 = vmatprep.subr.mxu0 0.0
        %1956 = vmatpush1.xpose.msra.mxu0 0.0
        %1957 = vmatprep.subr.mxu0 0.0
        %1958 = vmatpush1.xpose.msra.mxu0 0.0
        %1959 = vmatprep.subr.mxu0 0.0
        %1960 = vmatpush1.xpose.msra.mxu0 0.0
        %1961 = vmatprep.subr.mxu0 0.0
        %1962 = vmatpush1.xpose.msra.mxu0 0.0
        %1963 = vmatprep.subr.mxu0 0.0
        %1964 = vmatpush1.xpose.msra.mxu0 0.0
        %1965 = vmatprep.subr.mxu0 0.0
        %1966 = vmatpush1.xpose.msra.mxu0 0.0
        %1967 = vmatprep.subr.mxu0 0.0
        %1968 = vmatpush1.xpose.msra.mxu0 0.0
        %1969 = vmatprep.subr.mxu0 0.0
        %1970 = vmatpush1.xpose.msra.mxu0 0.0
        %1971 = vmatprep.subr.mxu0 0.0
        %1972 = vmatpush1.xpose.msra.mxu0 0.0
        %1973 = vmatprep.subr.mxu0 0.0
        %1974 = vmatpush1.xpose.msra.mxu0 0.0
        %1975 = vmatprep.mubr.f32.mxu0 0.0
        %1976 = vmatmul.mubr.f32.gmra.mrb[0].mxu0 %v553
        %v1977 = vpop.f32.mrb[0].mxu0
        %v1978 = vadd.f32 0.0, %v1977
        %v1979 = vpop.f32.mrb[0].mxu0
        %1980 = vmatprep.mubr.f32.mxu0 0.0
        %1981 = vmatmul.mubr.f32.gmra.mrb[0].mxu0 %v559
        %v1982 = vpop.f32.mrb[0].mxu0
        %v1983 = vadd.f32 0.0, %v1982
        %v1984 = vpop.f32.mrb[0].mxu0
        %1985 = vdwg.mxu0
        %v1986 = vmul.f32 %v853, 0.088388346
        %v1987 = vmul.f32 %v858, 0.088388346
        %v1988 = vmul.f32 %v928, 0.088388346
        %v1989 = vmul.f32 %v933, 0.088388346
        %v1990 = vmul.f32 %v1003, 0.088388346
        %v1991 = vmul.f32 %v1008, 0.088388346
        %v1992 = vmul.f32 %v1078, 0.088388346
        %v1993 = vmul.f32 %v1083, 0.088388346
        %v1994 = vmul.f32 %v1153, 0.088388346
        %v1995 = vmul.f32 %v1158, 0.088388346
        %v1996 = vmul.f32 %v1228, 0.088388346
        %v1997 = vmul.f32 %v1233, 0.088388346
        %v1998 = vmul.f32 %v1303, 0.088388346
        %v1999 = vmul.f32 %v1308, 0.088388346
        %v2000 = vmul.f32 %v1378, 0.088388346
        %v2001 = vmul.f32 %v1383, 0.088388346
        %v2002 = vmul.f32 %v1453, 0.088388346
        %v2003 = vmul.f32 %v1458, 0.088388346
        %v2004 = vmul.f32 %v1528, 0.088388346
        %v2005 = vmul.f32 %v1533, 0.088388346
        %v2006 = vmul.f32 %v1603, 0.088388346
        %v2007 = vmul.f32 %v1608, 0.088388346
        %v2008 = vmul.f32 %v1678, 0.088388346
        %v2009 = vmul.f32 %v1683, 0.088388346
        %v2010 = vmul.f32 %v1753, 0.088388346
        %v2011 = vmul.f32 %v1758, 0.088388346
        %v2012 = vmul.f32 %v1828, 0.088388346
        %v2013 = vmul.f32 %v1833, 0.088388346
        %v2014 = vmul.f32 %v1903, 0.088388346
        %v2015 = vmul.f32 %v1908, 0.088388346
        %v2016 = vmul.f32 %v1978, 0.088388346
        %v2017 = vmul.f32 %v1983, 0.088388346
        %v2018 = vlaneseq
        %v2019 = vshrl.u32 %v2018, 7
        %v2020 = vadd.s32 %v2019, 8
        %v2021 = vlaneseq
        %v2022 = vand.u32 %v2021, 127
        %vm2023 = vcmp.le.s32.totalorder %v2022, %v2019
        %vm2024 = vcmp.le.s32.totalorder %v2022, %v2020
        %v2025 = vsel %vm2023, 1, 0
        %v2026 = vsel %vm2024, 1, 0
        %vm2027 = vcmp.eq.s32.totalorder %v2025, 1
        %vm2028 = vcmp.eq.s32.totalorder %v2026, 1
        %v2029 = vsel %vm2027, %v1986, -inf
        %v2030 = vsel %vm2028, %v1987, -inf
        %v2031 = vsel %vm2027, %v1988, -inf
        %v2032 = vsel %vm2028, %v1989, -inf
        %v2033 = vsel %vm2027, %v1990, -inf
        %v2034 = vsel %vm2028, %v1991, -inf
        %v2035 = vsel %vm2027, %v1992, -inf
        %v2036 = vsel %vm2028, %v1993, -inf
        %v2037 = vsel %vm2027, %v1994, -inf
        %v2038 = vsel %vm2028, %v1995, -inf
        %v2039 = vsel %vm2027, %v1996, -inf
        %v2040 = vsel %vm2028, %v1997, -inf
        %v2041 = vsel %vm2027, %v1998, -inf
        %v2042 = vsel %vm2028, %v1999, -inf
        %v2043 = vsel %vm2027, %v2000, -inf
        %v2044 = vsel %vm2028, %v2001, -inf
        %v2045 = vsel %vm2027, %v2002, -inf
        %v2046 = vsel %vm2028, %v2003, -inf
        %v2047 = vsel %vm2027, %v2004, -inf
        %v2048 = vsel %vm2028, %v2005, -inf
        %v2049 = vsel %vm2027, %v2006, -inf
        %v2050 = vsel %vm2028, %v2007, -inf
        %v2051 = vsel %vm2027, %v2008, -inf
        %v2052 = vsel %vm2028, %v2009, -inf
        %v2053 = vsel %vm2027, %v2010, -inf
        %v2054 = vsel %vm2028, %v2011, -inf
        %v2055 = vsel %vm2027, %v2012, -inf
        %v2056 = vsel %vm2028, %v2013, -inf
        %v2057 = vsel %vm2027, %v2014, -inf
        %v2058 = vsel %vm2028, %v2015, -inf
        %v2059 = vsel %vm2027, %v2016, -inf
        %v2060 = vsel %vm2028, %v2017, -inf
        %vm2061 = vcmask 130048
        %v2062 = vsel %vm2061, %v2029, -inf
        %2063 = vmax.xlane.f32.xlu0 %v2062
        %v2064 = vpop.xlane.xlu0 %2063
        %v2065 = vsel %vm2061, %v2030, -inf
        %2066 = vmax.xlane.f32.xlu0 %v2065
        %v2067 = vpop.xlane.xlu0 %2066
        %v2068 = vsel %vm2061, %v2031, -inf
        %2069 = vmax.xlane.f32.xlu0 %v2068
        %v2070 = vpop.xlane.xlu0 %2069
        %v2071 = vsel %vm2061, %v2032, -inf
        %2072 = vmax.xlane.f32.xlu0 %v2071
        %v2073 = vpop.xlane.xlu0 %2072
        %v2074 = vsel %vm2061, %v2033, -inf
        %2075 = vmax.xlane.f32.xlu0 %v2074
        %v2076 = vpop.xlane.xlu0 %2075
        %v2077 = vsel %vm2061, %v2034, -inf
        %2078 = vmax.xlane.f32.xlu0 %v2077
        %v2079 = vpop.xlane.xlu0 %2078
        %v2080 = vsel %vm2061, %v2035, -inf
        %2081 = vmax.xlane.f32.xlu0 %v2080
        %v2082 = vpop.xlane.xlu0 %2081
        %v2083 = vsel %vm2061, %v2036, -inf
        %2084 = vmax.xlane.f32.xlu0 %v2083
        %v2085 = vpop.xlane.xlu0 %2084
        %v2086 = vsel %vm2061, %v2037, -inf
        %2087 = vmax.xlane.f32.xlu0 %v2086
        %v2088 = vpop.xlane.xlu0 %2087
        %v2089 = vsel %vm2061, %v2038, -inf
        %2090 = vmax.xlane.f32.xlu0 %v2089
        %v2091 = vpop.xlane.xlu0 %2090
        %v2092 = vsel %vm2061, %v2039, -inf
        %2093 = vmax.xlane.f32.xlu0 %v2092
        %v2094 = vpop.xlane.xlu0 %2093
        %v2095 = vsel %vm2061, %v2040, -inf
        %2096 = vmax.xlane.f32.xlu0 %v2095
        %v2097 = vpop.xlane.xlu0 %2096
        %v2098 = vsel %vm2061, %v2041, -inf
        %2099 = vmax.xlane.f32.xlu0 %v2098
        %v2100 = vpop.xlane.xlu0 %2099
        %v2101 = vsel %vm2061, %v2042, -inf
        %2102 = vmax.xlane.f32.xlu0 %v2101
        %v2103 = vpop.xlane.xlu0 %2102
        %v2104 = vsel %vm2061, %v2043, -inf
        %2105 = vmax.xlane.f32.xlu0 %v2104
        %v2106 = vpop.xlane.xlu0 %2105
        %v2107 = vsel %vm2061, %v2044, -inf
        %2108 = vmax.xlane.f32.xlu0 %v2107
        %v2109 = vpop.xlane.xlu0 %2108
        %v2110 = vsel %vm2061, %v2045, -inf
        %2111 = vmax.xlane.f32.xlu0 %v2110
        %v2112 = vpop.xlane.xlu0 %2111
        %v2113 = vsel %vm2061, %v2046, -inf
        %2114 = vmax.xlane.f32.xlu0 %v2113
        %v2115 = vpop.xlane.xlu0 %2114
        %v2116 = vsel %vm2061, %v2047, -inf
        %2117 = vmax.xlane.f32.xlu0 %v2116
        %v2118 = vpop.xlane.xlu0 %2117
        %v2119 = vsel %vm2061, %v2048, -inf
        %2120 = vmax.xlane.f32.xlu0 %v2119
        %v2121 = vpop.xlane.xlu0 %2120
        %v2122 = vsel %vm2061, %v2049, -inf
        %2123 = vmax.xlane.f32.xlu0 %v2122
        %v2124 = vpop.xlane.xlu0 %2123
        %v2125 = vsel %vm2061, %v2050, -inf
        %2126 = vmax.xlane.f32.xlu0 %v2125
        %v2127 = vpop.xlane.xlu0 %2126
        %v2128 = vsel %vm2061, %v2051, -inf
        %2129 = vmax.xlane.f32.xlu0 %v2128
        %v2130 = vpop.xlane.xlu0 %2129
        %v2131 = vsel %vm2061, %v2052, -inf
        %2132 = vmax.xlane.f32.xlu0 %v2131
        %v2133 = vpop.xlane.xlu0 %2132
        %v2134 = vsel %vm2061, %v2053, -inf
        %2135 = vmax.xlane.f32.xlu0 %v2134
        %v2136 = vpop.xlane.xlu0 %2135
        %v2137 = vsel %vm2061, %v2054, -inf
        %2138 = vmax.xlane.f32.xlu0 %v2137
        %v2139 = vpop.xlane.xlu0 %2138
        %v2140 = vsel %vm2061, %v2055, -inf
        %2141 = vmax.xlane.f32.xlu0 %v2140
        %v2142 = vpop.xlane.xlu0 %2141
        %v2143 = vsel %vm2061, %v2056, -inf
        %2144 = vmax.xlane.f32.xlu0 %v2143
        %v2145 = vpop.xlane.xlu0 %2144
        %v2146 = vsel %vm2061, %v2057, -inf
        %2147 = vmax.xlane.f32.xlu0 %v2146
        %v2148 = vpop.xlane.xlu0 %2147
        %v2149 = vsel %vm2061, %v2058, -inf
        %2150 = vmax.xlane.f32.xlu0 %v2149
        %v2151 = vpop.xlane.xlu0 %2150
        %v2152 = vsel %vm2061, %v2059, -inf
        %2153 = vmax.xlane.f32.xlu0 %v2152
        %v2154 = vpop.xlane.xlu0 %2153
        %v2155 = vsel %vm2061, %v2060, -inf
        %2156 = vmax.xlane.f32.xlu0 %v2155
        %v2157 = vpop.xlane.xlu0 %2156
        %v2158 = vsub.f32 %v2029, %v2064
        %v2159 = vsub.f32 %v2030, %v2067
        %v2160 = vsub.f32 %v2031, %v2070
        %v2161 = vsub.f32 %v2032, %v2073
        %v2162 = vsub.f32 %v2033, %v2076
        %v2163 = vsub.f32 %v2034, %v2079
        %v2164 = vsub.f32 %v2035, %v2082
        %v2165 = vsub.f32 %v2036, %v2085
        %v2166 = vsub.f32 %v2037, %v2088
        %v2167 = vsub.f32 %v2038, %v2091
        %v2168 = vsub.f32 %v2039, %v2094
        %v2169 = vsub.f32 %v2040, %v2097
        %v2170 = vsub.f32 %v2041, %v2100
        %v2171 = vsub.f32 %v2042, %v2103
        %v2172 = vsub.f32 %v2043, %v2106
        %v2173 = vsub.f32 %v2044, %v2109
        %v2174 = vsub.f32 %v2045, %v2112
        %v2175 = vsub.f32 %v2046, %v2115
        %v2176 = vsub.f32 %v2047, %v2118
        %v2177 = vsub.f32 %v2048, %v2121
        %v2178 = vsub.f32 %v2049, %v2124
        %v2179 = vsub.f32 %v2050, %v2127
        %v2180 = vsub.f32 %v2051, %v2130
        %v2181 = vsub.f32 %v2052, %v2133
        %v2182 = vsub.f32 %v2053, %v2136
        %v2183 = vsub.f32 %v2054, %v2139
        %v2184 = vsub.f32 %v2055, %v2142
        %v2185 = vsub.f32 %v2056, %v2145
        %v2186 = vsub.f32 %v2057, %v2148
        %v2187 = vsub.f32 %v2058, %v2151
        %v2188 = vsub.f32 %v2059, %v2154
        %v2189 = vsub.f32 %v2060, %v2157
        %v2190 = vmul.f32 %v2158, 1.442695
        %v2191 = vpow.pop %v2190
        %v2192 = vmul.f32 %v2159, 1.442695
        %v2193 = vpow.pop %v2192
        %v2194 = vmul.f32 %v2160, 1.442695
        %v2195 = vpow.pop %v2194
        %v2196 = vmul.f32 %v2161, 1.442695
        %v2197 = vpow.pop %v2196
        %v2198 = vmul.f32 %v2162, 1.442695
        %v2199 = vpow.pop %v2198
        %v2200 = vmul.f32 %v2163, 1.442695
        %v2201 = vpow.pop %v2200
        %v2202 = vmul.f32 %v2164, 1.442695
        %v2203 = vpow.pop %v2202
        %v2204 = vmul.f32 %v2165, 1.442695
        %v2205 = vpow.pop %v2204
        %v2206 = vmul.f32 %v2166, 1.442695
        %v2207 = vpow.pop %v2206
        %v2208 = vmul.f32 %v2167, 1.442695
        %v2209 = vpow.pop %v2208
        %v2210 = vmul.f32 %v2168, 1.442695
        %v2211 = vpow.pop %v2210
        %v2212 = vmul.f32 %v2169, 1.442695
        %v2213 = vpow.pop %v2212
        %v2214 = vmul.f32 %v2170, 1.442695
        %v2215 = vpow.pop %v2214
        %v2216 = vmul.f32 %v2171, 1.442695
        %v2217 = vpow.pop %v2216
        %v2218 = vmul.f32 %v2172, 1.442695
        %v2219 = vpow.pop %v2218
        %v2220 = vmul.f32 %v2173, 1.442695
        %v2221 = vpow.pop %v2220
        %v2222 = vmul.f32 %v2174, 1.442695
        %v2223 = vpow.pop %v2222
        %v2224 = vmul.f32 %v2175, 1.442695
        %v2225 = vpow.pop %v2224
        %v2226 = vmul.f32 %v2176, 1.442695
        %v2227 = vpow.pop %v2226
        %v2228 = vmul.f32 %v2177, 1.442695
        %v2229 = vpow.pop %v2228
        %v2230 = vmul.f32 %v2178, 1.442695
        %v2231 = vpow.pop %v2230
        %v2232 = vmul.f32 %v2179, 1.442695
        %v2233 = vpow.pop %v2232
        %v2234 = vmul.f32 %v2180, 1.442695
        %v2235 = vpow.pop %v2234
        %v2236 = vmul.f32 %v2181, 1.442695
        %v2237 = vpow.pop %v2236
        %v2238 = vmul.f32 %v2182, 1.442695
        %v2239 = vpow.pop %v2238
        %v2240 = vmul.f32 %v2183, 1.442695
        %v2241 = vpow.pop %v2240
        %v2242 = vmul.f32 %v2184, 1.442695
        %v2243 = vpow.pop %v2242
        %v2244 = vmul.f32 %v2185, 1.442695
        %v2245 = vpow.pop %v2244
        %v2246 = vmul.f32 %v2186, 1.442695
        %v2247 = vpow.pop %v2246
        %v2248 = vmul.f32 %v2187, 1.442695
        %v2249 = vpow.pop %v2248
        %v2250 = vmul.f32 %v2188, 1.442695
        %v2251 = vpow.pop %v2250
        %v2252 = vmul.f32 %v2189, 1.442695
        %v2253 = vpow.pop %v2252
        %v2254 = vsel %vm2061, %v2191, 0.0
        %2255 = vadd.xlane.f32.xlu0 %v2254
        %v2256 = vpop.xlane.xlu0 %2255
        %v2257 = vsel %vm2061, %v2193, 0.0
        %2258 = vadd.xlane.f32.xlu0 %v2257
        %v2259 = vpop.xlane.xlu0 %2258
        %v2260 = vsel %vm2061, %v2195, 0.0
        %2261 = vadd.xlane.f32.xlu0 %v2260
        %v2262 = vpop.xlane.xlu0 %2261
        %v2263 = vsel %vm2061, %v2197, 0.0
        %2264 = vadd.xlane.f32.xlu0 %v2263
        %v2265 = vpop.xlane.xlu0 %2264
        %v2266 = vsel %vm2061, %v2199, 0.0
        %2267 = vadd.xlane.f32.xlu0 %v2266
        %v2268 = vpop.xlane.xlu0 %2267
        %v2269 = vsel %vm2061, %v2201, 0.0
        %2270 = vadd.xlane.f32.xlu0 %v2269
        %v2271 = vpop.xlane.xlu0 %2270
        %v2272 = vsel %vm2061, %v2203, 0.0
        %2273 = vadd.xlane.f32.xlu0 %v2272
        %v2274 = vpop.xlane.xlu0 %2273
        %v2275 = vsel %vm2061, %v2205, 0.0
        %2276 = vadd.xlane.f32.xlu0 %v2275
        %v2277 = vpop.xlane.xlu0 %2276
        %v2278 = vsel %vm2061, %v2207, 0.0
        %2279 = vadd.xlane.f32.xlu0 %v2278
        %v2280 = vpop.xlane.xlu0 %2279
        %v2281 = vsel %vm2061, %v2209, 0.0
        %2282 = vadd.xlane.f32.xlu0 %v2281
        %v2283 = vpop.xlane.xlu0 %2282
        %v2284 = vsel %vm2061, %v2211, 0.0
        %2285 = vadd.xlane.f32.xlu0 %v2284
        %v2286 = vpop.xlane.xlu0 %2285
        %v2287 = vsel %vm2061, %v2213, 0.0
        %2288 = vadd.xlane.f32.xlu0 %v2287
        %v2289 = vpop.xlane.xlu0 %2288
        %v2290 = vsel %vm2061, %v2215, 0.0
        %2291 = vadd.xlane.f32.xlu0 %v2290
        %v2292 = vpop.xlane.xlu0 %2291
        %v2293 = vsel %vm2061, %v2217, 0.0
        %2294 = vadd.xlane.f32.xlu0 %v2293
        %v2295 = vpop.xlane.xlu0 %2294
        %v2296 = vsel %vm2061, %v2219, 0.0
        %2297 = vadd.xlane.f32.xlu0 %v2296
        %v2298 = vpop.xlane.xlu0 %2297
        %v2299 = vsel %vm2061, %v2221, 0.0
        %2300 = vadd.xlane.f32.xlu0 %v2299
        %v2301 = vpop.xlane.xlu0 %2300
        %v2302 = vsel %vm2061, %v2223, 0.0
        %2303 = vadd.xlane.f32.xlu0 %v2302
        %v2304 = vpop.xlane.xlu0 %2303
        %v2305 = vsel %vm2061, %v2225, 0.0
        %2306 = vadd.xlane.f32.xlu0 %v2305
        %v2307 = vpop.xlane.xlu0 %2306
        %v2308 = vsel %vm2061, %v2227, 0.0
        %2309 = vadd.xlane.f32.xlu0 %v2308
        %v2310 = vpop.xlane.xlu0 %2309
        %v2311 = vsel %vm2061, %v2229, 0.0
        %2312 = vadd.xlane.f32.xlu0 %v2311
        %v2313 = vpop.xlane.xlu0 %2312
        %v2314 = vsel %vm2061, %v2231, 0.0
        %2315 = vadd.xlane.f32.xlu0 %v2314
        %v2316 = vpop.xlane.xlu0 %2315
        %v2317 = vsel %vm2061, %v2233, 0.0
        %2318 = vadd.xlane.f32.xlu0 %v2317
        %v2319 = vpop.xlane.xlu0 %2318
        %v2320 = vsel %vm2061, %v2235, 0.0
        %2321 = vadd.xlane.f32.xlu0 %v2320
        %v2322 = vpop.xlane.xlu0 %2321
        %v2323 = vsel %vm2061, %v2237, 0.0
        %2324 = vadd.xlane.f32.xlu0 %v2323
        %v2325 = vpop.xlane.xlu0 %2324
        %v2326 = vsel %vm2061, %v2239, 0.0
        %2327 = vadd.xlane.f32.xlu0 %v2326
        %v2328 = vpop.xlane.xlu0 %2327
        %v2329 = vsel %vm2061, %v2241, 0.0
        %2330 = vadd.xlane.f32.xlu0 %v2329
        %v2331 = vpop.xlane.xlu0 %2330
        %v2332 = vsel %vm2061, %v2243, 0.0
        %2333 = vadd.xlane.f32.xlu0 %v2332
        %v2334 = vpop.xlane.xlu0 %2333
        %v2335 = vsel %vm2061, %v2245, 0.0
        %2336 = vadd.xlane.f32.xlu0 %v2335
        %v2337 = vpop.xlane.xlu0 %2336
        %v2338 = vsel %vm2061, %v2247, 0.0
        %2339 = vadd.xlane.f32.xlu0 %v2338
        %v2340 = vpop.xlane.xlu0 %2339
        %v2341 = vsel %vm2061, %v2249, 0.0
        %2342 = vadd.xlane.f32.xlu0 %v2341
        %v2343 = vpop.xlane.xlu0 %2342
        %v2344 = vsel %vm2061, %v2251, 0.0
        %2345 = vadd.xlane.f32.xlu0 %v2344
        %v2346 = vpop.xlane.xlu0 %2345
        %v2347 = vsel %vm2061, %v2253, 0.0
        %2348 = vadd.xlane.f32.xlu0 %v2347
        %v2349 = vpop.xlane.xlu0 %2348
        %v2350 = vrcp.pop %v2256
        %v2351 = vmul.f32 %v2191, %v2350
        %v2352 = vrcp.pop %v2259
        %v2353 = vmul.f32 %v2193, %v2352
        %v2354 = vrcp.pop %v2262
        %v2355 = vmul.f32 %v2195, %v2354
        %v2356 = vrcp.pop %v2265
        %v2357 = vmul.f32 %v2197, %v2356
        %v2358 = vrcp.pop %v2268
        %v2359 = vmul.f32 %v2199, %v2358
        %v2360 = vrcp.pop %v2271
        %v2361 = vmul.f32 %v2201, %v2360
        %v2362 = vrcp.pop %v2274
        %v2363 = vmul.f32 %v2203, %v2362
        %v2364 = vrcp.pop %v2277
        %v2365 = vmul.f32 %v2205, %v2364
        %v2366 = vrcp.pop %v2280
        %v2367 = vmul.f32 %v2207, %v2366
        %v2368 = vrcp.pop %v2283
        %v2369 = vmul.f32 %v2209, %v2368
        %v2370 = vrcp.pop %v2286
        %v2371 = vmul.f32 %v2211, %v2370
        %v2372 = vrcp.pop %v2289
        %v2373 = vmul.f32 %v2213, %v2372
        %v2374 = vrcp.pop %v2292
        %v2375 = vmul.f32 %v2215, %v2374
        %v2376 = vrcp.pop %v2295
        %v2377 = vmul.f32 %v2217, %v2376
        %v2378 = vrcp.pop %v2298
        %v2379 = vmul.f32 %v2219, %v2378
        %v2380 = vrcp.pop %v2301
        %v2381 = vmul.f32 %v2221, %v2380
        %v2382 = vrcp.pop %v2304
        %v2383 = vmul.f32 %v2223, %v2382
        %v2384 = vrcp.pop %v2307
        %v2385 = vmul.f32 %v2225, %v2384
        %v2386 = vrcp.pop %v2310
        %v2387 = vmul.f32 %v2227, %v2386
        %v2388 = vrcp.pop %v2313
        %v2389 = vmul.f32 %v2229, %v2388
        %v2390 = vrcp.pop %v2316
        %v2391 = vmul.f32 %v2231, %v2390
        %v2392 = vrcp.pop %v2319
        %v2393 = vmul.f32 %v2233, %v2392
        %v2394 = vrcp.pop %v2322
        %v2395 = vmul.f32 %v2235, %v2394
        %v2396 = vrcp.pop %v2325
        %v2397 = vmul.f32 %v2237, %v2396
        %v2398 = vrcp.pop %v2328
        %v2399 = vmul.f32 %v2239, %v2398
        %v2400 = vrcp.pop %v2331
        %v2401 = vmul.f32 %v2241, %v2400
        %v2402 = vrcp.pop %v2334
        %v2403 = vmul.f32 %v2243, %v2402
        %v2404 = vrcp.pop %v2337
        %v2405 = vmul.f32 %v2245, %v2404
        %v2406 = vrcp.pop %v2340
        %v2407 = vmul.f32 %v2247, %v2406
        %v2408 = vrcp.pop %v2343
        %v2409 = vmul.f32 %v2249, %v2408
        %v2410 = vrcp.pop %v2346
        %v2411 = vmul.f32 %v2251, %v2410
        %v2412 = vrcp.pop %v2349
        %v2413 = vmul.f32 %v2253, %v2412
        %v2415 = vsel %vm2061, %v2351, 0
        %v2418 = vsel %vm2061, %v2353, 0
        %2420 = vmatprep.subr.mxu0 0.0
        %2421 = vmatpush1.msra.mxu0 %v628
        %2422 = vmatprep.subr.mxu0 0.0
        %2423 = vmatpush1.msra.mxu0 %v633
        %2424 = vmatprep.subr.mxu0 0.0
        %2425 = vmatpush1.msra.mxu0 0.0
        %2426 = vmatprep.subr.mxu0 0.0
        %2427 = vmatpush1.msra.mxu0 0.0
        %2428 = vmatprep.subr.mxu0 0.0
        %2429 = vmatpush1.msra.mxu0 0.0
        %2430 = vmatprep.subr.mxu0 0.0
        %2431 = vmatpush1.msra.mxu0 0.0
        %2432 = vmatprep.subr.mxu0 0.0
        %2433 = vmatpush1.msra.mxu0 0.0
        %2434 = vmatprep.subr.mxu0 0.0
        %2435 = vmatpush1.msra.mxu0 0.0
        %2436 = vmatprep.subr.mxu0 0.0
        %2437 = vmatpush1.msra.mxu0 0.0
        %2438 = vmatprep.subr.mxu0 0.0
        %2439 = vmatpush1.msra.mxu0 0.0
        %2440 = vmatprep.subr.mxu0 0.0
        %2441 = vmatpush1.msra.mxu0 0.0
        %2442 = vmatprep.subr.mxu0 0.0
        %2443 = vmatpush1.msra.mxu0 0.0
        %2444 = vmatprep.subr.mxu0 0.0
        %2445 = vmatpush1.msra.mxu0 0.0
        %2446 = vmatprep.subr.mxu0 0.0
        %2447 = vmatpush1.msra.mxu0 0.0
        %2448 = vmatprep.subr.mxu0 0.0
        %2449 = vmatpush1.msra.mxu0 0.0
        %2450 = vmatprep.subr.mxu0 0.0
        %2451 = vmatpush1.msra.mxu0 0.0
        %2452 = vmatprep.subr.mxu0 0.0
        %2453 = vmatpush1.msra.mxu0 0.0
        %2454 = vmatprep.subr.mxu0 0.0
        %2455 = vmatpush1.msra.mxu0 0.0
        %2456 = vmatprep.subr.mxu0 0.0
        %2457 = vmatpush1.msra.mxu0 0.0
        %2458 = vmatprep.subr.mxu0 0.0
        %2459 = vmatpush1.msra.mxu0 0.0
        %2460 = vmatprep.subr.mxu0 0.0
        %2461 = vmatpush1.msra.mxu0 0.0
        %2462 = vmatprep.subr.mxu0 0.0
        %2463 = vmatpush1.msra.mxu0 0.0
        %2464 = vmatprep.subr.mxu0 0.0
        %2465 = vmatpush1.msra.mxu0 0.0
        %2466 = vmatprep.subr.mxu0 0.0
        %2467 = vmatpush1.msra.mxu0 0.0
        %2468 = vmatprep.subr.mxu0 0.0
        %2469 = vmatpush1.msra.mxu0 0.0
        %2470 = vmatprep.subr.mxu0 0.0
        %2471 = vmatpush1.msra.mxu0 0.0
        %2472 = vmatprep.subr.mxu0 0.0
        %2473 = vmatpush1.msra.mxu0 0.0
        %2474 = vmatprep.subr.mxu0 0.0
        %2475 = vmatpush1.msra.mxu0 0.0
        %2476 = vmatprep.subr.mxu0 0.0
        %2477 = vmatpush1.msra.mxu0 0.0
        %2478 = vmatprep.subr.mxu0 0.0
        %2479 = vmatpush1.msra.mxu0 0.0
        %2480 = vmatprep.subr.mxu0 0.0
        %2481 = vmatpush1.msra.mxu0 0.0
        %2482 = vmatprep.subr.mxu0 0.0
        %2483 = vmatpush1.msra.mxu0 0.0
        %2484 = vmatprep.mubr.f32.mxu0 0.0
        %2485 = vmatmul.mubr.f32.gmra.mrb[0].mxu0 %v2415
        %v2486 = vpop.f32.mrb[0].mxu0
        %v2487 = vadd.f32 0.0, %v2486
        %v2488 = vpop.f32.mrb[0].mxu0
        %2489 = vmatprep.mubr.f32.mxu0 0.0
        %2490 = vmatmul.mubr.f32.gmra.mrb[0].mxu0 %v2418
        %v2491 = vpop.f32.mrb[0].mxu0
        %v2492 = vadd.f32 0.0, %v2491
        %v2493 = vpop.f32.mrb[0].mxu0
        %2494 = vdwg.mxu0
        %v2496 = vsel %vm2061, %v2355, 0
        %v2499 = vsel %vm2061, %v2357, 0
        %2501 = vmatprep.subr.mxu0 0.0
        %2502 = vmatpush1.msra.mxu0 %v638
        %2503 = vmatprep.subr.mxu0 0.0
        %2504 = vmatpush1.msra.mxu0 %v643
        %2505 = vmatprep.subr.mxu0 0.0
        %2506 = vmatpush1.msra.mxu0 0.0
        %2507 = vmatprep.subr.mxu0 0.0
        %2508 = vmatpush1.msra.mxu0 0.0
        %2509 = vmatprep.subr.mxu0 0.0
        %2510 = vmatpush1.msra.mxu0 0.0
        %2511 = vmatprep.subr.mxu0 0.0
        %2512 = vmatpush1.msra.mxu0 0.0
        %2513 = vmatprep.subr.mxu0 0.0
        %2514 = vmatpush1.msra.mxu0 0.0
        %2515 = vmatprep.subr.mxu0 0.0
        %2516 = vmatpush1.msra.mxu0 0.0
        %2517 = vmatprep.subr.mxu0 0.0
        %2518 = vmatpush1.msra.mxu0 0.0
        %2519 = vmatprep.subr.mxu0 0.0
        %2520 = vmatpush1.msra.mxu0 0.0
        %2521 = vmatprep.subr.mxu0 0.0
        %2522 = vmatpush1.msra.mxu0 0.0
        %2523 = vmatprep.subr.mxu0 0.0
        %2524 = vmatpush1.msra.mxu0 0.0
        %2525 = vmatprep.subr.mxu0 0.0
        %2526 = vmatpush1.msra.mxu0 0.0
        %2527 = vmatprep.subr.mxu0 0.0
        %2528 = vmatpush1.msra.mxu0 0.0
        %2529 = vmatprep.subr.mxu0 0.0
        %2530 = vmatpush1.msra.mxu0 0.0
        %2531 = vmatprep.subr.mxu0 0.0
        %2532 = vmatpush1.msra.mxu0 0.0
        %2533 = vmatprep.subr.mxu0 0.0
        %2534 = vmatpush1.msra.mxu0 0.0
        %2535 = vmatprep.subr.mxu0 0.0
        %2536 = vmatpush1.msra.mxu0 0.0
        %2537 = vmatprep.subr.mxu0 0.0
        %2538 = vmatpush1.msra.mxu0 0.0
        %2539 = vmatprep.subr.mxu0 0.0
        %2540 = vmatpush1.msra.mxu0 0.0
        %2541 = vmatprep.subr.mxu0 0.0
        %2542 = vmatpush1.msra.mxu0 0.0
        %2543 = vmatprep.subr.mxu0 0.0
        %2544 = vmatpush1.msra.mxu0 0.0
        %2545 = vmatprep.subr.mxu0 0.0
        %2546 = vmatpush1.msra.mxu0 0.0
        %2547 = vmatprep.subr.mxu0 0.0
        %2548 = vmatpush1.msra.mxu0 0.0
        %2549 = vmatprep.subr.mxu0 0.0
        %2550 = vmatpush1.msra.mxu0 0.0
        %2551 = vmatprep.subr.mxu0 0.0
        %2552 = vmatpush1.msra.mxu0 0.0
        %2553 = vmatprep.subr.mxu0 0.0
        %2554 = vmatpush1.msra.mxu0 0.0
        %2555 = vmatprep.subr.mxu0 0.0
        %2556 = vmatpush1.msra.mxu0 0.0
        %2557 = vmatprep.subr.mxu0 0.0
        %2558 = vmatpush1.msra.mxu0 0.0
        %2559 = vmatprep.subr.mxu0 0.0
        %2560 = vmatpush1.msra.mxu0 0.0
        %2561 = vmatprep.subr.mxu0 0.0
        %2562 = vmatpush1.msra.mxu0 0.0
        %2563 = vmatprep.subr.mxu0 0.0
        %2564 = vmatpush1.msra.mxu0 0.0
        %2565 = vmatprep.mubr.f32.mxu0 0.0
        %2566 = vmatmul.mubr.f32.gmra.mrb[0].mxu0 %v2496
        %v2567 = vpop.f32.mrb[0].mxu0
        %v2568 = vadd.f32 0.0, %v2567
        %v2569 = vpop.f32.mrb[0].mxu0
        %2570 = vmatprep.mubr.f32.mxu0 0.0
        %2571 = vmatmul.mubr.f32.gmra.mrb[0].mxu0 %v2499
        %v2572 = vpop.f32.mrb[0].mxu0
        %v2573 = vadd.f32 0.0, %v2572
        %v2574 = vpop.f32.mrb[0].mxu0
        %2575 = vdwg.mxu0
        %v2577 = vsel %vm2061, %v2359, 0
        %v2580 = vsel %vm2061, %v2361, 0
        %2582 = vmatprep.subr.mxu0 0.0
        %2583 = vmatpush1.msra.mxu0 %v648
        %2584 = vmatprep.subr.mxu0 0.0
        %2585 = vmatpush1.msra.mxu0 %v653
        %2586 = vmatprep.subr.mxu0 0.0
        %2587 = vmatpush1.msra.mxu0 0.0
        %2588 = vmatprep.subr.mxu0 0.0
        %2589 = vmatpush1.msra.mxu0 0.0
        %2590 = vmatprep.subr.mxu0 0.0
        %2591 = vmatpush1.msra.mxu0 0.0
        %2592 = vmatprep.subr.mxu0 0.0
        %2593 = vmatpush1.msra.mxu0 0.0
        %2594 = vmatprep.subr.mxu0 0.0
        %2595 = vmatpush1.msra.mxu0 0.0
        %2596 = vmatprep.subr.mxu0 0.0
        %2597 = vmatpush1.msra.mxu0 0.0
        %2598 = vmatprep.subr.mxu0 0.0
        %2599 = vmatpush1.msra.mxu0 0.0
        %2600 = vmatprep.subr.mxu0 0.0
        %2601 = vmatpush1.msra.mxu0 0.0
        %2602 = vmatprep.subr.mxu0 0.0
        %2603 = vmatpush1.msra.mxu0 0.0
        %2604 = vmatprep.subr.mxu0 0.0
        %2605 = vmatpush1.msra.mxu0 0.0
        %2606 = vmatprep.subr.mxu0 0.0
        %2607 = vmatpush1.msra.mxu0 0.0
        %2608 = vmatprep.subr.mxu0 0.0
        %2609 = vmatpush1.msra.mxu0 0.0
        %2610 = vmatprep.subr.mxu0 0.0
        %2611 = vmatpush1.msra.mxu0 0.0
        %2612 = vmatprep.subr.mxu0 0.0
        %2613 = vmatpush1.msra.mxu0 0.0
        %2614 = vmatprep.subr.mxu0 0.0
        %2615 = vmatpush1.msra.mxu0 0.0
        %2616 = vmatprep.subr.mxu0 0.0
        %2617 = vmatpush1.msra.mxu0 0.0
        %2618 = vmatprep.subr.mxu0 0.0
        %2619 = vmatpush1.msra.mxu0 0.0
        %2620 = vmatprep.subr.mxu0 0.0
        %2621 = vmatpush1.msra.mxu0 0.0
        %2622 = vmatprep.subr.mxu0 0.0
        %2623 = vmatpush1.msra.mxu0 0.0
        %2624 = vmatprep.subr.mxu0 0.0
        %2625 = vmatpush1.msra.mxu0 0.0
        %2626 = vmatprep.subr.mxu0 0.0
        %2627 = vmatpush1.msra.mxu0 0.0
        %2628 = vmatprep.subr.mxu0 0.0
        %2629 = vmatpush1.msra.mxu0 0.0
        %2630 = vmatprep.subr.mxu0 0.0
        %2631 = vmatpush1.msra.mxu0 0.0
        %2632 = vmatprep.subr.mxu0 0.0
        %2633 = vmatpush1.msra.mxu0 0.0
        %2634 = vmatprep.subr.mxu0 0.0
        %2635 = vmatpush1.msra.mxu0 0.0
        %2636 = vmatprep.subr.mxu0 0.0
        %2637 = vmatpush1.msra.mxu0 0.0
        %2638 = vmatprep.subr.mxu0 0.0
        %2639 = vmatpush1.msra.mxu0 0.0
        %2640 = vmatprep.subr.mxu0 0.0
        %2641 = vmatpush1.msra.mxu0 0.0
        %2642 = vmatprep.subr.mxu0 0.0
        %2643 = vmatpush1.msra.mxu0 0.0
        %2644 = vmatprep.subr.mxu0 0.0
        %2645 = vmatpush1.msra.mxu0 0.0
        %2646 = vmatprep.mubr.f32.mxu0 0.0
        %2647 = vmatmul.mubr.f32.gmra.mrb[0].mxu0 %v2577
        %v2648 = vpop.f32.mrb[0].mxu0
        %v2649 = vadd.f32 0.0, %v2648
        %v2650 = vpop.f32.mrb[0].mxu0
        %2651 = vmatprep.mubr.f32.mxu0 0.0
        %2652 = vmatmul.mubr.f32.gmra.mrb[0].mxu0 %v2580
        %v2653 = vpop.f32.mrb[0].mxu0
        %v2654 = vadd.f32 0.0, %v2653
        %v2655 = vpop.f32.mrb[0].mxu0
        %2656 = vdwg.mxu0
        %v2658 = vsel %vm2061, %v2363, 0
        %v2661 = vsel %vm2061, %v2365, 0
        %2663 = vmatprep.subr.mxu0 0.0
        %2664 = vmatpush1.msra.mxu0 %v658
        %2665 = vmatprep.subr.mxu0 0.0
        %2666 = vmatpush1.msra.mxu0 %v663
        %2667 = vmatprep.subr.mxu0 0.0
        %2668 = vmatpush1.msra.mxu0 0.0
        %2669 = vmatprep.subr.mxu0 0.0
        %2670 = vmatpush1.msra.mxu0 0.0
        %2671 = vmatprep.subr.mxu0 0.0
        %2672 = vmatpush1.msra.mxu0 0.0
        %2673 = vmatprep.subr.mxu0 0.0
        %2674 = vmatpush1.msra.mxu0 0.0
        %2675 = vmatprep.subr.mxu0 0.0
        %2676 = vmatpush1.msra.mxu0 0.0
        %2677 = vmatprep.subr.mxu0 0.0
        %2678 = vmatpush1.msra.mxu0 0.0
        %2679 = vmatprep.subr.mxu0 0.0
        %2680 = vmatpush1.msra.mxu0 0.0
        %2681 = vmatprep.subr.mxu0 0.0
        %2682 = vmatpush1.msra.mxu0 0.0
        %2683 = vmatprep.subr.mxu0 0.0
        %2684 = vmatpush1.msra.mxu0 0.0
        %2685 = vmatprep.subr.mxu0 0.0
        %2686 = vmatpush1.msra.mxu0 0.0
        %2687 = vmatprep.subr.mxu0 0.0
        %2688 = vmatpush1.msra.mxu0 0.0
        %2689 = vmatprep.subr.mxu0 0.0
        %2690 = vmatpush1.msra.mxu0 0.0
        %2691 = vmatprep.subr.mxu0 0.0
        %2692 = vmatpush1.msra.mxu0 0.0
        %2693 = vmatprep.subr.mxu0 0.0
        %2694 = vmatpush1.msra.mxu0 0.0
        %2695 = vmatprep.subr.mxu0 0.0
        %2696 = vmatpush1.msra.mxu0 0.0
        %2697 = vmatprep.subr.mxu0 0.0
        %2698 = vmatpush1.msra.mxu0 0.0
        %2699 = vmatprep.subr.mxu0 0.0
        %2700 = vmatpush1.msra.mxu0 0.0
        %2701 = vmatprep.subr.mxu0 0.0
        %2702 = vmatpush1.msra.mxu0 0.0
        %2703 = vmatprep.subr.mxu0 0.0
        %2704 = vmatpush1.msra.mxu0 0.0
        %2705 = vmatprep.subr.mxu0 0.0
        %2706 = vmatpush1.msra.mxu0 0.0
        %2707 = vmatprep.subr.mxu0 0.0
        %2708 = vmatpush1.msra.mxu0 0.0
        %2709 = vmatprep.subr.mxu0 0.0
        %2710 = vmatpush1.msra.mxu0 0.0
        %2711 = vmatprep.subr.mxu0 0.0
        %2712 = vmatpush1.msra.mxu0 0.0
        %2713 = vmatprep.subr.mxu0 0.0
        %2714 = vmatpush1.msra.mxu0 0.0
        %2715 = vmatprep.subr.mxu0 0.0
        %2716 = vmatpush1.msra.mxu0 0.0
        %2717 = vmatprep.subr.mxu0 0.0
        %2718 = vmatpush1.msra.mxu0 0.0
        %2719 = vmatprep.subr.mxu0 0.0
        %2720 = vmatpush1.msra.mxu0 0.0
        %2721 = vmatprep.subr.mxu0 0.0
        %2722 = vmatpush1.msra.mxu0 0.0
        %2723 = vmatprep.subr.mxu0 0.0
        %2724 = vmatpush1.msra.mxu0 0.0
        %2725 = vmatprep.subr.mxu0 0.0
        %2726 = vmatpush1.msra.mxu0 0.0
        %2727 = vmatprep.mubr.f32.mxu0 0.0
        %2728 = vmatmul.mubr.f32.gmra.mrb[0].mxu0 %v2658
        %v2729 = vpop.f32.mrb[0].mxu0
        %v2730 = vadd.f32 0.0, %v2729
        %v2731 = vpop.f32.mrb[0].mxu0
        %2732 = vmatprep.mubr.f32.mxu0 0.0
        %2733 = vmatmul.mubr.f32.gmra.mrb[0].mxu0 %v2661
        %v2734 = vpop.f32.mrb[0].mxu0
        %v2735 = vadd.f32 0.0, %v2734
        %v2736 = vpop.f32.mrb[0].mxu0
        %2737 = vdwg.mxu0
        %v2739 = vsel %vm2061, %v2367, 0
        %v2742 = vsel %vm2061, %v2369, 0
        %2744 = vmatprep.subr.mxu0 0.0
        %2745 = vmatpush1.msra.mxu0 %v668
        %2746 = vmatprep.subr.mxu0 0.0
        %2747 = vmatpush1.msra.mxu0 %v673
        %2748 = vmatprep.subr.mxu0 0.0
        %2749 = vmatpush1.msra.mxu0 0.0
        %2750 = vmatprep.subr.mxu0 0.0
        %2751 = vmatpush1.msra.mxu0 0.0
        %2752 = vmatprep.subr.mxu0 0.0
        %2753 = vmatpush1.msra.mxu0 0.0
        %2754 = vmatprep.subr.mxu0 0.0
        %2755 = vmatpush1.msra.mxu0 0.0
        %2756 = vmatprep.subr.mxu0 0.0
        %2757 = vmatpush1.msra.mxu0 0.0
        %2758 = vmatprep.subr.mxu0 0.0
        %2759 = vmatpush1.msra.mxu0 0.0
        %2760 = vmatprep.subr.mxu0 0.0
        %2761 = vmatpush1.msra.mxu0 0.0
        %2762 = vmatprep.subr.mxu0 0.0
        %2763 = vmatpush1.msra.mxu0 0.0
        %2764 = vmatprep.subr.mxu0 0.0
        %2765 = vmatpush1.msra.mxu0 0.0
        %2766 = vmatprep.subr.mxu0 0.0
        %2767 = vmatpush1.msra.mxu0 0.0
        %2768 = vmatprep.subr.mxu0 0.0
        %2769 = vmatpush1.msra.mxu0 0.0
        %2770 = vmatprep.subr.mxu0 0.0
        %2771 = vmatpush1.msra.mxu0 0.0
        %2772 = vmatprep.subr.mxu0 0.0
        %2773 = vmatpush1.msra.mxu0 0.0
        %2774 = vmatprep.subr.mxu0 0.0
        %2775 = vmatpush1.msra.mxu0 0.0
        %2776 = vmatprep.subr.mxu0 0.0
        %2777 = vmatpush1.msra.mxu0 0.0
        %2778 = vmatprep.subr.mxu0 0.0
        %2779 = vmatpush1.msra.mxu0 0.0
        %2780 = vmatprep.subr.mxu0 0.0
        %2781 = vmatpush1.msra.mxu0 0.0
        %2782 = vmatprep.subr.mxu0 0.0
        %2783 = vmatpush1.msra.mxu0 0.0
        %2784 = vmatprep.subr.mxu0 0.0
        %2785 = vmatpush1.msra.mxu0 0.0
        %2786 = vmatprep.subr.mxu0 0.0
        %2787 = vmatpush1.msra.mxu0 0.0
        %2788 = vmatprep.subr.mxu0 0.0
        %2789 = vmatpush1.msra.mxu0 0.0
        %2790 = vmatprep.subr.mxu0 0.0
        %2791 = vmatpush1.msra.mxu0 0.0
        %2792 = vmatprep.subr.mxu0 0.0
        %2793 = vmatpush1.msra.mxu0 0.0
        %2794 = vmatprep.subr.mxu0 0.0
        %2795 = vmatpush1.msra.mxu0 0.0
        %2796 = vmatprep.subr.mxu0 0.0
        %2797 = vmatpush1.msra.mxu0 0.0
        %2798 = vmatprep.subr.mxu0 0.0
        %2799 = vmatpush1.msra.mxu0 0.0
        %2800 = vmatprep.subr.mxu0 0.0
        %2801 = vmatpush1.msra.mxu0 0.0
        %2802 = vmatprep.subr.mxu0 0.0
        %2803 = vmatpush1.msra.mxu0 0.0
        %2804 = vmatprep.subr.mxu0 0.0
        %2805 = vmatpush1.msra.mxu0 0.0
        %2806 = vmatprep.subr.mxu0 0.0
        %2807 = vmatpush1.msra.mxu0 0.0
        %2808 = vmatprep.mubr.f32.mxu0 0.0
        %2809 = vmatmul.mubr.f32.gmra.mrb[0].mxu0 %v2739
        %v2810 = vpop.f32.mrb[0].mxu0
        %v2811 = vadd.f32 0.0, %v2810
        %v2812 = vpop.f32.mrb[0].mxu0
        %2813 = vmatprep.mubr.f32.mxu0 0.0
        %2814 = vmatmul.mubr.f32.gmra.mrb[0].mxu0 %v2742
        %v2815 = vpop.f32.mrb[0].mxu0
        %v2816 = vadd.f32 0.0, %v2815
        %v2817 = vpop.f32.mrb[0].mxu0
        %2818 = vdwg.mxu0
        %v2820 = vsel %vm2061, %v2371, 0
        %v2823 = vsel %vm2061, %v2373, 0
        %2825 = vmatprep.subr.mxu0 0.0
        %2826 = vmatpush1.msra.mxu0 %v678
        %2827 = vmatprep.subr.mxu0 0.0
        %2828 = vmatpush1.msra.mxu0 %v683
        %2829 = vmatprep.subr.mxu0 0.0
        %2830 = vmatpush1.msra.mxu0 0.0
        %2831 = vmatprep.subr.mxu0 0.0
        %2832 = vmatpush1.msra.mxu0 0.0
        %2833 = vmatprep.subr.mxu0 0.0
        %2834 = vmatpush1.msra.mxu0 0.0
        %2835 = vmatprep.subr.mxu0 0.0
        %2836 = vmatpush1.msra.mxu0 0.0
        %2837 = vmatprep.subr.mxu0 0.0
        %2838 = vmatpush1.msra.mxu0 0.0
        %2839 = vmatprep.subr.mxu0 0.0
        %2840 = vmatpush1.msra.mxu0 0.0
        %2841 = vmatprep.subr.mxu0 0.0
        %2842 = vmatpush1.msra.mxu0 0.0
        %2843 = vmatprep.subr.mxu0 0.0
        %2844 = vmatpush1.msra.mxu0 0.0
        %2845 = vmatprep.subr.mxu0 0.0
        %2846 = vmatpush1.msra.mxu0 0.0
        %2847 = vmatprep.subr.mxu0 0.0
        %2848 = vmatpush1.msra.mxu0 0.0
        %2849 = vmatprep.subr.mxu0 0.0
        %2850 = vmatpush1.msra.mxu0 0.0
        %2851 = vmatprep.subr.mxu0 0.0
        %2852 = vmatpush1.msra.mxu0 0.0
        %2853 = vmatprep.subr.mxu0 0.0
        %2854 = vmatpush1.msra.mxu0 0.0
        %2855 = vmatprep.subr.mxu0 0.0
        %2856 = vmatpush1.msra.mxu0 0.0
        %2857 = vmatprep.subr.mxu0 0.0
        %2858 = vmatpush1.msra.mxu0 0.0
        %2859 = vmatprep.subr.mxu0 0.0
        %2860 = vmatpush1.msra.mxu0 0.0
        %2861 = vmatprep.subr.mxu0 0.0
        %2862 = vmatpush1.msra.mxu0 0.0
        %2863 = vmatprep.subr.mxu0 0.0
        %2864 = vmatpush1.msra.mxu0 0.0
        %2865 = vmatprep.subr.mxu0 0.0
        %2866 = vmatpush1.msra.mxu0 0.0
        %2867 = vmatprep.subr.mxu0 0.0
        %2868 = vmatpush1.msra.mxu0 0.0
        %2869 = vmatprep.subr.mxu0 0.0
        %2870 = vmatpush1.msra.mxu0 0.0
        %2871 = vmatprep.subr.mxu0 0.0
        %2872 = vmatpush1.msra.mxu0 0.0
        %2873 = vmatprep.subr.mxu0 0.0
        %2874 = vmatpush1.msra.mxu0 0.0
        %2875 = vmatprep.subr.mxu0 0.0
        %2876 = vmatpush1.msra.mxu0 0.0
        %2877 = vmatprep.subr.mxu0 0.0
        %2878 = vmatpush1.msra.mxu0 0.0
        %2879 = vmatprep.subr.mxu0 0.0
        %2880 = vmatpush1.msra.mxu0 0.0
        %2881 = vmatprep.subr.mxu0 0.0
        %2882 = vmatpush1.msra.mxu0 0.0
        %2883 = vmatprep.subr.mxu0 0.0
        %2884 = vmatpush1.msra.mxu0 0.0
        %2885 = vmatprep.subr.mxu0 0.0
        %2886 = vmatpush1.msra.mxu0 0.0
        %2887 = vmatprep.subr.mxu0 0.0
        %2888 = vmatpush1.msra.mxu0 0.0
        %2889 = vmatprep.mubr.f32.mxu0 0.0
        %2890 = vmatmul.mubr.f32.gmra.mrb[0].mxu0 %v2820
        %v2891 = vpop.f32.mrb[0].mxu0
        %v2892 = vadd.f32 0.0, %v2891
        %v2893 = vpop.f32.mrb[0].mxu0
        %2894 = vmatprep.mubr.f32.mxu0 0.0
        %2895 = vmatmul.mubr.f32.gmra.mrb[0].mxu0 %v2823
        %v2896 = vpop.f32.mrb[0].mxu0
        %v2897 = vadd.f32 0.0, %v2896
        %v2898 = vpop.f32.mrb[0].mxu0
        %2899 = vdwg.mxu0
        %v2901 = vsel %vm2061, %v2375, 0
        %v2904 = vsel %vm2061, %v2377, 0
        %2906 = vmatprep.subr.mxu0 0.0
        %2907 = vmatpush1.msra.mxu0 %v688
        %2908 = vmatprep.subr.mxu0 0.0
        %2909 = vmatpush1.msra.mxu0 %v693
        %2910 = vmatprep.subr.mxu0 0.0
        %2911 = vmatpush1.msra.mxu0 0.0
        %2912 = vmatprep.subr.mxu0 0.0
        %2913 = vmatpush1.msra.mxu0 0.0
        %2914 = vmatprep.subr.mxu0 0.0
        %2915 = vmatpush1.msra.mxu0 0.0
        %2916 = vmatprep.subr.mxu0 0.0
        %2917 = vmatpush1.msra.mxu0 0.0
        %2918 = vmatprep.subr.mxu0 0.0
        %2919 = vmatpush1.msra.mxu0 0.0
        %2920 = vmatprep.subr.mxu0 0.0
        %2921 = vmatpush1.msra.mxu0 0.0
        %2922 = vmatprep.subr.mxu0 0.0
        %2923 = vmatpush1.msra.mxu0 0.0
        %2924 = vmatprep.subr.mxu0 0.0
        %2925 = vmatpush1.msra.mxu0 0.0
        %2926 = vmatprep.subr.mxu0 0.0
        %2927 = vmatpush1.msra.mxu0 0.0
        %2928 = vmatprep.subr.mxu0 0.0
        %2929 = vmatpush1.msra.mxu0 0.0
        %2930 = vmatprep.subr.mxu0 0.0
        %2931 = vmatpush1.msra.mxu0 0.0
        %2932 = vmatprep.subr.mxu0 0.0
        %2933 = vmatpush1.msra.mxu0 0.0
        %2934 = vmatprep.subr.mxu0 0.0
        %2935 = vmatpush1.msra.mxu0 0.0
        %2936 = vmatprep.subr.mxu0 0.0
        %2937 = vmatpush1.msra.mxu0 0.0
        %2938 = vmatprep.subr.mxu0 0.0
        %2939 = vmatpush1.msra.mxu0 0.0
        %2940 = vmatprep.subr.mxu0 0.0
        %2941 = vmatpush1.msra.mxu0 0.0
        %2942 = vmatprep.subr.mxu0 0.0
        %2943 = vmatpush1.msra.mxu0 0.0
        %2944 = vmatprep.subr.mxu0 0.0
        %2945 = vmatpush1.msra.mxu0 0.0
        %2946 = vmatprep.subr.mxu0 0.0
        %2947 = vmatpush1.msra.mxu0 0.0
        %2948 = vmatprep.subr.mxu0 0.0
        %2949 = vmatpush1.msra.mxu0 0.0
        %2950 = vmatprep.subr.mxu0 0.0
        %2951 = vmatpush1.msra.mxu0 0.0
        %2952 = vmatprep.subr.mxu0 0.0
        %2953 = vmatpush1.msra.mxu0 0.0
        %2954 = vmatprep.subr.mxu0 0.0
        %2955 = vmatpush1.msra.mxu0 0.0
        %2956 = vmatprep.subr.mxu0 0.0
        %2957 = vmatpush1.msra.mxu0 0.0
        %2958 = vmatprep.subr.mxu0 0.0
        %2959 = vmatpush1.msra.mxu0 0.0
        %2960 = vmatprep.subr.mxu0 0.0
        %2961 = vmatpush1.msra.mxu0 0.0
        %2962 = vmatprep.subr.mxu0 0.0
        %2963 = vmatpush1.msra.mxu0 0.0
        %2964 = vmatprep.subr.mxu0 0.0
        %2965 = vmatpush1.msra.mxu0 0.0
        %2966 = vmatprep.subr.mxu0 0.0
        %2967 = vmatpush1.msra.mxu0 0.0
        %2968 = vmatprep.subr.mxu0 0.0
        %2969 = vmatpush1.msra.mxu0 0.0
        %2970 = vmatprep.mubr.f32.mxu0 0.0
        %2971 = vmatmul.mubr.f32.gmra.mrb[0].mxu0 %v2901
        %v2972 = vpop.f32.mrb[0].mxu0
        %v2973 = vadd.f32 0.0, %v2972
        %v2974 = vpop.f32.mrb[0].mxu0
        %2975 = vmatprep.mubr.f32.mxu0 0.0
        %2976 = vmatmul.mubr.f32.gmra.mrb[0].mxu0 %v2904
        %v2977 = vpop.f32.mrb[0].mxu0
        %v2978 = vadd.f32 0.0, %v2977
        %v2979 = vpop.f32.mrb[0].mxu0
        %2980 = vdwg.mxu0
        %v2982 = vsel %vm2061, %v2379, 0
        %v2985 = vsel %vm2061, %v2381, 0
        %2987 = vmatprep.subr.mxu0 0.0
        %2988 = vmatpush1.msra.mxu0 %v698
        %2989 = vmatprep.subr.mxu0 0.0
        %2990 = vmatpush1.msra.mxu0 %v703
        %2991 = vmatprep.subr.mxu0 0.0
        %2992 = vmatpush1.msra.mxu0 0.0
        %2993 = vmatprep.subr.mxu0 0.0
        %2994 = vmatpush1.msra.mxu0 0.0
        %2995 = vmatprep.subr.mxu0 0.0
        %2996 = vmatpush1.msra.mxu0 0.0
        %2997 = vmatprep.subr.mxu0 0.0
        %2998 = vmatpush1.msra.mxu0 0.0
        %2999 = vmatprep.subr.mxu0 0.0
        %3000 = vmatpush1.msra.mxu0 0.0
        %3001 = vmatprep.subr.mxu0 0.0
        %3002 = vmatpush1.msra.mxu0 0.0
        %3003 = vmatprep.subr.mxu0 0.0
        %3004 = vmatpush1.msra.mxu0 0.0
        %3005 = vmatprep.subr.mxu0 0.0
        %3006 = vmatpush1.msra.mxu0 0.0
        %3007 = vmatprep.subr.mxu0 0.0
        %3008 = vmatpush1.msra.mxu0 0.0
        %3009 = vmatprep.subr.mxu0 0.0
        %3010 = vmatpush1.msra.mxu0 0.0
        %3011 = vmatprep.subr.mxu0 0.0
        %3012 = vmatpush1.msra.mxu0 0.0
        %3013 = vmatprep.subr.mxu0 0.0
        %3014 = vmatpush1.msra.mxu0 0.0
        %3015 = vmatprep.subr.mxu0 0.0
        %3016 = vmatpush1.msra.mxu0 0.0
        %3017 = vmatprep.subr.mxu0 0.0
        %3018 = vmatpush1.msra.mxu0 0.0
        %3019 = vmatprep.subr.mxu0 0.0
        %3020 = vmatpush1.msra.mxu0 0.0
        %3021 = vmatprep.subr.mxu0 0.0
        %3022 = vmatpush1.msra.mxu0 0.0
        %3023 = vmatprep.subr.mxu0 0.0
        %3024 = vmatpush1.msra.mxu0 0.0
        %3025 = vmatprep.subr.mxu0 0.0
        %3026 = vmatpush1.msra.mxu0 0.0
        %3027 = vmatprep.subr.mxu0 0.0
        %3028 = vmatpush1.msra.mxu0 0.0
        %3029 = vmatprep.subr.mxu0 0.0
        %3030 = vmatpush1.msra.mxu0 0.0
        %3031 = vmatprep.subr.mxu0 0.0
        %3032 = vmatpush1.msra.mxu0 0.0
        %3033 = vmatprep.subr.mxu0 0.0
        %3034 = vmatpush1.msra.mxu0 0.0
        %3035 = vmatprep.subr.mxu0 0.0
        %3036 = vmatpush1.msra.mxu0 0.0
        %3037 = vmatprep.subr.mxu0 0.0
        %3038 = vmatpush1.msra.mxu0 0.0
        %3039 = vmatprep.subr.mxu0 0.0
        %3040 = vmatpush1.msra.mxu0 0.0
        %3041 = vmatprep.subr.mxu0 0.0
        %3042 = vmatpush1.msra.mxu0 0.0
        %3043 = vmatprep.subr.mxu0 0.0
        %3044 = vmatpush1.msra.mxu0 0.0
        %3045 = vmatprep.subr.mxu0 0.0
        %3046 = vmatpush1.msra.mxu0 0.0
        %3047 = vmatprep.subr.mxu0 0.0
        %3048 = vmatpush1.msra.mxu0 0.0
        %3049 = vmatprep.subr.mxu0 0.0
        %3050 = vmatpush1.msra.mxu0 0.0
        %3051 = vmatprep.mubr.f32.mxu0 0.0
        %3052 = vmatmul.mubr.f32.gmra.mrb[0].mxu0 %v2982
        %v3053 = vpop.f32.mrb[0].mxu0
        %v3054 = vadd.f32 0.0, %v3053
        %v3055 = vpop.f32.mrb[0].mxu0
        %3056 = vmatprep.mubr.f32.mxu0 0.0
        %3057 = vmatmul.mubr.f32.gmra.mrb[0].mxu0 %v2985
        %v3058 = vpop.f32.mrb[0].mxu0
        %v3059 = vadd.f32 0.0, %v3058
        %v3060 = vpop.f32.mrb[0].mxu0
        %3061 = vdwg.mxu0
        %v3063 = vsel %vm2061, %v2383, 0
        %v3066 = vsel %vm2061, %v2385, 0
        %3068 = vmatprep.subr.mxu0 0.0
        %3069 = vmatpush1.msra.mxu0 %v708
        %3070 = vmatprep.subr.mxu0 0.0
        %3071 = vmatpush1.msra.mxu0 %v713
        %3072 = vmatprep.subr.mxu0 0.0
        %3073 = vmatpush1.msra.mxu0 0.0
        %3074 = vmatprep.subr.mxu0 0.0
        %3075 = vmatpush1.msra.mxu0 0.0
        %3076 = vmatprep.subr.mxu0 0.0
        %3077 = vmatpush1.msra.mxu0 0.0
        %3078 = vmatprep.subr.mxu0 0.0
        %3079 = vmatpush1.msra.mxu0 0.0
        %3080 = vmatprep.subr.mxu0 0.0
        %3081 = vmatpush1.msra.mxu0 0.0
        %3082 = vmatprep.subr.mxu0 0.0
        %3083 = vmatpush1.msra.mxu0 0.0
        %3084 = vmatprep.subr.mxu0 0.0
        %3085 = vmatpush1.msra.mxu0 0.0
        %3086 = vmatprep.subr.mxu0 0.0
        %3087 = vmatpush1.msra.mxu0 0.0
        %3088 = vmatprep.subr.mxu0 0.0
        %3089 = vmatpush1.msra.mxu0 0.0
        %3090 = vmatprep.subr.mxu0 0.0
        %3091 = vmatpush1.msra.mxu0 0.0
        %3092 = vmatprep.subr.mxu0 0.0
        %3093 = vmatpush1.msra.mxu0 0.0
        %3094 = vmatprep.subr.mxu0 0.0
        %3095 = vmatpush1.msra.mxu0 0.0
        %3096 = vmatprep.subr.mxu0 0.0
        %3097 = vmatpush1.msra.mxu0 0.0
        %3098 = vmatprep.subr.mxu0 0.0
        %3099 = vmatpush1.msra.mxu0 0.0
        %3100 = vmatprep.subr.mxu0 0.0
        %3101 = vmatpush1.msra.mxu0 0.0
        %3102 = vmatprep.subr.mxu0 0.0
        %3103 = vmatpush1.msra.mxu0 0.0
        %3104 = vmatprep.subr.mxu0 0.0
        %3105 = vmatpush1.msra.mxu0 0.0
        %3106 = vmatprep.subr.mxu0 0.0
        %3107 = vmatpush1.msra.mxu0 0.0
        %3108 = vmatprep.subr.mxu0 0.0
        %3109 = vmatpush1.msra.mxu0 0.0
        %3110 = vmatprep.subr.mxu0 0.0
        %3111 = vmatpush1.msra.mxu0 0.0
        %3112 = vmatprep.subr.mxu0 0.0
        %3113 = vmatpush1.msra.mxu0 0.0
        %3114 = vmatprep.subr.mxu0 0.0
        %3115 = vmatpush1.msra.mxu0 0.0
        %3116 = vmatprep.subr.mxu0 0.0
        %3117 = vmatpush1.msra.mxu0 0.0
        %3118 = vmatprep.subr.mxu0 0.0
        %3119 = vmatpush1.msra.mxu0 0.0
        %3120 = vmatprep.subr.mxu0 0.0
        %3121 = vmatpush1.msra.mxu0 0.0
        %3122 = vmatprep.subr.mxu0 0.0
        %3123 = vmatpush1.msra.mxu0 0.0
        %3124 = vmatprep.subr.mxu0 0.0
        %3125 = vmatpush1.msra.mxu0 0.0
        %3126 = vmatprep.subr.mxu0 0.0
        %3127 = vmatpush1.msra.mxu0 0.0
        %3128 = vmatprep.subr.mxu0 0.0
        %3129 = vmatpush1.msra.mxu0 0.0
        %3130 = vmatprep.subr.mxu0 0.0
        %3131 = vmatpush1.msra.mxu0 0.0
        %3132 = vmatprep.mubr.f32.mxu0 0.0
        %3133 = vmatmul.mubr.f32.gmra.mrb[0].mxu0 %v3063
        %v3134 = vpop.f32.mrb[0].mxu0
        %v3135 = vadd.f32 0.0, %v3134
        %v3136 = vpop.f32.mrb[0].mxu0
        %3137 = vmatprep.mubr.f32.mxu0 0.0
        %3138 = vmatmul.mubr.f32.gmra.mrb[0].mxu0 %v3066
        %v3139 = vpop.f32.mrb[0].mxu0
        %v3140 = vadd.f32 0.0, %v3139
        %v3141 = vpop.f32.mrb[0].mxu0
        %3142 = vdwg.mxu0
        %v3144 = vsel %vm2061, %v2387, 0
        %v3147 = vsel %vm2061, %v2389, 0
        %3149 = vmatprep.subr.mxu0 0.0
        %3150 = vmatpush1.msra.mxu0 %v718
        %3151 = vmatprep.subr.mxu0 0.0
        %3152 = vmatpush1.msra.mxu0 %v723
        %3153 = vmatprep.subr.mxu0 0.0
        %3154 = vmatpush1.msra.mxu0 0.0
        %3155 = vmatprep.subr.mxu0 0.0
        %3156 = vmatpush1.msra.mxu0 0.0
        %3157 = vmatprep.subr.mxu0 0.0
        %3158 = vmatpush1.msra.mxu0 0.0
        %3159 = vmatprep.subr.mxu0 0.0
        %3160 = vmatpush1.msra.mxu0 0.0
        %3161 = vmatprep.subr.mxu0 0.0
        %3162 = vmatpush1.msra.mxu0 0.0
        %3163 = vmatprep.subr.mxu0 0.0
        %3164 = vmatpush1.msra.mxu0 0.0
        %3165 = vmatprep.subr.mxu0 0.0
        %3166 = vmatpush1.msra.mxu0 0.0
        %3167 = vmatprep.subr.mxu0 0.0
        %3168 = vmatpush1.msra.mxu0 0.0
        %3169 = vmatprep.subr.mxu0 0.0
        %3170 = vmatpush1.msra.mxu0 0.0
        %3171 = vmatprep.subr.mxu0 0.0
        %3172 = vmatpush1.msra.mxu0 0.0
        %3173 = vmatprep.subr.mxu0 0.0
        %3174 = vmatpush1.msra.mxu0 0.0
        %3175 = vmatprep.subr.mxu0 0.0
        %3176 = vmatpush1.msra.mxu0 0.0
        %3177 = vmatprep.subr.mxu0 0.0
        %3178 = vmatpush1.msra.mxu0 0.0
        %3179 = vmatprep.subr.mxu0 0.0
        %3180 = vmatpush1.msra.mxu0 0.0
        %3181 = vmatprep.subr.mxu0 0.0
        %3182 = vmatpush1.msra.mxu0 0.0
        %3183 = vmatprep.subr.mxu0 0.0
        %3184 = vmatpush1.msra.mxu0 0.0
        %3185 = vmatprep.subr.mxu0 0.0
        %3186 = vmatpush1.msra.mxu0 0.0
        %3187 = vmatprep.subr.mxu0 0.0
        %3188 = vmatpush1.msra.mxu0 0.0
        %3189 = vmatprep.subr.mxu0 0.0
        %3190 = vmatpush1.msra.mxu0 0.0
        %3191 = vmatprep.subr.mxu0 0.0
        %3192 = vmatpush1.msra.mxu0 0.0
        %3193 = vmatprep.subr.mxu0 0.0
        %3194 = vmatpush1.msra.mxu0 0.0
        %3195 = vmatprep.subr.mxu0 0.0
        %3196 = vmatpush1.msra.mxu0 0.0
        %3197 = vmatprep.subr.mxu0 0.0
        %3198 = vmatpush1.msra.mxu0 0.0
        %3199 = vmatprep.subr.mxu0 0.0
        %3200 = vmatpush1.msra.mxu0 0.0
        %3201 = vmatprep.subr.mxu0 0.0
        %3202 = vmatpush1.msra.mxu0 0.0
        %3203 = vmatprep.subr.mxu0 0.0
        %3204 = vmatpush1.msra.mxu0 0.0
        %3205 = vmatprep.subr.mxu0 0.0
        %3206 = vmatpush1.msra.mxu0 0.0
        %3207 = vmatprep.subr.mxu0 0.0
        %3208 = vmatpush1.msra.mxu0 0.0
        %3209 = vmatprep.subr.mxu0 0.0
        %3210 = vmatpush1.msra.mxu0 0.0
        %3211 = vmatprep.subr.mxu0 0.0
        %3212 = vmatpush1.msra.mxu0 0.0
        %3213 = vmatprep.mubr.f32.mxu0 0.0
        %3214 = vmatmul.mubr.f32.gmra.mrb[0].mxu0 %v3144
        %v3215 = vpop.f32.mrb[0].mxu0
        %v3216 = vadd.f32 0.0, %v3215
        %v3217 = vpop.f32.mrb[0].mxu0
        %3218 = vmatprep.mubr.f32.mxu0 0.0
        %3219 = vmatmul.mubr.f32.gmra.mrb[0].mxu0 %v3147
        %v3220 = vpop.f32.mrb[0].mxu0
        %v3221 = vadd.f32 0.0, %v3220
        %v3222 = vpop.f32.mrb[0].mxu0
        %3223 = vdwg.mxu0
        %v3225 = vsel %vm2061, %v2391, 0
        %v3228 = vsel %vm2061, %v2393, 0
        %3230 = vmatprep.subr.mxu0 0.0
        %3231 = vmatpush1.msra.mxu0 %v728
        %3232 = vmatprep.subr.mxu0 0.0
        %3233 = vmatpush1.msra.mxu0 %v733
        %3234 = vmatprep.subr.mxu0 0.0
        %3235 = vmatpush1.msra.mxu0 0.0
        %3236 = vmatprep.subr.mxu0 0.0
        %3237 = vmatpush1.msra.mxu0 0.0
        %3238 = vmatprep.subr.mxu0 0.0
        %3239 = vmatpush1.msra.mxu0 0.0
        %3240 = vmatprep.subr.mxu0 0.0
        %3241 = vmatpush1.msra.mxu0 0.0
        %3242 = vmatprep.subr.mxu0 0.0
        %3243 = vmatpush1.msra.mxu0 0.0
        %3244 = vmatprep.subr.mxu0 0.0
        %3245 = vmatpush1.msra.mxu0 0.0
        %3246 = vmatprep.subr.mxu0 0.0
        %3247 = vmatpush1.msra.mxu0 0.0
        %3248 = vmatprep.subr.mxu0 0.0
        %3249 = vmatpush1.msra.mxu0 0.0
        %3250 = vmatprep.subr.mxu0 0.0
        %3251 = vmatpush1.msra.mxu0 0.0
        %3252 = vmatprep.subr.mxu0 0.0
        %3253 = vmatpush1.msra.mxu0 0.0
        %3254 = vmatprep.subr.mxu0 0.0
        %3255 = vmatpush1.msra.mxu0 0.0
        %3256 = vmatprep.subr.mxu0 0.0
        %3257 = vmatpush1.msra.mxu0 0.0
        %3258 = vmatprep.subr.mxu0 0.0
        %3259 = vmatpush1.msra.mxu0 0.0
        %3260 = vmatprep.subr.mxu0 0.0
        %3261 = vmatpush1.msra.mxu0 0.0
        %3262 = vmatprep.subr.mxu0 0.0
        %3263 = vmatpush1.msra.mxu0 0.0
        %3264 = vmatprep.subr.mxu0 0.0
        %3265 = vmatpush1.msra.mxu0 0.0
        %3266 = vmatprep.subr.mxu0 0.0
        %3267 = vmatpush1.msra.mxu0 0.0
        %3268 = vmatprep.subr.mxu0 0.0
        %3269 = vmatpush1.msra.mxu0 0.0
        %3270 = vmatprep.subr.mxu0 0.0
        %3271 = vmatpush1.msra.mxu0 0.0
        %3272 = vmatprep.subr.mxu0 0.0
        %3273 = vmatpush1.msra.mxu0 0.0
        %3274 = vmatprep.subr.mxu0 0.0
        %3275 = vmatpush1.msra.mxu0 0.0
        %3276 = vmatprep.subr.mxu0 0.0
        %3277 = vmatpush1.msra.mxu0 0.0
        %3278 = vmatprep.subr.mxu0 0.0
        %3279 = vmatpush1.msra.mxu0 0.0
        %3280 = vmatprep.subr.mxu0 0.0
        %3281 = vmatpush1.msra.mxu0 0.0
        %3282 = vmatprep.subr.mxu0 0.0
        %3283 = vmatpush1.msra.mxu0 0.0
        %3284 = vmatprep.subr.mxu0 0.0
        %3285 = vmatpush1.msra.mxu0 0.0
        %3286 = vmatprep.subr.mxu0 0.0
        %3287 = vmatpush1.msra.mxu0 0.0
        %3288 = vmatprep.subr.mxu0 0.0
        %3289 = vmatpush1.msra.mxu0 0.0
        %3290 = vmatprep.subr.mxu0 0.0
        %3291 = vmatpush1.msra.mxu0 0.0
        %3292 = vmatprep.subr.mxu0 0.0
        %3293 = vmatpush1.msra.mxu0 0.0
        %3294 = vmatprep.mubr.f32.mxu0 0.0
        %3295 = vmatmul.mubr.f32.gmra.mrb[0].mxu0 %v3225
        %v3296 = vpop.f32.mrb[0].mxu0
        %v3297 = vadd.f32 0.0, %v3296
        %v3298 = vpop.f32.mrb[0].mxu0
        %3299 = vmatprep.mubr.f32.mxu0 0.0
        %3300 = vmatmul.mubr.f32.gmra.mrb[0].mxu0 %v3228
        %v3301 = vpop.f32.mrb[0].mxu0
        %v3302 = vadd.f32 0.0, %v3301
        %v3303 = vpop.f32.mrb[0].mxu0
        %3304 = vdwg.mxu0
        %v3306 = vsel %vm2061, %v2395, 0
        %v3309 = vsel %vm2061, %v2397, 0
        %3311 = vmatprep.subr.mxu0 0.0
        %3312 = vmatpush1.msra.mxu0 %v738
        %3313 = vmatprep.subr.mxu0 0.0
        %3314 = vmatpush1.msra.mxu0 %v743
        %3315 = vmatprep.subr.mxu0 0.0
        %3316 = vmatpush1.msra.mxu0 0.0
        %3317 = vmatprep.subr.mxu0 0.0
        %3318 = vmatpush1.msra.mxu0 0.0
        %3319 = vmatprep.subr.mxu0 0.0
        %3320 = vmatpush1.msra.mxu0 0.0
        %3321 = vmatprep.subr.mxu0 0.0
        %3322 = vmatpush1.msra.mxu0 0.0
        %3323 = vmatprep.subr.mxu0 0.0
        %3324 = vmatpush1.msra.mxu0 0.0
        %3325 = vmatprep.subr.mxu0 0.0
        %3326 = vmatpush1.msra.mxu0 0.0
        %3327 = vmatprep.subr.mxu0 0.0
        %3328 = vmatpush1.msra.mxu0 0.0
        %3329 = vmatprep.subr.mxu0 0.0
        %3330 = vmatpush1.msra.mxu0 0.0
        %3331 = vmatprep.subr.mxu0 0.0
        %3332 = vmatpush1.msra.mxu0 0.0
        %3333 = vmatprep.subr.mxu0 0.0
        %3334 = vmatpush1.msra.mxu0 0.0
        %3335 = vmatprep.subr.mxu0 0.0
        %3336 = vmatpush1.msra.mxu0 0.0
        %3337 = vmatprep.subr.mxu0 0.0
        %3338 = vmatpush1.msra.mxu0 0.0
        %3339 = vmatprep.subr.mxu0 0.0
        %3340 = vmatpush1.msra.mxu0 0.0
        %3341 = vmatprep.subr.mxu0 0.0
        %3342 = vmatpush1.msra.mxu0 0.0
        %3343 = vmatprep.subr.mxu0 0.0
        %3344 = vmatpush1.msra.mxu0 0.0
        %3345 = vmatprep.subr.mxu0 0.0
        %3346 = vmatpush1.msra.mxu0 0.0
        %3347 = vmatprep.subr.mxu0 0.0
        %3348 = vmatpush1.msra.mxu0 0.0
        %3349 = vmatprep.subr.mxu0 0.0
        %3350 = vmatpush1.msra.mxu0 0.0
        %3351 = vmatprep.subr.mxu0 0.0
        %3352 = vmatpush1.msra.mxu0 0.0
        %3353 = vmatprep.subr.mxu0 0.0
        %3354 = vmatpush1.msra.mxu0 0.0
        %3355 = vmatprep.subr.mxu0 0.0
        %3356 = vmatpush1.msra.mxu0 0.0
        %3357 = vmatprep.subr.mxu0 0.0
        %3358 = vmatpush1.msra.mxu0 0.0
        %3359 = vmatprep.subr.mxu0 0.0
        %3360 = vmatpush1.msra.mxu0 0.0
        %3361 = vmatprep.subr.mxu0 0.0
        %3362 = vmatpush1.msra.mxu0 0.0
        %3363 = vmatprep.subr.mxu0 0.0
        %3364 = vmatpush1.msra.mxu0 0.0
        %3365 = vmatprep.subr.mxu0 0.0
        %3366 = vmatpush1.msra.mxu0 0.0
        %3367 = vmatprep.subr.mxu0 0.0
        %3368 = vmatpush1.msra.mxu0 0.0
        %3369 = vmatprep.subr.mxu0 0.0
        %3370 = vmatpush1.msra.mxu0 0.0
        %3371 = vmatprep.subr.mxu0 0.0
        %3372 = vmatpush1.msra.mxu0 0.0
        %3373 = vmatprep.subr.mxu0 0.0
        %3374 = vmatpush1.msra.mxu0 0.0
        %3375 = vmatprep.mubr.f32.mxu0 0.0
        %3376 = vmatmul.mubr.f32.gmra.mrb[0].mxu0 %v3306
        %v3377 = vpop.f32.mrb[0].mxu0
        %v3378 = vadd.f32 0.0, %v3377
        %v3379 = vpop.f32.mrb[0].mxu0
        %3380 = vmatprep.mubr.f32.mxu0 0.0
        %3381 = vmatmul.mubr.f32.gmra.mrb[0].mxu0 %v3309
        %v3382 = vpop.f32.mrb[0].mxu0
        %v3383 = vadd.f32 0.0, %v3382
        %v3384 = vpop.f32.mrb[0].mxu0
        %3385 = vdwg.mxu0
        %v3387 = vsel %vm2061, %v2399, 0
        %v3390 = vsel %vm2061, %v2401, 0
        %3392 = vmatprep.subr.mxu0 0.0
        %3393 = vmatpush1.msra.mxu0 %v748
        %3394 = vmatprep.subr.mxu0 0.0
        %3395 = vmatpush1.msra.mxu0 %v753
        %3396 = vmatprep.subr.mxu0 0.0
        %3397 = vmatpush1.msra.mxu0 0.0
        %3398 = vmatprep.subr.mxu0 0.0
        %3399 = vmatpush1.msra.mxu0 0.0
        %3400 = vmatprep.subr.mxu0 0.0
        %3401 = vmatpush1.msra.mxu0 0.0
        %3402 = vmatprep.subr.mxu0 0.0
        %3403 = vmatpush1.msra.mxu0 0.0
        %3404 = vmatprep.subr.mxu0 0.0
        %3405 = vmatpush1.msra.mxu0 0.0
        %3406 = vmatprep.subr.mxu0 0.0
        %3407 = vmatpush1.msra.mxu0 0.0
        %3408 = vmatprep.subr.mxu0 0.0
        %3409 = vmatpush1.msra.mxu0 0.0
        %3410 = vmatprep.subr.mxu0 0.0
        %3411 = vmatpush1.msra.mxu0 0.0
        %3412 = vmatprep.subr.mxu0 0.0
        %3413 = vmatpush1.msra.mxu0 0.0
        %3414 = vmatprep.subr.mxu0 0.0
        %3415 = vmatpush1.msra.mxu0 0.0
        %3416 = vmatprep.subr.mxu0 0.0
        %3417 = vmatpush1.msra.mxu0 0.0
        %3418 = vmatprep.subr.mxu0 0.0
        %3419 = vmatpush1.msra.mxu0 0.0
        %3420 = vmatprep.subr.mxu0 0.0
        %3421 = vmatpush1.msra.mxu0 0.0
        %3422 = vmatprep.subr.mxu0 0.0
        %3423 = vmatpush1.msra.mxu0 0.0
        %3424 = vmatprep.subr.mxu0 0.0
        %3425 = vmatpush1.msra.mxu0 0.0
        %3426 = vmatprep.subr.mxu0 0.0
        %3427 = vmatpush1.msra.mxu0 0.0
        %3428 = vmatprep.subr.mxu0 0.0
        %3429 = vmatpush1.msra.mxu0 0.0
        %3430 = vmatprep.subr.mxu0 0.0
        %3431 = vmatpush1.msra.mxu0 0.0
        %3432 = vmatprep.subr.mxu0 0.0
        %3433 = vmatpush1.msra.mxu0 0.0
        %3434 = vmatprep.subr.mxu0 0.0
        %3435 = vmatpush1.msra.mxu0 0.0
        %3436 = vmatprep.subr.mxu0 0.0
        %3437 = vmatpush1.msra.mxu0 0.0
        %3438 = vmatprep.subr.mxu0 0.0
        %3439 = vmatpush1.msra.mxu0 0.0
        %3440 = vmatprep.subr.mxu0 0.0
        %3441 = vmatpush1.msra.mxu0 0.0
        %3442 = vmatprep.subr.mxu0 0.0
        %3443 = vmatpush1.msra.mxu0 0.0
        %3444 = vmatprep.subr.mxu0 0.0
        %3445 = vmatpush1.msra.mxu0 0.0
        %3446 = vmatprep.subr.mxu0 0.0
        %3447 = vmatpush1.msra.mxu0 0.0
        %3448 = vmatprep.subr.mxu0 0.0
        %3449 = vmatpush1.msra.mxu0 0.0
        %3450 = vmatprep.subr.mxu0 0.0
        %3451 = vmatpush1.msra.mxu0 0.0
        %3452 = vmatprep.subr.mxu0 0.0
        %3453 = vmatpush1.msra.mxu0 0.0
        %3454 = vmatprep.subr.mxu0 0.0
        %3455 = vmatpush1.msra.mxu0 0.0
        %3456 = vmatprep.mubr.f32.mxu0 0.0
        %3457 = vmatmul.mubr.f32.gmra.mrb[0].mxu0 %v3387
        %v3458 = vpop.f32.mrb[0].mxu0
        %v3459 = vadd.f32 0.0, %v3458
        %v3460 = vpop.f32.mrb[0].mxu0
        %3461 = vmatprep.mubr.f32.mxu0 0.0
        %3462 = vmatmul.mubr.f32.gmra.mrb[0].mxu0 %v3390
        %v3463 = vpop.f32.mrb[0].mxu0
        %v3464 = vadd.f32 0.0, %v3463
        %v3465 = vpop.f32.mrb[0].mxu0
        %3466 = vdwg.mxu0
        %v3468 = vsel %vm2061, %v2403, 0
        %v3471 = vsel %vm2061, %v2405, 0
        %3473 = vmatprep.subr.mxu0 0.0
        %3474 = vmatpush1.msra.mxu0 %v758
        %3475 = vmatprep.subr.mxu0 0.0
        %3476 = vmatpush1.msra.mxu0 %v763
        %3477 = vmatprep.subr.mxu0 0.0
        %3478 = vmatpush1.msra.mxu0 0.0
        %3479 = vmatprep.subr.mxu0 0.0
        %3480 = vmatpush1.msra.mxu0 0.0
        %3481 = vmatprep.subr.mxu0 0.0
        %3482 = vmatpush1.msra.mxu0 0.0
        %3483 = vmatprep.subr.mxu0 0.0
        %3484 = vmatpush1.msra.mxu0 0.0
        %3485 = vmatprep.subr.mxu0 0.0
        %3486 = vmatpush1.msra.mxu0 0.0
        %3487 = vmatprep.subr.mxu0 0.0
        %3488 = vmatpush1.msra.mxu0 0.0
        %3489 = vmatprep.subr.mxu0 0.0
        %3490 = vmatpush1.msra.mxu0 0.0
        %3491 = vmatprep.subr.mxu0 0.0
        %3492 = vmatpush1.msra.mxu0 0.0
        %3493 = vmatprep.subr.mxu0 0.0
        %3494 = vmatpush1.msra.mxu0 0.0
        %3495 = vmatprep.subr.mxu0 0.0
        %3496 = vmatpush1.msra.mxu0 0.0
        %3497 = vmatprep.subr.mxu0 0.0
        %3498 = vmatpush1.msra.mxu0 0.0
        %3499 = vmatprep.subr.mxu0 0.0
        %3500 = vmatpush1.msra.mxu0 0.0
        %3501 = vmatprep.subr.mxu0 0.0
        %3502 = vmatpush1.msra.mxu0 0.0
        %3503 = vmatprep.subr.mxu0 0.0
        %3504 = vmatpush1.msra.mxu0 0.0
        %3505 = vmatprep.subr.mxu0 0.0
        %3506 = vmatpush1.msra.mxu0 0.0
        %3507 = vmatprep.subr.mxu0 0.0
        %3508 = vmatpush1.msra.mxu0 0.0
        %3509 = vmatprep.subr.mxu0 0.0
        %3510 = vmatpush1.msra.mxu0 0.0
        %3511 = vmatprep.subr.mxu0 0.0
        %3512 = vmatpush1.msra.mxu0 0.0
        %3513 = vmatprep.subr.mxu0 0.0
        %3514 = vmatpush1.msra.mxu0 0.0
        %3515 = vmatprep.subr.mxu0 0.0
        %3516 = vmatpush1.msra.mxu0 0.0
        %3517 = vmatprep.subr.mxu0 0.0
        %3518 = vmatpush1.msra.mxu0 0.0
        %3519 = vmatprep.subr.mxu0 0.0
        %3520 = vmatpush1.msra.mxu0 0.0
        %3521 = vmatprep.subr.mxu0 0.0
        %3522 = vmatpush1.msra.mxu0 0.0
        %3523 = vmatprep.subr.mxu0 0.0
        %3524 = vmatpush1.msra.mxu0 0.0
        %3525 = vmatprep.subr.mxu0 0.0
        %3526 = vmatpush1.msra.mxu0 0.0
        %3527 = vmatprep.subr.mxu0 0.0
        %3528 = vmatpush1.msra.mxu0 0.0
        %3529 = vmatprep.subr.mxu0 0.0
        %3530 = vmatpush1.msra.mxu0 0.0
        %3531 = vmatprep.subr.mxu0 0.0
        %3532 = vmatpush1.msra.mxu0 0.0
        %3533 = vmatprep.subr.mxu0 0.0
        %3534 = vmatpush1.msra.mxu0 0.0
        %3535 = vmatprep.subr.mxu0 0.0
        %3536 = vmatpush1.msra.mxu0 0.0
        %3537 = vmatprep.mubr.f32.mxu0 0.0
        %3538 = vmatmul.mubr.f32.gmra.mrb[0].mxu0 %v3468
        %v3539 = vpop.f32.mrb[0].mxu0
        %v3540 = vadd.f32 0.0, %v3539
        %v3541 = vpop.f32.mrb[0].mxu0
        %3542 = vmatprep.mubr.f32.mxu0 0.0
        %3543 = vmatmul.mubr.f32.gmra.mrb[0].mxu0 %v3471
        %v3544 = vpop.f32.mrb[0].mxu0
        %v3545 = vadd.f32 0.0, %v3544
        %v3546 = vpop.f32.mrb[0].mxu0
        %3547 = vdwg.mxu0
        %v3549 = vsel %vm2061, %v2407, 0
        %v3552 = vsel %vm2061, %v2409, 0
        %3554 = vmatprep.subr.mxu0 0.0
        %3555 = vmatpush1.msra.mxu0 %v768
        %3556 = vmatprep.subr.mxu0 0.0
        %3557 = vmatpush1.msra.mxu0 %v773
        %3558 = vmatprep.subr.mxu0 0.0
        %3559 = vmatpush1.msra.mxu0 0.0
        %3560 = vmatprep.subr.mxu0 0.0
        %3561 = vmatpush1.msra.mxu0 0.0
        %3562 = vmatprep.subr.mxu0 0.0
        %3563 = vmatpush1.msra.mxu0 0.0
        %3564 = vmatprep.subr.mxu0 0.0
        %3565 = vmatpush1.msra.mxu0 0.0
        %3566 = vmatprep.subr.mxu0 0.0
        %3567 = vmatpush1.msra.mxu0 0.0
        %3568 = vmatprep.subr.mxu0 0.0
        %3569 = vmatpush1.msra.mxu0 0.0
        %3570 = vmatprep.subr.mxu0 0.0
        %3571 = vmatpush1.msra.mxu0 0.0
        %3572 = vmatprep.subr.mxu0 0.0
        %3573 = vmatpush1.msra.mxu0 0.0
        %3574 = vmatprep.subr.mxu0 0.0
        %3575 = vmatpush1.msra.mxu0 0.0
        %3576 = vmatprep.subr.mxu0 0.0
        %3577 = vmatpush1.msra.mxu0 0.0
        %3578 = vmatprep.subr.mxu0 0.0
        %3579 = vmatpush1.msra.mxu0 0.0
        %3580 = vmatprep.subr.mxu0 0.0
        %3581 = vmatpush1.msra.mxu0 0.0
        %3582 = vmatprep.subr.mxu0 0.0
        %3583 = vmatpush1.msra.mxu0 0.0
        %3584 = vmatprep.subr.mxu0 0.0
        %3585 = vmatpush1.msra.mxu0 0.0
        %3586 = vmatprep.subr.mxu0 0.0
        %3587 = vmatpush1.msra.mxu0 0.0
        %3588 = vmatprep.subr.mxu0 0.0
        %3589 = vmatpush1.msra.mxu0 0.0
        %3590 = vmatprep.subr.mxu0 0.0
        %3591 = vmatpush1.msra.mxu0 0.0
        %3592 = vmatprep.subr.mxu0 0.0
        %3593 = vmatpush1.msra.mxu0 0.0
        %3594 = vmatprep.subr.mxu0 0.0
        %3595 = vmatpush1.msra.mxu0 0.0
        %3596 = vmatprep.subr.mxu0 0.0
        %3597 = vmatpush1.msra.mxu0 0.0
        %3598 = vmatprep.subr.mxu0 0.0
        %3599 = vmatpush1.msra.mxu0 0.0
        %3600 = vmatprep.subr.mxu0 0.0
        %3601 = vmatpush1.msra.mxu0 0.0
        %3602 = vmatprep.subr.mxu0 0.0
        %3603 = vmatpush1.msra.mxu0 0.0
        %3604 = vmatprep.subr.mxu0 0.0
        %3605 = vmatpush1.msra.mxu0 0.0
        %3606 = vmatprep.subr.mxu0 0.0
        %3607 = vmatpush1.msra.mxu0 0.0
        %3608 = vmatprep.subr.mxu0 0.0
        %3609 = vmatpush1.msra.mxu0 0.0
        %3610 = vmatprep.subr.mxu0 0.0
        %3611 = vmatpush1.msra.mxu0 0.0
        %3612 = vmatprep.subr.mxu0 0.0
        %3613 = vmatpush1.msra.mxu0 0.0
        %3614 = vmatprep.subr.mxu0 0.0
        %3615 = vmatpush1.msra.mxu0 0.0
        %3616 = vmatprep.subr.mxu0 0.0
        %3617 = vmatpush1.msra.mxu0 0.0
        %3618 = vmatprep.mubr.f32.mxu0 0.0
        %3619 = vmatmul.mubr.f32.gmra.mrb[0].mxu0 %v3549
        %v3620 = vpop.f32.mrb[0].mxu0
        %v3621 = vadd.f32 0.0, %v3620
        %v3622 = vpop.f32.mrb[0].mxu0
        %3623 = vmatprep.mubr.f32.mxu0 0.0
        %3624 = vmatmul.mubr.f32.gmra.mrb[0].mxu0 %v3552
        %v3625 = vpop.f32.mrb[0].mxu0
        %v3626 = vadd.f32 0.0, %v3625
        %v3627 = vpop.f32.mrb[0].mxu0
        %3628 = vdwg.mxu0
        %v3630 = vsel %vm2061, %v2411, 0
        %v3633 = vsel %vm2061, %v2413, 0
        %3635 = vmatprep.subr.mxu0 0.0
        %3636 = vmatpush1.msra.mxu0 %v778
        %3637 = vmatprep.subr.mxu0 0.0
        %3638 = vmatpush1.msra.mxu0 %v783
        %3639 = vmatprep.subr.mxu0 0.0
        %3640 = vmatpush1.msra.mxu0 0.0
        %3641 = vmatprep.subr.mxu0 0.0
        %3642 = vmatpush1.msra.mxu0 0.0
        %3643 = vmatprep.subr.mxu0 0.0
        %3644 = vmatpush1.msra.mxu0 0.0
        %3645 = vmatprep.subr.mxu0 0.0
        %3646 = vmatpush1.msra.mxu0 0.0
        %3647 = vmatprep.subr.mxu0 0.0
        %3648 = vmatpush1.msra.mxu0 0.0
        %3649 = vmatprep.subr.mxu0 0.0
        %3650 = vmatpush1.msra.mxu0 0.0
        %3651 = vmatprep.subr.mxu0 0.0
        %3652 = vmatpush1.msra.mxu0 0.0
        %3653 = vmatprep.subr.mxu0 0.0
        %3654 = vmatpush1.msra.mxu0 0.0
        %3655 = vmatprep.subr.mxu0 0.0
        %3656 = vmatpush1.msra.mxu0 0.0
        %3657 = vmatprep.subr.mxu0 0.0
        %3658 = vmatpush1.msra.mxu0 0.0
        %3659 = vmatprep.subr.mxu0 0.0
        %3660 = vmatpush1.msra.mxu0 0.0
        %3661 = vmatprep.subr.mxu0 0.0
        %3662 = vmatpush1.msra.mxu0 0.0
        %3663 = vmatprep.subr.mxu0 0.0
        %3664 = vmatpush1.msra.mxu0 0.0
        %3665 = vmatprep.subr.mxu0 0.0
        %3666 = vmatpush1.msra.mxu0 0.0
        %3667 = vmatprep.subr.mxu0 0.0
        %3668 = vmatpush1.msra.mxu0 0.0
        %3669 = vmatprep.subr.mxu0 0.0
        %3670 = vmatpush1.msra.mxu0 0.0
        %3671 = vmatprep.subr.mxu0 0.0
        %3672 = vmatpush1.msra.mxu0 0.0
        %3673 = vmatprep.subr.mxu0 0.0
        %3674 = vmatpush1.msra.mxu0 0.0
        %3675 = vmatprep.subr.mxu0 0.0
        %3676 = vmatpush1.msra.mxu0 0.0
        %3677 = vmatprep.subr.mxu0 0.0
        %3678 = vmatpush1.msra.mxu0 0.0
        %3679 = vmatprep.subr.mxu0 0.0
        %3680 = vmatpush1.msra.mxu0 0.0
        %3681 = vmatprep.subr.mxu0 0.0
        %3682 = vmatpush1.msra.mxu0 0.0
        %3683 = vmatprep.subr.mxu0 0.0
        %3684 = vmatpush1.msra.mxu0 0.0
        %3685 = vmatprep.subr.mxu0 0.0
        %3686 = vmatpush1.msra.mxu0 0.0
        %3687 = vmatprep.subr.mxu0 0.0
        %3688 = vmatpush1.msra.mxu0 0.0
        %3689 = vmatprep.subr.mxu0 0.0
        %3690 = vmatpush1.msra.mxu0 0.0
        %3691 = vmatprep.subr.mxu0 0.0
        %3692 = vmatpush1.msra.mxu0 0.0
        %3693 = vmatprep.subr.mxu0 0.0
        %3694 = vmatpush1.msra.mxu0 0.0
        %3695 = vmatprep.subr.mxu0 0.0
        %3696 = vmatpush1.msra.mxu0 0.0
        %3697 = vmatprep.subr.mxu0 0.0
        %3698 = vmatpush1.msra.mxu0 0.0
        %3699 = vmatprep.mubr.f32.mxu0 0.0
        %3700 = vmatmul.mubr.f32.gmra.mrb[0].mxu0 %v3630
        %v3701 = vpop.f32.mrb[0].mxu0
        %v3702 = vadd.f32 0.0, %v3701
        %v3703 = vpop.f32.mrb[0].mxu0
        %3704 = vmatprep.mubr.f32.mxu0 0.0
        %3705 = vmatmul.mubr.f32.gmra.mrb[0].mxu0 %v3633
        %v3706 = vpop.f32.mrb[0].mxu0
        %v3707 = vadd.f32 0.0, %v3706
        %v3708 = vpop.f32.mrb[0].mxu0
        %3709 = vdwg.mxu0
        %3710 = vst [vmem:[%s204] sm:$0xff] %v2487
        %3711 = vst [vmem:[%s204 + $0x8] sm:$0xff] %v2492
        %3712 = vst [vmem:[%s204 + $0x10] sm:$0xff] %v2568
        %3713 = vst [vmem:[%s204 + $0x18] sm:$0xff] %v2573
        %3714 = vst [vmem:[%s204 + $0x20] sm:$0xff] %v2649
        %3715 = vst [vmem:[%s204 + $0x28] sm:$0xff] %v2654
        %3716 = vst [vmem:[%s204 + $0x30] sm:$0xff] %v2730
        %3717 = vst [vmem:[%s204 + $0x38] sm:$0xff] %v2735
        %3718 = vst [vmem:[%s204 + $0x40] sm:$0xff] %v2811
        %3719 = vst [vmem:[%s204 + $0x48] sm:$0xff] %v2816
        %3720 = vst [vmem:[%s204 + $0x50] sm:$0xff] %v2892
        %3721 = vst [vmem:[%s204 + $0x58] sm:$0xff] %v2897
        %3722 = vst [vmem:[%s204 + $0x60] sm:$0xff] %v2973
        %3723 = vst [vmem:[%s204 + $0x68] sm:$0xff] %v2978
        %3724 = vst [vmem:[%s204 + $0x70] sm:$0xff] %v3054
        %3725 = vst [vmem:[%s204 + $0x78] sm:$0xff] %v3059
        %3726 = vst [vmem:[%s204 + $0x80] sm:$0xff] %v3135
        %3727 = vst [vmem:[%s204 + $0x88] sm:$0xff] %v3140
        %3728 = vst [vmem:[%s204 + $0x90] sm:$0xff] %v3216
        %3729 = vst [vmem:[%s204 + $0x98] sm:$0xff] %v3221
        %3730 = vst [vmem:[%s204 + $0xa0] sm:$0xff] %v3297
        %3731 = vst [vmem:[%s204 + $0xa8] sm:$0xff] %v3302
        %3732 = vst [vmem:[%s204 + $0xb0] sm:$0xff] %v3378
        %3733 = vst [vmem:[%s204 + $0xb8] sm:$0xff] %v3383
        %3734 = vst [vmem:[%s204 + $0xc0] sm:$0xff] %v3459
        %3735 = vst [vmem:[%s204 + $0xc8] sm:$0xff] %v3464
        %3736 = vst [vmem:[%s204 + $0xd0] sm:$0xff] %v3540
        %3737 = vst [vmem:[%s204 + $0xd8] sm:$0xff] %v3545
        %3738 = vst [vmem:[%s204 + $0xe0] sm:$0xff] %v3621
        %3739 = vst [vmem:[%s204 + $0xe8] sm:$0xff] %v3626
        %3740 = vst [vmem:[%s204 + $0xf0] sm:$0xff] %v3702
        %3741 = vst [vmem:[%s204 + $0xf8] sm:$0xff] %v3707
        %s3742 = sand.u32 %s97, 1
        %s3743 = scalar_lea.sflag [#allocation4], %s3742
        %s3744 = sand.u32 %s97, 1
        %s3745 = smul.addr %s3744, 256
        %s3746 = scalar_lea.vmem [#allocation7], %s3745
        // Predicated region
        $region41: #{tpu_custom_call.1} parent=31 // pred_check
          %p3747 = pneg %p107
        $region42: #{tpu_custom_call.1} parent=31 // pred_check_branch
          %3749 = sbr.rel (%p3747) target = $region44
        $region43: #{tpu_custom_call.1} parent=31 // pred_region
          %s3750 = smul.u32 16, %s21
          %s3752 = ssub.s32 4096, 4096
          %3753 = vsyncadd %s3743, %s3752
          %s3754 = smul.addr %s3750, 2
          %s3755 = smul.addr %s3754, 128
          %s3756 = scalar_lea.hbm %s3, %s3755
          %s3757 = sshll.u32 %s3746, 4
          %s3758 = int_to_ptr.vmem [resolvable:$true] %s3757
          %3763 = dma.vmem_to_hbm [thread:$0]  %s3758, 4096, %s3756, %s3743, 128, 128, 8
        $region44: #{tpu_custom_call.1} parent=31 // pred_fallthru
          _
      $region32: #{tpu_custom_call.1} parent=5 // pred_fallthru
        _
      %p3764 = scmp.le.s32.totalorder 2, %s16
      // Predicated region
      $region45: #{tpu_custom_call.1} parent=5 // pred_check
        %p3765 = pneg %p3764
      $region46: #{tpu_custom_call.1} parent=5 // pred_check_branch
        %3767 = sbr.rel (%p3765) target = $region48
      $region47: #{tpu_custom_call.1} parent=5 // pred_region
        %s3768 = ssub.s32 %s16, 2
        // Predicated region
        $region49: #{tpu_custom_call.1} parent=47 // pred_check
          %p3769 = pneg %p113
        $region50: #{tpu_custom_call.1} parent=47 // pred_check_branch
          %3771 = sbr.rel (%p3769) target = $region52
        $region51: #{tpu_custom_call.1} parent=47 // pred_region
          %s3772 = sand.u32 %s98, 1
          %s3773 = scalar_lea.sflag [#allocation4], %s3772
          %s3774 = sand.u32 %s98, 1
          %s3775 = smul.addr %s3774, 256
          %s3776 = scalar_lea.vmem [#allocation7], %s3775
          %3777 = dma.done %s3773, 4096
        $region52: #{tpu_custom_call.1} parent=47 // pred_fallthru
          _
      $region48: #{tpu_custom_call.1} parent=5 // pred_fallthru
        _
    $region6: #{tpu_custom_call.1} parent=1 // loop_footer
      %s20 = sadd.s32 1, %s16
    $region7: #{tpu_custom_call.1} parent=1 // loop_footer_branch
      %15 = sbr.rel target = $region3
    $region8: #{tpu_custom_call.1} parent=1 // loop_exit
      _
    %3778 = vsyncpa [#allocation3], 1
    %s3779 = scalar_lea.sflag [#allocation3], 1
    %3780 = vsyncpa %s3779, 1
    %3781 = vsyncpa [#allocation6], 1
    %3782 = vsyncpa [#allocation4], 1
    %s3783 = scalar_lea.sflag [#allocation4], 1
    %3784 = vsyncpa %s3783, 1

</llo_original>
